<compile_context>
chip_gen: v7x
topology: tpu7x:2x2x1
jax: 0.10.0
libtpu: 0.0.40
codegen_flags: <defaults>
</compile_context>

<pallas_src>
import numpy as np
import jax
import jax.numpy as jnp
from jax import lax
from jax.experimental import pallas as pl
from jax.experimental.pallas import tpu as pltpu

START_TAG = "<START>"
STOP_TAG = "<STOP>"
TAG_TO_IX = {"B": 0, "I": 1, "O": 2, START_TAG: 3, STOP_TAG: 4}

NEG_INF = -10000.0


# ------------------------------ fused kernel -------------------------------- #

def make_fused_kernel(start_idx, stop_idx):
    def kernel(x_ref,
               wih_f_T_ref, wih_r_T_ref,
               whh_f_T_ref, whh_r_T_ref,
               b_f_ref, b_r_ref,
               h0f_ref, c0f_ref, h0r_ref, c0r_ref,
               wout_f_ref, wout_r_ref, wout_fT_ref, wout_rT_ref,
               bout_ref, bout_col_ref,
               trans_ref, trans_T_ref,
               feats_ref, bp_row_ref, bp_col_ref, score_ref, best_ref,
               gxf_scr, gxr_scr, featsT_scr):
        S, E = x_ref.shape
        H = h0f_ref.shape[1]
        T = trans_ref.shape[0]

        # ------------------------- BiLSTM (batch = 1) ------------------------ #
        # Hoisted input projection: one (S,E)@(E,4H) matmul per direction.
        gxf_scr[...] = jnp.dot(x_ref[...], wih_f_T_ref[...],
                               preferred_element_type=jnp.float32)
        gxr_scr[...] = jnp.dot(x_ref[...], wih_r_T_ref[...],
                               preferred_element_type=jnp.float32)

        whh_f_T = whh_f_T_ref[...]
        whh_r_T = whh_r_T_ref[...]
        b_f = b_f_ref[...]
        b_r = b_r_ref[...]

        def cell(gx_t, h, c, whh_T, b):
            # Gate layout (reordered host-side): [ i | f | o | g ]
            gates = gx_t + jnp.dot(h, whh_T, preferred_element_type=jnp.float32) + b
            sig = jax.nn.sigmoid(gates[:, 0:3 * H])       # i, f, o in one EUP pass
            g = jnp.tanh(gates[:, 3 * H:4 * H])
            i = sig[:, 0:H]
            f = sig[:, H:2 * H]
            o = sig[:, 2 * H:3 * H]
            c_new = f * c + i * g
            h_new = o * jnp.tanh(c_new)
            return h_new, c_new

        sub_pos_sh = lax.broadcasted_iota(jnp.int32, (S, H), 0)
        hf_all = jnp.zeros((S, H), jnp.float32)
        hr_all = jnp.zeros((S, H), jnp.float32)
        hf, cf = h0f_ref[...], c0f_ref[...]
        hr, cr = h0r_ref[...], c0r_ref[...]
        # Interleaved fwd/bwd directions, fully unrolled (S is compile-time constant).
        for t in range(S):
            tb = S - 1 - t
            hf, cf = cell(gxf_scr[pl.ds(t, 1), :], hf, cf, whh_f_T, b_f)
            hr, cr = cell(gxr_scr[pl.ds(tb, 1), :], hr, cr, whh_r_T, b_r)
            hf_all = jnp.where(sub_pos_sh == t, hf, hf_all)
            hr_all = jnp.where(sub_pos_sh == tb, hr, hr_all)

        # ------------------ hidden2tag: feats in both layouts ---------------- #
        feats = (jnp.dot(hf_all, wout_f_ref[...], preferred_element_type=jnp.float32)
                 + jnp.dot(hr_all, wout_r_ref[...], preferred_element_type=jnp.float32)
                 + bout_ref[...])
        feats_ref[...] = feats                                            # (S, T)
        feats_T = (jnp.einsum("th,sh->ts", wout_fT_ref[...], hf_all,
                              preferred_element_type=jnp.float32)
                   + jnp.einsum("th,sh->ts", wout_rT_ref[...], hr_all,
                                preferred_element_type=jnp.float32)
                   + bout_col_ref[...])
        featsT_scr[...] = feats_T                                         # (T, S)

        # ---------- Viterbi decode (transpose-free, alternating layout) ------ #
        trans = trans_ref[...]            # [next, prev]
        trans_T = trans_T_ref[...]        # [prev, next]
        prev_idx_sub = lax.broadcasted_iota(jnp.int32, (T, T), 0)   # prev on sublanes
        prev_idx_lane = lax.broadcasted_iota(jnp.int32, (T, T), 1)  # prev on lanes
        col_ids = lax.broadcasted_iota(jnp.int32, (T, 1), 0)
        sub_pos_st = lax.broadcasted_iota(jnp.int32, (S, T), 0)
        lane_pos_ts = lax.broadcasted_iota(jnp.int32, (T, S), 1)

        bp_row_acc = jnp.zeros((S, T), jnp.int32)   # backpointers for even steps
        bp_col_acc = jnp.zeros((T, S), jnp.int32)   # backpointers for odd steps

        fv_col = jnp.where(col_ids == start_idx, 0.0, NEG_INF).astype(jnp.float32)
        fv_row = None
        for t in range(S):
            if t % 2 == 0:
                # prev on sublanes, next on lanes
                scores = fv_col + trans_T                                  # (T, T)
                vmax = jnp.max(scores, axis=0, keepdims=True)              # (1, T)
                # first-occurrence argmax (matches np.argmax); falls back to T on NaN
                bp = jnp.min(jnp.where(scores == vmax, prev_idx_sub, T),
                             axis=0, keepdims=True)                        # (1, T)
                bp_row_acc = jnp.where(sub_pos_st == t, bp, bp_row_acc)
                fv_row = vmax + feats_ref[pl.ds(t, 1), :]                  # (1, T)
            else:
                # prev on lanes, next on sublanes
                scores = fv_row + trans                                    # (T, T)
                vmax = jnp.max(scores, axis=1, keepdims=True)              # (T, 1)
                bp = jnp.min(jnp.where(scores == vmax, prev_idx_lane, T),
                             axis=1, keepdims=True)                        # (T, 1)
                bp_col_acc = jnp.where(lane_pos_ts == t, bp, bp_col_acc)
                fv_col = vmax + featsT_scr[:, pl.ds(t, 1)]                 # (T, 1)

        bp_row_ref[...] = bp_row_acc
        bp_col_ref[...] = bp_col_acc

        if S % 2 == 0:   # last step had next-tag on sublanes -> fv is a column
            terminal = fv_col + trans_T[:, stop_idx:stop_idx + 1]          # (T, 1)
            tmax = jnp.max(terminal, axis=0, keepdims=True)                # (1, 1)
            best = jnp.min(jnp.where(terminal == tmax, col_ids, T),
                           axis=0, keepdims=True)                          # (1, 1)
        else:            # fv is a row over tags
            terminal = fv_row + trans_ref[pl.ds(stop_idx, 1), :]           # (1, T)
            row_ids = lax.broadcasted_iota(jnp.int32, (1, T), 1)
            tmax = jnp.max(terminal, axis=1, keepdims=True)
            best = jnp.min(jnp.where(terminal == tmax, row_ids, T),
                           axis=1, keepdims=True)
        score_ref[...] = tmax
        best_ref[...] = best

    return kernel


# -------------------------------- wrappers ---------------------------------- #

def _vmem():
    return pl.BlockSpec(memory_space=pltpu.MemorySpace.VMEM)


def bilstm_crf_fused(sentence, kp, start_idx, stop_idx):
    S = sentence.shape[0]
    E = sentence.shape[-1]
    H = kp["h0f"].shape[1]
    T = kp["trans"].shape[0]
    x2d = sentence.reshape(S, E)  # batch = 1 (same as .view(len(sentence), -1))

    n_in = 19
    return pl.pallas_call(
        make_fused_kernel(start_idx, stop_idx),
        out_shape=(jax.ShapeDtypeStruct((S, T), jnp.float32),   # feats
                   jax.ShapeDtypeStruct((S, T), jnp.int32),      # bptrs (even steps)
                   jax.ShapeDtypeStruct((T, S), jnp.int32),      # bptrs (odd steps)
                   jax.ShapeDtypeStruct((1, 1), jnp.float32),    # path score
                   jax.ShapeDtypeStruct((1, 1), jnp.int32)),     # best final tag
        in_specs=[_vmem() for _ in range(n_in)],
        out_specs=tuple(_vmem() for _ in range(5)),
        scratch_shapes=[pltpu.VMEM((S, 4 * H), jnp.float32),     # x @ Wih (fwd)
                        pltpu.VMEM((S, 4 * H), jnp.float32),     # x @ Wih (bwd)
                        pltpu.VMEM((T, S), jnp.float32)],        # feats transposed
    )(x2d,
      kp["wih_f_T"], kp["wih_r_T"], kp["whh_f_T"], kp["whh_r_T"],
      kp["b_f"], kp["b_r"],
      kp["h0f"], kp["c0f"], kp["h0r"], kp["c0r"],
      kp["wout_f"], kp["wout_r"], kp["wout_f_T"], kp["wout_r_T"],
      kp["bout"], kp["bout_col"],
      kp["trans"], kp["trans_T"])


def bilstm_crf_forward(sentence, kp, tag_to_ix):
    start_idx = tag_to_ix[START_TAG]
    stop_idx = tag_to_ix[STOP_TAG]
    feats, bp_row, bp_col, score, best = bilstm_crf_fused(
        sentence, kp, start_idx, stop_idx)
    # Single host<->device transfer for everything the trace-back needs.
    bp_row_np, bp_col_np, score_np, best_np = jax.device_get(
        (bp_row, bp_col, score, best))
    best_id = int(best_np[0, 0])
    path_score = float(score_np[0, 0])
    S = bp_row_np.shape[0]
    # TODO(synk): backpointer trace-back is an inherently sequential, data-dependent
    # loop returning a Python list (as in the PyTorch reference) -> done on host.
    best_path = [best_id]
    for t in range(S - 1, -1, -1):
        if t % 2 == 0:
            best_id = int(bp_row_np[t, best_id])
        else:
            best_id = int(bp_col_np[best_id, t])
        best_path.append(best_id)
    start = best_path.pop()
    assert start == start_idx
    best_path.reverse()
    return path_score, best_path, feats


# ----------------------- deterministic parameter init ----------------------- #

def init_params(key, embedding_dim, hidden_dim, tag_to_ix):
    T = len(tag_to_ix)
    H = hidden_dim // 2
    bound = 1.0 / np.sqrt(H)
    ks = jax.random.split(key, 13)

    def u(k, shape):
        return jax.random.uniform(k, shape, jnp.float32, -bound, bound)

    # PyTorch nn.LSTM layout: gate order [i, f, g, o] stacked along rows.
    wih_f = u(ks[0], (4 * H, embedding_dim))
    whh_f = u(ks[1], (4 * H, H))
    b_f = u(ks[2], (4 * H,)) + u(ks[3], (4 * H,))            # b_ih + b_hh
    wih_r = u(ks[4], (4 * H, embedding_dim))
    whh_r = u(ks[5], (4 * H, H))
    b_r = u(ks[6], (4 * H,)) + u(ks[7], (4 * H,))

    w_out = u(ks[8], (T, hidden_dim))                        # hidden2tag weight
    b_out = u(ks[9], (T,))

    transitions = jax.random.normal(ks[10], (T, T), jnp.float32)
    transitions = transitions.at[tag_to_ix[START_TAG], :].set(NEG_INF)
    transitions = transitions.at[:, tag_to_ix[STOP_TAG]].set(NEG_INF)

    # NOTE: PyTorch init_hidden() draws fresh randn per forward; fixed once here
    # (identical semantics for a single forward call).
    h0 = jax.random.normal(ks[11], (2, 1, H), jnp.float32)
    c0 = jax.random.normal(ks[12], (2, 1, H), jnp.float32)

    raw = dict(wih_f=wih_f, whh_f=whh_f, b_f=b_f,
               wih_r=wih_r, whh_r=whh_r, b_r=b_r,
               h0f=h0[0], c0f=c0[0], h0r=h0[1], c0r=c0[1],
               w_out=w_out, b_out=b_out, transitions=transitions)

    # Kernel-facing layout: gate rows reordered to [i, f, o, g] so the kernel can
    # apply one sigmoid over 3H contiguous lanes and one tanh over the last H lanes.
    perm = np.concatenate([np.arange(0, 2 * H),          # i, f
                           np.arange(3 * H, 4 * H),      # o
                           np.arange(2 * H, 3 * H)])     # g

    def reord(w):
        return w[perm]

    kern = dict(
        wih_f_T=reord(wih_f).T, wih_r_T=reord(wih_r).T,              # (E, 4H)
        whh_f_T=reord(whh_f).T, whh_r_T=reord(whh_r).T,              # (H, 4H)
        b_f=reord(b_f).reshape(1, 4 * H), b_r=reord(b_r).reshape(1, 4 * H),
        h0f=h0[0], c0f=c0[0], h0r=h0[1], c0r=c0[1],
        wout_f=w_out[:, :H].T, wout_r=w_out[:, H:].T,                # (H, T)
        wout_f_T=w_out[:, :H], wout_r_T=w_out[:, H:],                # (T, H)
        bout=b_out.reshape(1, T), bout_col=b_out.reshape(T, 1),
        trans=transitions,                                            # [next, prev]
        trans_T=jnp.transpose(transitions),                           # [prev, next]
    )
    return kern, raw


# --------------------------- numpy reference check -------------------------- #

def _sigmoid(x):
    return 1.0 / (1.0 + np.exp(-x))


def reference_forward(sentence, raw, tag_to_ix):
    start_idx = tag_to_ix[START_TAG]
    stop_idx = tag_to_ix[STOP_TAG]
    p = {k: np.asarray(v, dtype=np.float32) for k, v in raw.items()}
    S = sentence.shape[0]
    x = np.asarray(sentence, dtype=np.float32).reshape(S, -1)
    H = p["h0f"].shape[1]

    def run(order, wih, whh, b, h, c):
        outs = np.zeros((S, H), np.float32)
        for t in order:
            g = x[t:t + 1] @ wih.T + h @ whh.T + b[None, :]
            i = _sigmoid(g[:, 0:H]); f = _sigmoid(g[:, H:2 * H])
            gg = np.tanh(g[:, 2 * H:3 * H]); o = _sigmoid(g[:, 3 * H:4 * H])
            c = f * c + i * gg
            h = o * np.tanh(c)
            outs[t] = h[0]
        return outs

    hf = run(range(S), p["wih_f"], p["whh_f"], p["b_f"], p["h0f"], p["c0f"])
    hr = run(range(S - 1, -1, -1), p["wih_r"], p["whh_r"], p["b_r"],
             p["h0r"], p["c0r"])
    feats = np.concatenate([hf, hr], axis=1) @ p["w_out"].T + p["b_out"][None, :]

    trans = p["transitions"]
    T = trans.shape[0]
    fv = np.full((T,), NEG_INF, np.float32)
    fv[start_idx] = 0.0
    bptrs = []
    for t in range(S):
        scores = fv[None, :] + trans                      # [next, prev]
        bp = np.argmax(scores, axis=1)
        fv = scores[np.arange(T), bp] + feats[t]
        bptrs.append(bp)
    terminal = fv + trans[stop_idx]
    best = int(np.argmax(terminal))
    path_score = float(terminal[best])
    path = [best]
    for bp in reversed(bptrs):
        best = int(bp[best])
        path.append(best)
    assert path.pop() == start_idx
    path.reverse()
    return feats, path_score, path


if __name__ == "__main__":
    embedding_dim = 32
    hidden_dim = 32
    seq_len = 8

    key = jax.random.PRNGKey(0)
    k_param, k_x = jax.random.split(key)
    kern_params, raw_params = init_params(k_param, embedding_dim, hidden_dim, TAG_TO_IX)
    # sentence: (seq_len, batch=1, embedding_dim) -- PyTorch nn.LSTM default layout
    sentence = jax.random.normal(k_x, (seq_len, 1, embedding_dim), jnp.float32)

    score, tag_seq, feats = bilstm_crf_forward(sentence, kern_params, TAG_TO_IX)
    jax.block_until_ready(feats)

    # host-side correctness check against a pure numpy reference
    ref_feats, ref_score, ref_path = reference_forward(sentence, raw_params, TAG_TO_IX)
    np.testing.assert_allclose(np.asarray(jax.device_get(feats)), ref_feats,
                               rtol=2e-3, atol=2e-3)
    assert abs(score - ref_score) < 1e-2, (score, ref_score)
    assert list(tag_seq) == ref_path, (tag_seq, ref_path)

    print("KERNEL_OK")
</pallas_src>

<mosaic_0001>
module attributes {stable_mosaic.version = 11 : i64} {
  func.func @kernel(%arg0: memref<8x32xf32, #tpu.memory_space<vmem>>, %arg1: memref<32x64xf32, #tpu.memory_space<vmem>>, %arg2: memref<32x64xf32, #tpu.memory_space<vmem>>, %arg3: memref<16x64xf32, #tpu.memory_space<vmem>>, %arg4: memref<16x64xf32, #tpu.memory_space<vmem>>, %arg5: memref<1x64xf32, #tpu.memory_space<vmem>>, %arg6: memref<1x64xf32, #tpu.memory_space<vmem>>, %arg7: memref<1x16xf32, #tpu.memory_space<vmem>>, %arg8: memref<1x16xf32, #tpu.memory_space<vmem>>, %arg9: memref<1x16xf32, #tpu.memory_space<vmem>>, %arg10: memref<1x16xf32, #tpu.memory_space<vmem>>, %arg11: memref<16x5xf32, #tpu.memory_space<vmem>>, %arg12: memref<16x5xf32, #tpu.memory_space<vmem>>, %arg13: memref<5x16xf32, #tpu.memory_space<vmem>>, %arg14: memref<5x16xf32, #tpu.memory_space<vmem>>, %arg15: memref<1x5xf32, #tpu.memory_space<vmem>>, %arg16: memref<5x1xf32, #tpu.memory_space<vmem>>, %arg17: memref<5x5xf32, #tpu.memory_space<vmem>>, %arg18: memref<5x5xf32, #tpu.memory_space<vmem>>, %arg19: memref<8x5xf32, #tpu.memory_space<vmem>>, %arg20: memref<8x5xi32, #tpu.memory_space<vmem>>, %arg21: memref<5x8xi32, #tpu.memory_space<vmem>>, %arg22: memref<1x1xf32, #tpu.memory_space<vmem>>, %arg23: memref<1x1xi32, #tpu.memory_space<vmem>>, %arg24: memref<8x64xf32, #tpu.memory_space<vmem>>, %arg25: memref<8x64xf32, #tpu.memory_space<vmem>>, %arg26: memref<5x8xf32, #tpu.memory_space<vmem>>) attributes {dimension_semantics = [], scalar_prefetch = 0 : i64, scratch_operands = 3 : i64, tpu.core_type = #tpu.core_type<tc>} {
    %c0 = arith.constant 0 : index
    %c0_0 = arith.constant 0 : index
    %0 = vector.load %arg0[%c0, %c0_0] : memref<8x32xf32, #tpu.memory_space<vmem>>, vector<8x32xf32>
    %c0_1 = arith.constant 0 : index
    %c0_2 = arith.constant 0 : index
    %1 = vector.load %arg1[%c0_1, %c0_2] : memref<32x64xf32, #tpu.memory_space<vmem>>, vector<32x64xf32>
    %cst = arith.constant dense<0.000000e+00> : vector<8x64xf32>
    %2 = tpu.matmul %0, %1, %cst {dimension_numbers = #tpu.dot_dimension_numbers<[1], [0], [0], [1], [0, 0, 1, 1], [], []>} : vector<8x32xf32>, vector<32x64xf32>, vector<8x64xf32> -> vector<8x64xf32>
    %c0_3 = arith.constant 0 : index
    %c0_4 = arith.constant 0 : index
    %3 = vector.load %arg24[%c0_3, %c0_4] : memref<8x64xf32, #tpu.memory_space<vmem>>, vector<8x64xf32>
    tpu.vector_store %arg24[%c0_3, %c0_4], %2 {strides = array<i32>} : memref<8x64xf32, #tpu.memory_space<vmem>>, vector<8x64xf32>,
    %c0_5 = arith.constant 0 : index
    %c0_6 = arith.constant 0 : index
    %4 = vector.load %arg0[%c0_5, %c0_6] : memref<8x32xf32, #tpu.memory_space<vmem>>, vector<8x32xf32>
    %c0_7 = arith.constant 0 : index
    %c0_8 = arith.constant 0 : index
    %5 = vector.load %arg2[%c0_7, %c0_8] : memref<32x64xf32, #tpu.memory_space<vmem>>, vector<32x64xf32>
    %cst_9 = arith.constant dense<0.000000e+00> : vector<8x64xf32>
    %6 = tpu.matmul %4, %5, %cst_9 {dimension_numbers = #tpu.dot_dimension_numbers<[1], [0], [0], [1], [0, 0, 1, 1], [], []>} : vector<8x32xf32>, vector<32x64xf32>, vector<8x64xf32> -> vector<8x64xf32>
    %c0_10 = arith.constant 0 : index
    %c0_11 = arith.constant 0 : index
    %7 = vector.load %arg25[%c0_10, %c0_11] : memref<8x64xf32, #tpu.memory_space<vmem>>, vector<8x64xf32>
    tpu.vector_store %arg25[%c0_10, %c0_11], %6 {strides = array<i32>} : memref<8x64xf32, #tpu.memory_space<vmem>>, vector<8x64xf32>,
    %c0_12 = arith.constant 0 : index
    %c0_13 = arith.constant 0 : index
    %8 = vector.load %arg3[%c0_12, %c0_13] : memref<16x64xf32, #tpu.memory_space<vmem>>, vector<16x64xf32>
    %c0_14 = arith.constant 0 : index
    %c0_15 = arith.constant 0 : index
    %9 = vector.load %arg4[%c0_14, %c0_15] : memref<16x64xf32, #tpu.memory_space<vmem>>, vector<16x64xf32>
    %c0_16 = arith.constant 0 : index
    %c0_17 = arith.constant 0 : index
    %10 = vector.load %arg5[%c0_16, %c0_17] : memref<1x64xf32, #tpu.memory_space<vmem>>, vector<1x64xf32>
    %c0_18 = arith.constant 0 : index
    %c0_19 = arith.constant 0 : index
    %11 = vector.load %arg6[%c0_18, %c0_19] : memref<1x64xf32, #tpu.memory_space<vmem>>, vector<1x64xf32>
    %12 = tpu.iota {dimensions = array<i32: 0>} : vector<8x16xi32>
    %cst_20 = arith.constant 0.000000e+00 : f32
    %13 = vector.broadcast %cst_20 : f32 to vector<8x16xf32>
    %cst_21 = arith.constant 0.000000e+00 : f32
    %14 = vector.broadcast %cst_21 : f32 to vector<8x16xf32>
    %c0_22 = arith.constant 0 : index
    %c0_23 = arith.constant 0 : index
    %15 = vector.load %arg7[%c0_22, %c0_23] : memref<1x16xf32, #tpu.memory_space<vmem>>, vector<1x16xf32>
    %c0_24 = arith.constant 0 : index
    %c0_25 = arith.constant 0 : index
    %16 = vector.load %arg8[%c0_24, %c0_25] : memref<1x16xf32, #tpu.memory_space<vmem>>, vector<1x16xf32>
    %c0_26 = arith.constant 0 : index
    %c0_27 = arith.constant 0 : index
    %17 = vector.load %arg9[%c0_26, %c0_27] : memref<1x16xf32, #tpu.memory_space<vmem>>, vector<1x16xf32>
    %c0_28 = arith.constant 0 : index
    %c0_29 = arith.constant 0 : index
    %18 = vector.load %arg10[%c0_28, %c0_29] : memref<1x16xf32, #tpu.memory_space<vmem>>, vector<1x16xf32>
    %c0_30 = arith.constant 0 : index
    %c0_31 = arith.constant 0 : index
    %19 = vector.load %arg24[%c0_30, %c0_31] : memref<8x64xf32, #tpu.memory_space<vmem>>, vector<1x64xf32>
    %cst_32 = arith.constant dense<0.000000e+00> : vector<1x64xf32>
    %20 = tpu.matmul %15, %8, %cst_32 {dimension_numbers = #tpu.dot_dimension_numbers<[1], [0], [0], [1], [0, 0, 1, 1], [], []>} : vector<1x16xf32>, vector<16x64xf32>, vector<1x64xf32> -> vector<1x64xf32>
    %21 = arith.addf %19, %20 : vector<1x64xf32>
    %22 = arith.addf %21, %10 : vector<1x64xf32>
    %23 = vector.extract_strided_slice %22 {offsets = [0, 0], sizes = [1, 48], strides = [1, 1]} : vector<1x64xf32> to vector<1x48xf32>
    %24 = arith.negf %23 : vector<1x48xf32>
    %25 = math.exp %24 : vector<1x48xf32>
    %cst_33 = arith.constant 1.000000e+00 : f32
    %26 = vector.broadcast %cst_33 : f32 to vector<1x48xf32>
    %27 = arith.addf %26, %25 : vector<1x48xf32>
    %28 = arith.divf %26, %27 : vector<1x48xf32>
    %29 = vector.extract_strided_slice %22 {offsets = [0, 48], sizes = [1, 16], strides = [1, 1]} : vector<1x64xf32> to vector<1x16xf32>
    %30 = math.tanh %29 : vector<1x16xf32>
    %31 = vector.extract_strided_slice %28 {offsets = [0, 0], sizes = [1, 16], strides = [1, 1]} : vector<1x48xf32> to vector<1x16xf32>
    %32 = vector.extract_strided_slice %28 {offsets = [0, 16], sizes = [1, 16], strides = [1, 1]} : vector<1x48xf32> to vector<1x16xf32>
    %33 = vector.extract_strided_slice %28 {offsets = [0, 32], sizes = [1, 16], strides = [1, 1]} : vector<1x48xf32> to vector<1x16xf32>
    %34 = arith.mulf %32, %16 : vector<1x16xf32>
    %35 = arith.mulf %31, %30 : vector<1x16xf32>
    %36 = arith.addf %34, %35 : vector<1x16xf32>
    %37 = math.tanh %36 : vector<1x16xf32>
    %38 = arith.mulf %33, %37 : vector<1x16xf32>
    %c7 = arith.constant 7 : index
    %c0_34 = arith.constant 0 : index
    %39 = vector.load %arg25[%c7, %c0_34] : memref<8x64xf32, #tpu.memory_space<vmem>>, vector<1x64xf32>
    %cst_35 = arith.constant dense<0.000000e+00> : vector<1x64xf32>
    %40 = tpu.matmul %17, %9, %cst_35 {dimension_numbers = #tpu.dot_dimension_numbers<[1], [0], [0], [1], [0, 0, 1, 1], [], []>} : vector<1x16xf32>, vector<16x64xf32>, vector<1x64xf32> -> vector<1x64xf32>
    %41 = arith.addf %39, %40 : vector<1x64xf32>
    %42 = arith.addf %41, %11 : vector<1x64xf32>
    %43 = vector.extract_strided_slice %42 {offsets = [0, 0], sizes = [1, 48], strides = [1, 1]} : vector<1x64xf32> to vector<1x48xf32>
    %44 = arith.negf %43 : vector<1x48xf32>
    %45 = math.exp %44 : vector<1x48xf32>
    %cst_36 = arith.constant 1.000000e+00 : f32
    %46 = vector.broadcast %cst_36 : f32 to vector<1x48xf32>
    %47 = arith.addf %46, %45 : vector<1x48xf32>
    %48 = arith.divf %46, %47 : vector<1x48xf32>
    %49 = vector.extract_strided_slice %42 {offsets = [0, 48], sizes = [1, 16], strides = [1, 1]} : vector<1x64xf32> to vector<1x16xf32>
    %50 = math.tanh %49 : vector<1x16xf32>
    %51 = vector.extract_strided_slice %48 {offsets = [0, 0], sizes = [1, 16], strides = [1, 1]} : vector<1x48xf32> to vector<1x16xf32>
    %52 = vector.extract_strided_slice %48 {offsets = [0, 16], sizes = [1, 16], strides = [1, 1]} : vector<1x48xf32> to vector<1x16xf32>
    %53 = vector.extract_strided_slice %48 {offsets = [0, 32], sizes = [1, 16], strides = [1, 1]} : vector<1x48xf32> to vector<1x16xf32>
    %54 = arith.mulf %52, %18 : vector<1x16xf32>
    %55 = arith.mulf %51, %50 : vector<1x16xf32>
    %56 = arith.addf %54, %55 : vector<1x16xf32>
    %57 = math.tanh %56 : vector<1x16xf32>
    %58 = arith.mulf %53, %57 : vector<1x16xf32>
    %c0_i32 = arith.constant 0 : i32
    %59 = vector.broadcast %c0_i32 : i32 to vector<8x16xi32>
    %60 = arith.cmpi eq, %12, %59 : vector<8x16xi32>
    %61 = vector.shape_cast %38 : vector<1x16xf32> to vector<1x16xf32>
    %62 = vector.broadcast %61 : vector<1x16xf32> to vector<8x16xf32>
    %63 = arith.select %60, %62, %13 : vector<8x16xi1>, vector<8x16xf32>
    %c7_i32 = arith.constant 7 : i32
    %64 = vector.broadcast %c7_i32 : i32 to vector<8x16xi32>
    %65 = arith.cmpi eq, %12, %64 : vector<8x16xi32>
    %66 = vector.shape_cast %58 : vector<1x16xf32> to vector<1x16xf32>
    %67 = vector.broadcast %66 : vector<1x16xf32> to vector<8x16xf32>
    %68 = arith.select %65, %67, %14 : vector<8x16xi1>, vector<8x16xf32>
    %c1 = arith.constant 1 : index
    %c0_37 = arith.constant 0 : index
    %69 = vector.load %arg24[%c1, %c0_37] : memref<8x64xf32, #tpu.memory_space<vmem>>, vector<1x64xf32>
    %cst_38 = arith.constant dense<0.000000e+00> : vector<1x64xf32>
    %70 = tpu.matmul %38, %8, %cst_38 {dimension_numbers = #tpu.dot_dimension_numbers<[1], [0], [0], [1], [0, 0, 1, 1], [], []>} : vector<1x16xf32>, vector<16x64xf32>, vector<1x64xf32> -> vector<1x64xf32>
    %71 = arith.addf %69, %70 : vector<1x64xf32>
    %72 = arith.addf %71, %10 : vector<1x64xf32>
    %73 = vector.extract_strided_slice %72 {offsets = [0, 0], sizes = [1, 48], strides = [1, 1]} : vector<1x64xf32> to vector<1x48xf32>
    %74 = arith.negf %73 : vector<1x48xf32>
    %75 = math.exp %74 : vector<1x48xf32>
    %cst_39 = arith.constant 1.000000e+00 : f32
    %76 = vector.broadcast %cst_39 : f32 to vector<1x48xf32>
    %77 = arith.addf %76, %75 : vector<1x48xf32>
    %78 = arith.divf %76, %77 : vector<1x48xf32>
    %79 = vector.extract_strided_slice %72 {offsets = [0, 48], sizes = [1, 16], strides = [1, 1]} : vector<1x64xf32> to vector<1x16xf32>
    %80 = math.tanh %79 : vector<1x16xf32>
    %81 = vector.extract_strided_slice %78 {offsets = [0, 0], sizes = [1, 16], strides = [1, 1]} : vector<1x48xf32> to vector<1x16xf32>
    %82 = vector.extract_strided_slice %78 {offsets = [0, 16], sizes = [1, 16], strides = [1, 1]} : vector<1x48xf32> to vector<1x16xf32>
    %83 = vector.extract_strided_slice %78 {offsets = [0, 32], sizes = [1, 16], strides = [1, 1]} : vector<1x48xf32> to vector<1x16xf32>
    %84 = arith.mulf %82, %36 : vector<1x16xf32>
    %85 = arith.mulf %81, %80 : vector<1x16xf32>
    %86 = arith.addf %84, %85 : vector<1x16xf32>
    %87 = math.tanh %86 : vector<1x16xf32>
    %88 = arith.mulf %83, %87 : vector<1x16xf32>
    %c6 = arith.constant 6 : index
    %c0_40 = arith.constant 0 : index
    %89 = vector.load %arg25[%c6, %c0_40] : memref<8x64xf32, #tpu.memory_space<vmem>>, vector<1x64xf32>
    %cst_41 = arith.constant dense<0.000000e+00> : vector<1x64xf32>
    %90 = tpu.matmul %58, %9, %cst_41 {dimension_numbers = #tpu.dot_dimension_numbers<[1], [0], [0], [1], [0, 0, 1, 1], [], []>} : vector<1x16xf32>, vector<16x64xf32>, vector<1x64xf32> -> vector<1x64xf32>
    %91 = arith.addf %89, %90 : vector<1x64xf32>
    %92 = arith.addf %91, %11 : vector<1x64xf32>
    %93 = vector.extract_strided_slice %92 {offsets = [0, 0], sizes = [1, 48], strides = [1, 1]} : vector<1x64xf32> to vector<1x48xf32>
    %94 = arith.negf %93 : vector<1x48xf32>
    %95 = math.exp %94 : vector<1x48xf32>
    %cst_42 = arith.constant 1.000000e+00 : f32
    %96 = vector.broadcast %cst_42 : f32 to vector<1x48xf32>
    %97 = arith.addf %96, %95 : vector<1x48xf32>
    %98 = arith.divf %96, %97 : vector<1x48xf32>
    %99 = vector.extract_strided_slice %92 {offsets = [0, 48], sizes = [1, 16], strides = [1, 1]} : vector<1x64xf32> to vector<1x16xf32>
    %100 = math.tanh %99 : vector<1x16xf32>
    %101 = vector.extract_strided_slice %98 {offsets = [0, 0], sizes = [1, 16], strides = [1, 1]} : vector<1x48xf32> to vector<1x16xf32>
    %102 = vector.extract_strided_slice %98 {offsets = [0, 16], sizes = [1, 16], strides = [1, 1]} : vector<1x48xf32> to vector<1x16xf32>
    %103 = vector.extract_strided_slice %98 {offsets = [0, 32], sizes = [1, 16], strides = [1, 1]} : vector<1x48xf32> to vector<1x16xf32>
    %104 = arith.mulf %102, %56 : vector<1x16xf32>
    %105 = arith.mulf %101, %100 : vector<1x16xf32>
    %106 = arith.addf %104, %105 : vector<1x16xf32>
    %107 = math.tanh %106 : vector<1x16xf32>
    %108 = arith.mulf %103, %107 : vector<1x16xf32>
    %c1_i32 = arith.constant 1 : i32
    %109 = vector.broadcast %c1_i32 : i32 to vector<8x16xi32>
    %110 = arith.cmpi eq, %12, %109 : vector<8x16xi32>
    %111 = vector.shape_cast %88 : vector<1x16xf32> to vector<1x16xf32>
    %112 = vector.broadcast %111 : vector<1x16xf32> to vector<8x16xf32>
    %113 = arith.select %110, %112, %63 : vector<8x16xi1>, vector<8x16xf32>
    %c6_i32 = arith.constant 6 : i32
    %114 = vector.broadcast %c6_i32 : i32 to vector<8x16xi32>
    %115 = arith.cmpi eq, %12, %114 : vector<8x16xi32>
    %116 = vector.shape_cast %108 : vector<1x16xf32> to vector<1x16xf32>
    %117 = vector.broadcast %116 : vector<1x16xf32> to vector<8x16xf32>
    %118 = arith.select %115, %117, %68 : vector<8x16xi1>, vector<8x16xf32>
    %c2 = arith.constant 2 : index
    %c0_43 = arith.constant 0 : index
    %119 = vector.load %arg24[%c2, %c0_43] : memref<8x64xf32, #tpu.memory_space<vmem>>, vector<1x64xf32>
    %cst_44 = arith.constant dense<0.000000e+00> : vector<1x64xf32>
    %120 = tpu.matmul %88, %8, %cst_44 {dimension_numbers = #tpu.dot_dimension_numbers<[1], [0], [0], [1], [0, 0, 1, 1], [], []>} : vector<1x16xf32>, vector<16x64xf32>, vector<1x64xf32> -> vector<1x64xf32>
    %121 = arith.addf %119, %120 : vector<1x64xf32>
    %122 = arith.addf %121, %10 : vector<1x64xf32>
    %123 = vector.extract_strided_slice %122 {offsets = [0, 0], sizes = [1, 48], strides = [1, 1]} : vector<1x64xf32> to vector<1x48xf32>
    %124 = arith.negf %123 : vector<1x48xf32>
    %125 = math.exp %124 : vector<1x48xf32>
    %cst_45 = arith.constant 1.000000e+00 : f32
    %126 = vector.broadcast %cst_45 : f32 to vector<1x48xf32>
    %127 = arith.addf %126, %125 : vector<1x48xf32>
    %128 = arith.divf %126, %127 : vector<1x48xf32>
    %129 = vector.extract_strided_slice %122 {offsets = [0, 48], sizes = [1, 16], strides = [1, 1]} : vector<1x64xf32> to vector<1x16xf32>
    %130 = math.tanh %129 : vector<1x16xf32>
    %131 = vector.extract_strided_slice %128 {offsets = [0, 0], sizes = [1, 16], strides = [1, 1]} : vector<1x48xf32> to vector<1x16xf32>
    %132 = vector.extract_strided_slice %128 {offsets = [0, 16], sizes = [1, 16], strides = [1, 1]} : vector<1x48xf32> to vector<1x16xf32>
    %133 = vector.extract_strided_slice %128 {offsets = [0, 32], sizes = [1, 16], strides = [1, 1]} : vector<1x48xf32> to vector<1x16xf32>
    %134 = arith.mulf %132, %86 : vector<1x16xf32>
    %135 = arith.mulf %131, %130 : vector<1x16xf32>
    %136 = arith.addf %134, %135 : vector<1x16xf32>
    %137 = math.tanh %136 : vector<1x16xf32>
    %138 = arith.mulf %133, %137 : vector<1x16xf32>
    %c5 = arith.constant 5 : index
    %c0_46 = arith.constant 0 : index
    %139 = vector.load %arg25[%c5, %c0_46] : memref<8x64xf32, #tpu.memory_space<vmem>>, vector<1x64xf32>
    %cst_47 = arith.constant dense<0.000000e+00> : vector<1x64xf32>
    %140 = tpu.matmul %108, %9, %cst_47 {dimension_numbers = #tpu.dot_dimension_numbers<[1], [0], [0], [1], [0, 0, 1, 1], [], []>} : vector<1x16xf32>, vector<16x64xf32>, vector<1x64xf32> -> vector<1x64xf32>
    %141 = arith.addf %139, %140 : vector<1x64xf32>
    %142 = arith.addf %141, %11 : vector<1x64xf32>
    %143 = vector.extract_strided_slice %142 {offsets = [0, 0], sizes = [1, 48], strides = [1, 1]} : vector<1x64xf32> to vector<1x48xf32>
    %144 = arith.negf %143 : vector<1x48xf32>
    %145 = math.exp %144 : vector<1x48xf32>
    %cst_48 = arith.constant 1.000000e+00 : f32
    %146 = vector.broadcast %cst_48 : f32 to vector<1x48xf32>
    %147 = arith.addf %146, %145 : vector<1x48xf32>
    %148 = arith.divf %146, %147 : vector<1x48xf32>
    %149 = vector.extract_strided_slice %142 {offsets = [0, 48], sizes = [1, 16], strides = [1, 1]} : vector<1x64xf32> to vector<1x16xf32>
    %150 = math.tanh %149 : vector<1x16xf32>
    %151 = vector.extract_strided_slice %148 {offsets = [0, 0], sizes = [1, 16], strides = [1, 1]} : vector<1x48xf32> to vector<1x16xf32>
    %152 = vector.extract_strided_slice %148 {offsets = [0, 16], sizes = [1, 16], strides = [1, 1]} : vector<1x48xf32> to vector<1x16xf32>
    %153 = vector.extract_strided_slice %148 {offsets = [0, 32], sizes = [1, 16], strides = [1, 1]} : vector<1x48xf32> to vector<1x16xf32>
    %154 = arith.mulf %152, %106 : vector<1x16xf32>
    %155 = arith.mulf %151, %150 : vector<1x16xf32>
    %156 = arith.addf %154, %155 : vector<1x16xf32>
    %157 = math.tanh %156 : vector<1x16xf32>
    %158 = arith.mulf %153, %157 : vector<1x16xf32>
    %c2_i32 = arith.constant 2 : i32
    %159 = vector.broadcast %c2_i32 : i32 to vector<8x16xi32>
    %160 = arith.cmpi eq, %12, %159 : vector<8x16xi32>
    %161 = vector.shape_cast %138 : vector<1x16xf32> to vector<1x16xf32>
    %162 = vector.broadcast %161 : vector<1x16xf32> to vector<8x16xf32>
    %163 = arith.select %160, %162, %113 : vector<8x16xi1>, vector<8x16xf32>
    %c5_i32 = arith.constant 5 : i32
    %164 = vector.broadcast %c5_i32 : i32 to vector<8x16xi32>
    %165 = arith.cmpi eq, %12, %164 : vector<8x16xi32>
    %166 = vector.shape_cast %158 : vector<1x16xf32> to vector<1x16xf32>
    %167 = vector.broadcast %166 : vector<1x16xf32> to vector<8x16xf32>
    %168 = arith.select %165, %167, %118 : vector<8x16xi1>, vector<8x16xf32>
    %c3 = arith.constant 3 : index
    %c0_49 = arith.constant 0 : index
    %169 = vector.load %arg24[%c3, %c0_49] : memref<8x64xf32, #tpu.memory_space<vmem>>, vector<1x64xf32>
    %cst_50 = arith.constant dense<0.000000e+00> : vector<1x64xf32>
    %170 = tpu.matmul %138, %8, %cst_50 {dimension_numbers = #tpu.dot_dimension_numbers<[1], [0], [0], [1], [0, 0, 1, 1], [], []>} : vector<1x16xf32>, vector<16x64xf32>, vector<1x64xf32> -> vector<1x64xf32>
    %171 = arith.addf %169, %170 : vector<1x64xf32>
    %172 = arith.addf %171, %10 : vector<1x64xf32>
    %173 = vector.extract_strided_slice %172 {offsets = [0, 0], sizes = [1, 48], strides = [1, 1]} : vector<1x64xf32> to vector<1x48xf32>
    %174 = arith.negf %173 : vector<1x48xf32>
    %175 = math.exp %174 : vector<1x48xf32>
    %cst_51 = arith.constant 1.000000e+00 : f32
    %176 = vector.broadcast %cst_51 : f32 to vector<1x48xf32>
    %177 = arith.addf %176, %175 : vector<1x48xf32>
    %178 = arith.divf %176, %177 : vector<1x48xf32>
    %179 = vector.extract_strided_slice %172 {offsets = [0, 48], sizes = [1, 16], strides = [1, 1]} : vector<1x64xf32> to vector<1x16xf32>
    %180 = math.tanh %179 : vector<1x16xf32>
    %181 = vector.extract_strided_slice %178 {offsets = [0, 0], sizes = [1, 16], strides = [1, 1]} : vector<1x48xf32> to vector<1x16xf32>
    %182 = vector.extract_strided_slice %178 {offsets = [0, 16], sizes = [1, 16], strides = [1, 1]} : vector<1x48xf32> to vector<1x16xf32>
    %183 = vector.extract_strided_slice %178 {offsets = [0, 32], sizes = [1, 16], strides = [1, 1]} : vector<1x48xf32> to vector<1x16xf32>
    %184 = arith.mulf %182, %136 : vector<1x16xf32>
    %185 = arith.mulf %181, %180 : vector<1x16xf32>
    %186 = arith.addf %184, %185 : vector<1x16xf32>
    %187 = math.tanh %186 : vector<1x16xf32>
    %188 = arith.mulf %183, %187 : vector<1x16xf32>
    %c4 = arith.constant 4 : index
    %c0_52 = arith.constant 0 : index
    %189 = vector.load %arg25[%c4, %c0_52] : memref<8x64xf32, #tpu.memory_space<vmem>>, vector<1x64xf32>
    %cst_53 = arith.constant dense<0.000000e+00> : vector<1x64xf32>
    %190 = tpu.matmul %158, %9, %cst_53 {dimension_numbers = #tpu.dot_dimension_numbers<[1], [0], [0], [1], [0, 0, 1, 1], [], []>} : vector<1x16xf32>, vector<16x64xf32>, vector<1x64xf32> -> vector<1x64xf32>
    %191 = arith.addf %189, %190 : vector<1x64xf32>
    %192 = arith.addf %191, %11 : vector<1x64xf32>
    %193 = vector.extract_strided_slice %192 {offsets = [0, 0], sizes = [1, 48], strides = [1, 1]} : vector<1x64xf32> to vector<1x48xf32>
    %194 = arith.negf %193 : vector<1x48xf32>
    %195 = math.exp %194 : vector<1x48xf32>
    %cst_54 = arith.constant 1.000000e+00 : f32
    %196 = vector.broadcast %cst_54 : f32 to vector<1x48xf32>
    %197 = arith.addf %196, %195 : vector<1x48xf32>
    %198 = arith.divf %196, %197 : vector<1x48xf32>
    %199 = vector.extract_strided_slice %192 {offsets = [0, 48], sizes = [1, 16], strides = [1, 1]} : vector<1x64xf32> to vector<1x16xf32>
    %200 = math.tanh %199 : vector<1x16xf32>
    %201 = vector.extract_strided_slice %198 {offsets = [0, 0], sizes = [1, 16], strides = [1, 1]} : vector<1x48xf32> to vector<1x16xf32>
    %202 = vector.extract_strided_slice %198 {offsets = [0, 16], sizes = [1, 16], strides = [1, 1]} : vector<1x48xf32> to vector<1x16xf32>
    %203 = vector.extract_strided_slice %198 {offsets = [0, 32], sizes = [1, 16], strides = [1, 1]} : vector<1x48xf32> to vector<1x16xf32>
    %204 = arith.mulf %202, %156 : vector<1x16xf32>
    %205 = arith.mulf %201, %200 : vector<1x16xf32>
    %206 = arith.addf %204, %205 : vector<1x16xf32>
    %207 = math.tanh %206 : vector<1x16xf32>
    %208 = arith.mulf %203, %207 : vector<1x16xf32>
    %c3_i32 = arith.constant 3 : i32
    %209 = vector.broadcast %c3_i32 : i32 to vector<8x16xi32>
    %210 = arith.cmpi eq, %12, %209 : vector<8x16xi32>
    %211 = vector.shape_cast %188 : vector<1x16xf32> to vector<1x16xf32>
    %212 = vector.broadcast %211 : vector<1x16xf32> to vector<8x16xf32>
    %213 = arith.select %210, %212, %163 : vector<8x16xi1>, vector<8x16xf32>
    %c4_i32 = arith.constant 4 : i32
    %214 = vector.broadcast %c4_i32 : i32 to vector<8x16xi32>
    %215 = arith.cmpi eq, %12, %214 : vector<8x16xi32>
    %216 = vector.shape_cast %208 : vector<1x16xf32> to vector<1x16xf32>
    %217 = vector.broadcast %216 : vector<1x16xf32> to vector<8x16xf32>
    %218 = arith.select %215, %217, %168 : vector<8x16xi1>, vector<8x16xf32>
    %c4_55 = arith.constant 4 : index
    %c0_56 = arith.constant 0 : index
    %219 = vector.load %arg24[%c4_55, %c0_56] : memref<8x64xf32, #tpu.memory_space<vmem>>, vector<1x64xf32>
    %cst_57 = arith.constant dense<0.000000e+00> : vector<1x64xf32>
    %220 = tpu.matmul %188, %8, %cst_57 {dimension_numbers = #tpu.dot_dimension_numbers<[1], [0], [0], [1], [0, 0, 1, 1], [], []>} : vector<1x16xf32>, vector<16x64xf32>, vector<1x64xf32> -> vector<1x64xf32>
    %221 = arith.addf %219, %220 : vector<1x64xf32>
    %222 = arith.addf %221, %10 : vector<1x64xf32>
    %223 = vector.extract_strided_slice %222 {offsets = [0, 0], sizes = [1, 48], strides = [1, 1]} : vector<1x64xf32> to vector<1x48xf32>
    %224 = arith.negf %223 : vector<1x48xf32>
    %225 = math.exp %224 : vector<1x48xf32>
    %cst_58 = arith.constant 1.000000e+00 : f32
    %226 = vector.broadcast %cst_58 : f32 to vector<1x48xf32>
    %227 = arith.addf %226, %225 : vector<1x48xf32>
    %228 = arith.divf %226, %227 : vector<1x48xf32>
    %229 = vector.extract_strided_slice %222 {offsets = [0, 48], sizes = [1, 16], strides = [1, 1]} : vector<1x64xf32> to vector<1x16xf32>
    %230 = math.tanh %229 : vector<1x16xf32>
    %231 = vector.extract_strided_slice %228 {offsets = [0, 0], sizes = [1, 16], strides = [1, 1]} : vector<1x48xf32> to vector<1x16xf32>
    %232 = vector.extract_strided_slice %228 {offsets = [0, 16], sizes = [1, 16], strides = [1, 1]} : vector<1x48xf32> to vector<1x16xf32>
    %233 = vector.extract_strided_slice %228 {offsets = [0, 32], sizes = [1, 16], strides = [1, 1]} : vector<1x48xf32> to vector<1x16xf32>
    %234 = arith.mulf %232, %186 : vector<1x16xf32>
    %235 = arith.mulf %231, %230 : vector<1x16xf32>
    %236 = arith.addf %234, %235 : vector<1x16xf32>
    %237 = math.tanh %236 : vector<1x16xf32>
    %238 = arith.mulf %233, %237 : vector<1x16xf32>
    %c3_59 = arith.constant 3 : index
    %c0_60 = arith.constant 0 : index
    %239 = vector.load %arg25[%c3_59, %c0_60] : memref<8x64xf32, #tpu.memory_space<vmem>>, vector<1x64xf32>
    %cst_61 = arith.constant dense<0.000000e+00> : vector<1x64xf32>
    %240 = tpu.matmul %208, %9, %cst_61 {dimension_numbers = #tpu.dot_dimension_numbers<[1], [0], [0], [1], [0, 0, 1, 1], [], []>} : vector<1x16xf32>, vector<16x64xf32>, vector<1x64xf32> -> vector<1x64xf32>
    %241 = arith.addf %239, %240 : vector<1x64xf32>
    %242 = arith.addf %241, %11 : vector<1x64xf32>
    %243 = vector.extract_strided_slice %242 {offsets = [0, 0], sizes = [1, 48], strides = [1, 1]} : vector<1x64xf32> to vector<1x48xf32>
    %244 = arith.negf %243 : vector<1x48xf32>
    %245 = math.exp %244 : vector<1x48xf32>
    %cst_62 = arith.constant 1.000000e+00 : f32
    %246 = vector.broadcast %cst_62 : f32 to vector<1x48xf32>
    %247 = arith.addf %246, %245 : vector<1x48xf32>
    %248 = arith.divf %246, %247 : vector<1x48xf32>
    %249 = vector.extract_strided_slice %242 {offsets = [0, 48], sizes = [1, 16], strides = [1, 1]} : vector<1x64xf32> to vector<1x16xf32>
    %250 = math.tanh %249 : vector<1x16xf32>
    %251 = vector.extract_strided_slice %248 {offsets = [0, 0], sizes = [1, 16], strides = [1, 1]} : vector<1x48xf32> to vector<1x16xf32>
    %252 = vector.extract_strided_slice %248 {offsets = [0, 16], sizes = [1, 16], strides = [1, 1]} : vector<1x48xf32> to vector<1x16xf32>
    %253 = vector.extract_strided_slice %248 {offsets = [0, 32], sizes = [1, 16], strides = [1, 1]} : vector<1x48xf32> to vector<1x16xf32>
    %254 = arith.mulf %252, %206 : vector<1x16xf32>
    %255 = arith.mulf %251, %250 : vector<1x16xf32>
    %256 = arith.addf %254, %255 : vector<1x16xf32>
    %257 = math.tanh %256 : vector<1x16xf32>
    %258 = arith.mulf %253, %257 : vector<1x16xf32>
    %c4_i32_63 = arith.constant 4 : i32
    %259 = vector.broadcast %c4_i32_63 : i32 to vector<8x16xi32>
    %260 = arith.cmpi eq, %12, %259 : vector<8x16xi32>
    %261 = vector.shape_cast %238 : vector<1x16xf32> to vector<1x16xf32>
    %262 = vector.broadcast %261 : vector<1x16xf32> to vector<8x16xf32>
    %263 = arith.select %260, %262, %213 : vector<8x16xi1>, vector<8x16xf32>
    %c3_i32_64 = arith.constant 3 : i32
    %264 = vector.broadcast %c3_i32_64 : i32 to vector<8x16xi32>
    %265 = arith.cmpi eq, %12, %264 : vector<8x16xi32>
    %266 = vector.shape_cast %258 : vector<1x16xf32> to vector<1x16xf32>
    %267 = vector.broadcast %266 : vector<1x16xf32> to vector<8x16xf32>
    %268 = arith.select %265, %267, %218 : vector<8x16xi1>, vector<8x16xf32>
    %c5_65 = arith.constant 5 : index
    %c0_66 = arith.constant 0 : index
    %269 = vector.load %arg24[%c5_65, %c0_66] : memref<8x64xf32, #tpu.memory_space<vmem>>, vector<1x64xf32>
    %cst_67 = arith.constant dense<0.000000e+00> : vector<1x64xf32>
    %270 = tpu.matmul %238, %8, %cst_67 {dimension_numbers = #tpu.dot_dimension_numbers<[1], [0], [0], [1], [0, 0, 1, 1], [], []>} : vector<1x16xf32>, vector<16x64xf32>, vector<1x64xf32> -> vector<1x64xf32>
    %271 = arith.addf %269, %270 : vector<1x64xf32>
    %272 = arith.addf %271, %10 : vector<1x64xf32>
    %273 = vector.extract_strided_slice %272 {offsets = [0, 0], sizes = [1, 48], strides = [1, 1]} : vector<1x64xf32> to vector<1x48xf32>
    %274 = arith.negf %273 : vector<1x48xf32>
    %275 = math.exp %274 : vector<1x48xf32>
    %cst_68 = arith.constant 1.000000e+00 : f32
    %276 = vector.broadcast %cst_68 : f32 to vector<1x48xf32>
    %277 = arith.addf %276, %275 : vector<1x48xf32>
    %278 = arith.divf %276, %277 : vector<1x48xf32>
    %279 = vector.extract_strided_slice %272 {offsets = [0, 48], sizes = [1, 16], strides = [1, 1]} : vector<1x64xf32> to vector<1x16xf32>
    %280 = math.tanh %279 : vector<1x16xf32>
    %281 = vector.extract_strided_slice %278 {offsets = [0, 0], sizes = [1, 16], strides = [1, 1]} : vector<1x48xf32> to vector<1x16xf32>
    %282 = vector.extract_strided_slice %278 {offsets = [0, 16], sizes = [1, 16], strides = [1, 1]} : vector<1x48xf32> to vector<1x16xf32>
    %283 = vector.extract_strided_slice %278 {offsets = [0, 32], sizes = [1, 16], strides = [1, 1]} : vector<1x48xf32> to vector<1x16xf32>
    %284 = arith.mulf %282, %236 : vector<1x16xf32>
    %285 = arith.mulf %281, %280 : vector<1x16xf32>
    %286 = arith.addf %284, %285 : vector<1x16xf32>
    %287 = math.tanh %286 : vector<1x16xf32>
    %288 = arith.mulf %283, %287 : vector<1x16xf32>
    %c2_69 = arith.constant 2 : index
    %c0_70 = arith.constant 0 : index
    %289 = vector.load %arg25[%c2_69, %c0_70] : memref<8x64xf32, #tpu.memory_space<vmem>>, vector<1x64xf32>
    %cst_71 = arith.constant dense<0.000000e+00> : vector<1x64xf32>
    %290 = tpu.matmul %258, %9, %cst_71 {dimension_numbers = #tpu.dot_dimension_numbers<[1], [0], [0], [1], [0, 0, 1, 1], [], []>} : vector<1x16xf32>, vector<16x64xf32>, vector<1x64xf32> -> vector<1x64xf32>
    %291 = arith.addf %289, %290 : vector<1x64xf32>
    %292 = arith.addf %291, %11 : vector<1x64xf32>
    %293 = vector.extract_strided_slice %292 {offsets = [0, 0], sizes = [1, 48], strides = [1, 1]} : vector<1x64xf32> to vector<1x48xf32>
    %294 = arith.negf %293 : vector<1x48xf32>
    %295 = math.exp %294 : vector<1x48xf32>
    %cst_72 = arith.constant 1.000000e+00 : f32
    %296 = vector.broadcast %cst_72 : f32 to vector<1x48xf32>
    %297 = arith.addf %296, %295 : vector<1x48xf32>
    %298 = arith.divf %296, %297 : vector<1x48xf32>
    %299 = vector.extract_strided_slice %292 {offsets = [0, 48], sizes = [1, 16], strides = [1, 1]} : vector<1x64xf32> to vector<1x16xf32>
    %300 = math.tanh %299 : vector<1x16xf32>
    %301 = vector.extract_strided_slice %298 {offsets = [0, 0], sizes = [1, 16], strides = [1, 1]} : vector<1x48xf32> to vector<1x16xf32>
    %302 = vector.extract_strided_slice %298 {offsets = [0, 16], sizes = [1, 16], strides = [1, 1]} : vector<1x48xf32> to vector<1x16xf32>
    %303 = vector.extract_strided_slice %298 {offsets = [0, 32], sizes = [1, 16], strides = [1, 1]} : vector<1x48xf32> to vector<1x16xf32>
    %304 = arith.mulf %302, %256 : vector<1x16xf32>
    %305 = arith.mulf %301, %300 : vector<1x16xf32>
    %306 = arith.addf %304, %305 : vector<1x16xf32>
    %307 = math.tanh %306 : vector<1x16xf32>
    %308 = arith.mulf %303, %307 : vector<1x16xf32>
    %c5_i32_73 = arith.constant 5 : i32
    %309 = vector.broadcast %c5_i32_73 : i32 to vector<8x16xi32>
    %310 = arith.cmpi eq, %12, %309 : vector<8x16xi32>
    %311 = vector.shape_cast %288 : vector<1x16xf32> to vector<1x16xf32>
    %312 = vector.broadcast %311 : vector<1x16xf32> to vector<8x16xf32>
    %313 = arith.select %310, %312, %263 : vector<8x16xi1>, vector<8x16xf32>
    %c2_i32_74 = arith.constant 2 : i32
    %314 = vector.broadcast %c2_i32_74 : i32 to vector<8x16xi32>
    %315 = arith.cmpi eq, %12, %314 : vector<8x16xi32>
    %316 = vector.shape_cast %308 : vector<1x16xf32> to vector<1x16xf32>
    %317 = vector.broadcast %316 : vector<1x16xf32> to vector<8x16xf32>
    %318 = arith.select %315, %317, %268 : vector<8x16xi1>, vector<8x16xf32>
    %c6_75 = arith.constant 6 : index
    %c0_76 = arith.constant 0 : index
    %319 = vector.load %arg24[%c6_75, %c0_76] : memref<8x64xf32, #tpu.memory_space<vmem>>, vector<1x64xf32>
    %cst_77 = arith.constant dense<0.000000e+00> : vector<1x64xf32>
    %320 = tpu.matmul %288, %8, %cst_77 {dimension_numbers = #tpu.dot_dimension_numbers<[1], [0], [0], [1], [0, 0, 1, 1], [], []>} : vector<1x16xf32>, vector<16x64xf32>, vector<1x64xf32> -> vector<1x64xf32>
    %321 = arith.addf %319, %320 : vector<1x64xf32>
    %322 = arith.addf %321, %10 : vector<1x64xf32>
    %323 = vector.extract_strided_slice %322 {offsets = [0, 0], sizes = [1, 48], strides = [1, 1]} : vector<1x64xf32> to vector<1x48xf32>
    %324 = arith.negf %323 : vector<1x48xf32>
    %325 = math.exp %324 : vector<1x48xf32>
    %cst_78 = arith.constant 1.000000e+00 : f32
    %326 = vector.broadcast %cst_78 : f32 to vector<1x48xf32>
    %327 = arith.addf %326, %325 : vector<1x48xf32>
    %328 = arith.divf %326, %327 : vector<1x48xf32>
    %329 = vector.extract_strided_slice %322 {offsets = [0, 48], sizes = [1, 16], strides = [1, 1]} : vector<1x64xf32> to vector<1x16xf32>
    %330 = math.tanh %329 : vector<1x16xf32>
    %331 = vector.extract_strided_slice %328 {offsets = [0, 0], sizes = [1, 16], strides = [1, 1]} : vector<1x48xf32> to vector<1x16xf32>
    %332 = vector.extract_strided_slice %328 {offsets = [0, 16], sizes = [1, 16], strides = [1, 1]} : vector<1x48xf32> to vector<1x16xf32>
    %333 = vector.extract_strided_slice %328 {offsets = [0, 32], sizes = [1, 16], strides = [1, 1]} : vector<1x48xf32> to vector<1x16xf32>
    %334 = arith.mulf %332, %286 : vector<1x16xf32>
    %335 = arith.mulf %331, %330 : vector<1x16xf32>
    %336 = arith.addf %334, %335 : vector<1x16xf32>
    %337 = math.tanh %336 : vector<1x16xf32>
    %338 = arith.mulf %333, %337 : vector<1x16xf32>
    %c1_79 = arith.constant 1 : index
    %c0_80 = arith.constant 0 : index
    %339 = vector.load %arg25[%c1_79, %c0_80] : memref<8x64xf32, #tpu.memory_space<vmem>>, vector<1x64xf32>
    %cst_81 = arith.constant dense<0.000000e+00> : vector<1x64xf32>
    %340 = tpu.matmul %308, %9, %cst_81 {dimension_numbers = #tpu.dot_dimension_numbers<[1], [0], [0], [1], [0, 0, 1, 1], [], []>} : vector<1x16xf32>, vector<16x64xf32>, vector<1x64xf32> -> vector<1x64xf32>
    %341 = arith.addf %339, %340 : vector<1x64xf32>
    %342 = arith.addf %341, %11 : vector<1x64xf32>
    %343 = vector.extract_strided_slice %342 {offsets = [0, 0], sizes = [1, 48], strides = [1, 1]} : vector<1x64xf32> to vector<1x48xf32>
    %344 = arith.negf %343 : vector<1x48xf32>
    %345 = math.exp %344 : vector<1x48xf32>
    %cst_82 = arith.constant 1.000000e+00 : f32
    %346 = vector.broadcast %cst_82 : f32 to vector<1x48xf32>
    %347 = arith.addf %346, %345 : vector<1x48xf32>
    %348 = arith.divf %346, %347 : vector<1x48xf32>
    %349 = vector.extract_strided_slice %342 {offsets = [0, 48], sizes = [1, 16], strides = [1, 1]} : vector<1x64xf32> to vector<1x16xf32>
    %350 = math.tanh %349 : vector<1x16xf32>
    %351 = vector.extract_strided_slice %348 {offsets = [0, 0], sizes = [1, 16], strides = [1, 1]} : vector<1x48xf32> to vector<1x16xf32>
    %352 = vector.extract_strided_slice %348 {offsets = [0, 16], sizes = [1, 16], strides = [1, 1]} : vector<1x48xf32> to vector<1x16xf32>
    %353 = vector.extract_strided_slice %348 {offsets = [0, 32], sizes = [1, 16], strides = [1, 1]} : vector<1x48xf32> to vector<1x16xf32>
    %354 = arith.mulf %352, %306 : vector<1x16xf32>
    %355 = arith.mulf %351, %350 : vector<1x16xf32>
    %356 = arith.addf %354, %355 : vector<1x16xf32>
    %357 = math.tanh %356 : vector<1x16xf32>
    %358 = arith.mulf %353, %357 : vector<1x16xf32>
    %c6_i32_83 = arith.constant 6 : i32
    %359 = vector.broadcast %c6_i32_83 : i32 to vector<8x16xi32>
    %360 = arith.cmpi eq, %12, %359 : vector<8x16xi32>
    %361 = vector.shape_cast %338 : vector<1x16xf32> to vector<1x16xf32>
    %362 = vector.broadcast %361 : vector<1x16xf32> to vector<8x16xf32>
    %363 = arith.select %360, %362, %313 : vector<8x16xi1>, vector<8x16xf32>
    %c1_i32_84 = arith.constant 1 : i32
    %364 = vector.broadcast %c1_i32_84 : i32 to vector<8x16xi32>
    %365 = arith.cmpi eq, %12, %364 : vector<8x16xi32>
    %366 = vector.shape_cast %358 : vector<1x16xf32> to vector<1x16xf32>
    %367 = vector.broadcast %366 : vector<1x16xf32> to vector<8x16xf32>
    %368 = arith.select %365, %367, %318 : vector<8x16xi1>, vector<8x16xf32>
    %c7_85 = arith.constant 7 : index
    %c0_86 = arith.constant 0 : index
    %369 = vector.load %arg24[%c7_85, %c0_86] : memref<8x64xf32, #tpu.memory_space<vmem>>, vector<1x64xf32>
    %cst_87 = arith.constant dense<0.000000e+00> : vector<1x64xf32>
    %370 = tpu.matmul %338, %8, %cst_87 {dimension_numbers = #tpu.dot_dimension_numbers<[1], [0], [0], [1], [0, 0, 1, 1], [], []>} : vector<1x16xf32>, vector<16x64xf32>, vector<1x64xf32> -> vector<1x64xf32>
    %371 = arith.addf %369, %370 : vector<1x64xf32>
    %372 = arith.addf %371, %10 : vector<1x64xf32>
    %373 = vector.extract_strided_slice %372 {offsets = [0, 0], sizes = [1, 48], strides = [1, 1]} : vector<1x64xf32> to vector<1x48xf32>
    %374 = arith.negf %373 : vector<1x48xf32>
    %375 = math.exp %374 : vector<1x48xf32>
    %cst_88 = arith.constant 1.000000e+00 : f32
    %376 = vector.broadcast %cst_88 : f32 to vector<1x48xf32>
    %377 = arith.addf %376, %375 : vector<1x48xf32>
    %378 = arith.divf %376, %377 : vector<1x48xf32>
    %379 = vector.extract_strided_slice %372 {offsets = [0, 48], sizes = [1, 16], strides = [1, 1]} : vector<1x64xf32> to vector<1x16xf32>
    %380 = math.tanh %379 : vector<1x16xf32>
    %381 = vector.extract_strided_slice %378 {offsets = [0, 0], sizes = [1, 16], strides = [1, 1]} : vector<1x48xf32> to vector<1x16xf32>
    %382 = vector.extract_strided_slice %378 {offsets = [0, 16], sizes = [1, 16], strides = [1, 1]} : vector<1x48xf32> to vector<1x16xf32>
    %383 = vector.extract_strided_slice %378 {offsets = [0, 32], sizes = [1, 16], strides = [1, 1]} : vector<1x48xf32> to vector<1x16xf32>
    %384 = arith.mulf %382, %336 : vector<1x16xf32>
    %385 = arith.mulf %381, %380 : vector<1x16xf32>
    %386 = arith.addf %384, %385 : vector<1x16xf32>
    %387 = math.tanh %386 : vector<1x16xf32>
    %388 = arith.mulf %383, %387 : vector<1x16xf32>
    %c0_89 = arith.constant 0 : index
    %c0_90 = arith.constant 0 : index
    %389 = vector.load %arg25[%c0_89, %c0_90] : memref<8x64xf32, #tpu.memory_space<vmem>>, vector<1x64xf32>
    %cst_91 = arith.constant dense<0.000000e+00> : vector<1x64xf32>
    %390 = tpu.matmul %358, %9, %cst_91 {dimension_numbers = #tpu.dot_dimension_numbers<[1], [0], [0], [1], [0, 0, 1, 1], [], []>} : vector<1x16xf32>, vector<16x64xf32>, vector<1x64xf32> -> vector<1x64xf32>
    %391 = arith.addf %389, %390 : vector<1x64xf32>
    %392 = arith.addf %391, %11 : vector<1x64xf32>
    %393 = vector.extract_strided_slice %392 {offsets = [0, 0], sizes = [1, 48], strides = [1, 1]} : vector<1x64xf32> to vector<1x48xf32>
    %394 = arith.negf %393 : vector<1x48xf32>
    %395 = math.exp %394 : vector<1x48xf32>
    %cst_92 = arith.constant 1.000000e+00 : f32
    %396 = vector.broadcast %cst_92 : f32 to vector<1x48xf32>
    %397 = arith.addf %396, %395 : vector<1x48xf32>
    %398 = arith.divf %396, %397 : vector<1x48xf32>
    %399 = vector.extract_strided_slice %392 {offsets = [0, 48], sizes = [1, 16], strides = [1, 1]} : vector<1x64xf32> to vector<1x16xf32>
    %400 = math.tanh %399 : vector<1x16xf32>
    %401 = vector.extract_strided_slice %398 {offsets = [0, 0], sizes = [1, 16], strides = [1, 1]} : vector<1x48xf32> to vector<1x16xf32>
    %402 = vector.extract_strided_slice %398 {offsets = [0, 16], sizes = [1, 16], strides = [1, 1]} : vector<1x48xf32> to vector<1x16xf32>
    %403 = vector.extract_strided_slice %398 {offsets = [0, 32], sizes = [1, 16], strides = [1, 1]} : vector<1x48xf32> to vector<1x16xf32>
    %404 = arith.mulf %402, %356 : vector<1x16xf32>
    %405 = arith.mulf %401, %400 : vector<1x16xf32>
    %406 = arith.addf %404, %405 : vector<1x16xf32>
    %407 = math.tanh %406 : vector<1x16xf32>
    %408 = arith.mulf %403, %407 : vector<1x16xf32>
    %c7_i32_93 = arith.constant 7 : i32
    %409 = vector.broadcast %c7_i32_93 : i32 to vector<8x16xi32>
    %410 = arith.cmpi eq, %12, %409 : vector<8x16xi32>
    %411 = vector.shape_cast %388 : vector<1x16xf32> to vector<1x16xf32>
    %412 = vector.broadcast %411 : vector<1x16xf32> to vector<8x16xf32>
    %413 = arith.select %410, %412, %363 : vector<8x16xi1>, vector<8x16xf32>
    %c0_i32_94 = arith.constant 0 : i32
    %414 = vector.broadcast %c0_i32_94 : i32 to vector<8x16xi32>
    %415 = arith.cmpi eq, %12, %414 : vector<8x16xi32>
    %416 = vector.shape_cast %408 : vector<1x16xf32> to vector<1x16xf32>
    %417 = vector.broadcast %416 : vector<1x16xf32> to vector<8x16xf32>
    %418 = arith.select %415, %417, %368 : vector<8x16xi1>, vector<8x16xf32>
    %c0_95 = arith.constant 0 : index
    %c0_96 = arith.constant 0 : index
    %419 = vector.load %arg11[%c0_95, %c0_96] : memref<16x5xf32, #tpu.memory_space<vmem>>, vector<16x5xf32>
    %cst_97 = arith.constant dense<0.000000e+00> : vector<8x5xf32>
    %420 = tpu.matmul %413, %419, %cst_97 {dimension_numbers = #tpu.dot_dimension_numbers<[1], [0], [0], [1], [0, 0, 1, 1], [], []>} : vector<8x16xf32>, vector<16x5xf32>, vector<8x5xf32> -> vector<8x5xf32>
    %c0_98 = arith.constant 0 : index
    %c0_99 = arith.constant 0 : index
    %421 = vector.load %arg12[%c0_98, %c0_99] : memref<16x5xf32, #tpu.memory_space<vmem>>, vector<16x5xf32>
    %cst_100 = arith.constant dense<0.000000e+00> : vector<8x5xf32>
    %422 = tpu.matmul %418, %421, %cst_100 {dimension_numbers = #tpu.dot_dimension_numbers<[1], [0], [0], [1], [0, 0, 1, 1], [], []>} : vector<8x16xf32>, vector<16x5xf32>, vector<8x5xf32> -> vector<8x5xf32>
    %423 = arith.addf %420, %422 : vector<8x5xf32>
    %c0_101 = arith.constant 0 : index
    %c0_102 = arith.constant 0 : index
    %424 = vector.load %arg15[%c0_101, %c0_102] : memref<1x5xf32, #tpu.memory_space<vmem>>, vector<1x5xf32>
    %425 = vector.broadcast %424 : vector<1x5xf32> to vector<8x5xf32>
    %426 = arith.addf %423, %425 : vector<8x5xf32>
    %c0_103 = arith.constant 0 : index
    %c0_104 = arith.constant 0 : index
    %427 = vector.load %arg19[%c0_103, %c0_104] : memref<8x5xf32, #tpu.memory_space<vmem>>, vector<8x5xf32>
    tpu.vector_store %arg19[%c0_103, %c0_104], %426 {strides = array<i32>} : memref<8x5xf32, #tpu.memory_space<vmem>>, vector<8x5xf32>,
    %c0_105 = arith.constant 0 : index
    %c0_106 = arith.constant 0 : index
    %428 = vector.load %arg13[%c0_105, %c0_106] : memref<5x16xf32, #tpu.memory_space<vmem>>, vector<5x16xf32>
    "tpu.trace_start"() <{level = 10 : i32, message = "th,sh->ts"}> : () -> ()
    %cst_107 = arith.constant dense<0.000000e+00> : vector<5x8xf32>
    %429 = tpu.matmul %428, %413, %cst_107 {dimension_numbers = #tpu.dot_dimension_numbers<[1], [1], [0], [0], [0, 0, 1, 0], [], []>} : vector<5x16xf32>, vector<8x16xf32>, vector<5x8xf32> -> vector<5x8xf32>
    "tpu.trace_stop"() : () -> ()
    %c0_108 = arith.constant 0 : index
    %c0_109 = arith.constant 0 : index
    %430 = vector.load %arg14[%c0_108, %c0_109] : memref<5x16xf32, #tpu.memory_space<vmem>>, vector<5x16xf32>
    "tpu.trace_start"() <{level = 10 : i32, message = "th,sh->ts"}> : () -> ()
    %cst_110 = arith.constant dense<0.000000e+00> : vector<5x8xf32>
    %431 = tpu.matmul %430, %418, %cst_110 {dimension_numbers = #tpu.dot_dimension_numbers<[1], [1], [0], [0], [0, 0, 1, 0], [], []>} : vector<5x16xf32>, vector<8x16xf32>, vector<5x8xf32> -> vector<5x8xf32>
    "tpu.trace_stop"() : () -> ()
    %432 = arith.addf %429, %431 : vector<5x8xf32>
    %c0_111 = arith.constant 0 : index
    %c0_112 = arith.constant 0 : index
    %433 = vector.load %arg16[%c0_111, %c0_112] : memref<5x1xf32, #tpu.memory_space<vmem>>, vector<5x1xf32>
    %434 = vector.broadcast %433 : vector<5x1xf32> to vector<5x8xf32>
    %435 = arith.addf %432, %434 : vector<5x8xf32>
    %c0_113 = arith.constant 0 : index
    %c0_114 = arith.constant 0 : index
    %436 = vector.load %arg26[%c0_113, %c0_114] : memref<5x8xf32, #tpu.memory_space<vmem>>, vector<5x8xf32>
    tpu.vector_store %arg26[%c0_113, %c0_114], %435 {strides = array<i32>} : memref<5x8xf32, #tpu.memory_space<vmem>>, vector<5x8xf32>,
    %c0_115 = arith.constant 0 : index
    %c0_116 = arith.constant 0 : index
    %437 = vector.load %arg17[%c0_115, %c0_116] : memref<5x5xf32, #tpu.memory_space<vmem>>, vector<5x5xf32>
    %c0_117 = arith.constant 0 : index
    %c0_118 = arith.constant 0 : index
    %438 = vector.load %arg18[%c0_117, %c0_118] : memref<5x5xf32, #tpu.memory_space<vmem>>, vector<5x5xf32>
    %439 = tpu.iota {dimensions = array<i32: 0>} : vector<5x5xi32>
    %440 = tpu.iota {dimensions = array<i32: 1>} : vector<5x5xi32>
    %441 = tpu.iota {dimensions = array<i32: 0>} : vector<5x1xi32>
    %442 = tpu.iota {dimensions = array<i32: 0>} : vector<8x5xi32>
    %443 = tpu.iota {dimensions = array<i32: 1>} : vector<5x8xi32>
    %c0_i32_119 = arith.constant 0 : i32
    %444 = vector.broadcast %c0_i32_119 : i32 to vector<8x5xi32>
    %c0_i32_120 = arith.constant 0 : i32
    %445 = vector.broadcast %c0_i32_120 : i32 to vector<5x8xi32>
    %c3_i32_121 = arith.constant 3 : i32
    %446 = vector.broadcast %c3_i32_121 : i32 to vector<5x1xi32>
    %447 = arith.cmpi eq, %441, %446 : vector<5x1xi32>
    %cst_122 = arith.constant 0.000000e+00 : f32
    %cst_123 = arith.constant -1.000000e+04 : f32
    %448 = vector.broadcast %cst_122 : f32 to vector<5x1xf32>
    %449 = vector.broadcast %cst_123 : f32 to vector<5x1xf32>
    %450 = arith.select %447, %448, %449 : vector<5x1xi1>, vector<5x1xf32>
    %451 = vector.broadcast %450 : vector<5x1xf32> to vector<5x5xf32>
    %452 = arith.addf %451, %438 : vector<5x5xf32>
    %cst_124 = arith.constant dense<0xFF800000> : vector<5xf32>
    %453 = vector.multi_reduction <maximumf>, %452, %cst_124 [0] : vector<5x5xf32> to vector<5xf32>
    %454 = vector.shape_cast %453 : vector<5xf32> to vector<1x5xf32>
    %455 = vector.broadcast %454 : vector<1x5xf32> to vector<5x5xf32>
    %456 = arith.cmpf oeq, %452, %455 : vector<5x5xf32>
    %c5_i32_125 = arith.constant 5 : i32
    %457 = vector.broadcast %c5_i32_125 : i32 to vector<5x5xi32>
    %458 = arith.select %456, %439, %457 : vector<5x5xi1>, vector<5x5xi32>
    %cst_126 = arith.constant dense<2147483647> : vector<5xi32>
    %459 = vector.multi_reduction <minsi>, %458, %cst_126 [0] : vector<5x5xi32> to vector<5xi32>
    %460 = vector.shape_cast %459 : vector<5xi32> to vector<1x5xi32>
    %c0_i32_127 = arith.constant 0 : i32
    %461 = vector.broadcast %c0_i32_127 : i32 to vector<8x5xi32>
    %462 = arith.cmpi eq, %442, %461 : vector<8x5xi32>
    %463 = vector.shape_cast %460 : vector<1x5xi32> to vector<1x5xi32>
    %464 = vector.broadcast %463 : vector<1x5xi32> to vector<8x5xi32>
    %465 = arith.select %462, %464, %444 : vector<8x5xi1>, vector<8x5xi32>
    %c0_128 = arith.constant 0 : index
    %c0_129 = arith.constant 0 : index
    %466 = vector.load %arg19[%c0_128, %c0_129] : memref<8x5xf32, #tpu.memory_space<vmem>>, vector<1x5xf32>
    %467 = arith.addf %454, %466 : vector<1x5xf32>
    %468 = vector.broadcast %467 : vector<1x5xf32> to vector<5x5xf32>
    %469 = arith.addf %468, %437 : vector<5x5xf32>
    %cst_130 = arith.constant dense<0xFF800000> : vector<5xf32>
    %470 = vector.multi_reduction <maximumf>, %469, %cst_130 [1] : vector<5x5xf32> to vector<5xf32>
    %471 = vector.shape_cast %470 : vector<5xf32> to vector<5x1xf32>
    %472 = vector.broadcast %471 : vector<5x1xf32> to vector<5x5xf32>
    %473 = arith.cmpf oeq, %469, %472 : vector<5x5xf32>
    %c5_i32_131 = arith.constant 5 : i32
    %474 = vector.broadcast %c5_i32_131 : i32 to vector<5x5xi32>
    %475 = arith.select %473, %440, %474 : vector<5x5xi1>, vector<5x5xi32>
    %cst_132 = arith.constant dense<2147483647> : vector<5xi32>
    %476 = vector.multi_reduction <minsi>, %475, %cst_132 [1] : vector<5x5xi32> to vector<5xi32>
    %477 = vector.shape_cast %476 : vector<5xi32> to vector<5x1xi32>
    %c1_i32_133 = arith.constant 1 : i32
    %478 = vector.broadcast %c1_i32_133 : i32 to vector<5x8xi32>
    %479 = arith.cmpi eq, %443, %478 : vector<5x8xi32>
    %480 = vector.shape_cast %477 : vector<5x1xi32> to vector<5x1xi32>
    %481 = vector.broadcast %480 : vector<5x1xi32> to vector<5x8xi32>
    %482 = arith.select %479, %481, %445 : vector<5x8xi1>, vector<5x8xi32>
    %c0_134 = arith.constant 0 : index
    %c1_135 = arith.constant 1 : index
    %483 = vector.load %arg26[%c0_134, %c1_135] : memref<5x8xf32, #tpu.memory_space<vmem>>, vector<5x1xf32>
    %484 = arith.addf %471, %483 : vector<5x1xf32>
    %485 = vector.broadcast %484 : vector<5x1xf32> to vector<5x5xf32>
    %486 = arith.addf %485, %438 : vector<5x5xf32>
    %cst_136 = arith.constant dense<0xFF800000> : vector<5xf32>
    %487 = vector.multi_reduction <maximumf>, %486, %cst_136 [0] : vector<5x5xf32> to vector<5xf32>
    %488 = vector.shape_cast %487 : vector<5xf32> to vector<1x5xf32>
    %489 = vector.broadcast %488 : vector<1x5xf32> to vector<5x5xf32>
    %490 = arith.cmpf oeq, %486, %489 : vector<5x5xf32>
    %c5_i32_137 = arith.constant 5 : i32
    %491 = vector.broadcast %c5_i32_137 : i32 to vector<5x5xi32>
    %492 = arith.select %490, %439, %491 : vector<5x5xi1>, vector<5x5xi32>
    %cst_138 = arith.constant dense<2147483647> : vector<5xi32>
    %493 = vector.multi_reduction <minsi>, %492, %cst_138 [0] : vector<5x5xi32> to vector<5xi32>
    %494 = vector.shape_cast %493 : vector<5xi32> to vector<1x5xi32>
    %c2_i32_139 = arith.constant 2 : i32
    %495 = vector.broadcast %c2_i32_139 : i32 to vector<8x5xi32>
    %496 = arith.cmpi eq, %442, %495 : vector<8x5xi32>
    %497 = vector.shape_cast %494 : vector<1x5xi32> to vector<1x5xi32>
    %498 = vector.broadcast %497 : vector<1x5xi32> to vector<8x5xi32>
    %499 = arith.select %496, %498, %465 : vector<8x5xi1>, vector<8x5xi32>
    %c2_140 = arith.constant 2 : index
    %c0_141 = arith.constant 0 : index
    %500 = vector.load %arg19[%c2_140, %c0_141] : memref<8x5xf32, #tpu.memory_space<vmem>>, vector<1x5xf32>
    %501 = arith.addf %488, %500 : vector<1x5xf32>
    %502 = vector.broadcast %501 : vector<1x5xf32> to vector<5x5xf32>
    %503 = arith.addf %502, %437 : vector<5x5xf32>
    %cst_142 = arith.constant dense<0xFF800000> : vector<5xf32>
    %504 = vector.multi_reduction <maximumf>, %503, %cst_142 [1] : vector<5x5xf32> to vector<5xf32>
    %505 = vector.shape_cast %504 : vector<5xf32> to vector<5x1xf32>
    %506 = vector.broadcast %505 : vector<5x1xf32> to vector<5x5xf32>
    %507 = arith.cmpf oeq, %503, %506 : vector<5x5xf32>
    %c5_i32_143 = arith.constant 5 : i32
    %508 = vector.broadcast %c5_i32_143 : i32 to vector<5x5xi32>
    %509 = arith.select %507, %440, %508 : vector<5x5xi1>, vector<5x5xi32>
    %cst_144 = arith.constant dense<2147483647> : vector<5xi32>
    %510 = vector.multi_reduction <minsi>, %509, %cst_144 [1] : vector<5x5xi32> to vector<5xi32>
    %511 = vector.shape_cast %510 : vector<5xi32> to vector<5x1xi32>
    %c3_i32_145 = arith.constant 3 : i32
    %512 = vector.broadcast %c3_i32_145 : i32 to vector<5x8xi32>
    %513 = arith.cmpi eq, %443, %512 : vector<5x8xi32>
    %514 = vector.shape_cast %511 : vector<5x1xi32> to vector<5x1xi32>
    %515 = vector.broadcast %514 : vector<5x1xi32> to vector<5x8xi32>
    %516 = arith.select %513, %515, %482 : vector<5x8xi1>, vector<5x8xi32>
    %c0_146 = arith.constant 0 : index
    %c3_147 = arith.constant 3 : index
    %517 = vector.load %arg26[%c0_146, %c3_147] : memref<5x8xf32, #tpu.memory_space<vmem>>, vector<5x1xf32>
    %518 = arith.addf %505, %517 : vector<5x1xf32>
    %519 = vector.broadcast %518 : vector<5x1xf32> to vector<5x5xf32>
    %520 = arith.addf %519, %438 : vector<5x5xf32>
    %cst_148 = arith.constant dense<0xFF800000> : vector<5xf32>
    %521 = vector.multi_reduction <maximumf>, %520, %cst_148 [0] : vector<5x5xf32> to vector<5xf32>
    %522 = vector.shape_cast %521 : vector<5xf32> to vector<1x5xf32>
    %523 = vector.broadcast %522 : vector<1x5xf32> to vector<5x5xf32>
    %524 = arith.cmpf oeq, %520, %523 : vector<5x5xf32>
    %c5_i32_149 = arith.constant 5 : i32
    %525 = vector.broadcast %c5_i32_149 : i32 to vector<5x5xi32>
    %526 = arith.select %524, %439, %525 : vector<5x5xi1>, vector<5x5xi32>
    %cst_150 = arith.constant dense<2147483647> : vector<5xi32>
    %527 = vector.multi_reduction <minsi>, %526, %cst_150 [0] : vector<5x5xi32> to vector<5xi32>
    %528 = vector.shape_cast %527 : vector<5xi32> to vector<1x5xi32>
    %c4_i32_151 = arith.constant 4 : i32
    %529 = vector.broadcast %c4_i32_151 : i32 to vector<8x5xi32>
    %530 = arith.cmpi eq, %442, %529 : vector<8x5xi32>
    %531 = vector.shape_cast %528 : vector<1x5xi32> to vector<1x5xi32>
    %532 = vector.broadcast %531 : vector<1x5xi32> to vector<8x5xi32>
    %533 = arith.select %530, %532, %499 : vector<8x5xi1>, vector<8x5xi32>
    %c4_152 = arith.constant 4 : index
    %c0_153 = arith.constant 0 : index
    %534 = vector.load %arg19[%c4_152, %c0_153] : memref<8x5xf32, #tpu.memory_space<vmem>>, vector<1x5xf32>
    %535 = arith.addf %522, %534 : vector<1x5xf32>
    %536 = vector.broadcast %535 : vector<1x5xf32> to vector<5x5xf32>
    %537 = arith.addf %536, %437 : vector<5x5xf32>
    %cst_154 = arith.constant dense<0xFF800000> : vector<5xf32>
    %538 = vector.multi_reduction <maximumf>, %537, %cst_154 [1] : vector<5x5xf32> to vector<5xf32>
    %539 = vector.shape_cast %538 : vector<5xf32> to vector<5x1xf32>
    %540 = vector.broadcast %539 : vector<5x1xf32> to vector<5x5xf32>
    %541 = arith.cmpf oeq, %537, %540 : vector<5x5xf32>
    %c5_i32_155 = arith.constant 5 : i32
    %542 = vector.broadcast %c5_i32_155 : i32 to vector<5x5xi32>
    %543 = arith.select %541, %440, %542 : vector<5x5xi1>, vector<5x5xi32>
    %cst_156 = arith.constant dense<2147483647> : vector<5xi32>
    %544 = vector.multi_reduction <minsi>, %543, %cst_156 [1] : vector<5x5xi32> to vector<5xi32>
    %545 = vector.shape_cast %544 : vector<5xi32> to vector<5x1xi32>
    %c5_i32_157 = arith.constant 5 : i32
    %546 = vector.broadcast %c5_i32_157 : i32 to vector<5x8xi32>
    %547 = arith.cmpi eq, %443, %546 : vector<5x8xi32>
    %548 = vector.shape_cast %545 : vector<5x1xi32> to vector<5x1xi32>
    %549 = vector.broadcast %548 : vector<5x1xi32> to vector<5x8xi32>
    %550 = arith.select %547, %549, %516 : vector<5x8xi1>, vector<5x8xi32>
    %c0_158 = arith.constant 0 : index
    %c5_159 = arith.constant 5 : index
    %551 = vector.load %arg26[%c0_158, %c5_159] : memref<5x8xf32, #tpu.memory_space<vmem>>, vector<5x1xf32>
    %552 = arith.addf %539, %551 : vector<5x1xf32>
    %553 = vector.broadcast %552 : vector<5x1xf32> to vector<5x5xf32>
    %554 = arith.addf %553, %438 : vector<5x5xf32>
    %cst_160 = arith.constant dense<0xFF800000> : vector<5xf32>
    %555 = vector.multi_reduction <maximumf>, %554, %cst_160 [0] : vector<5x5xf32> to vector<5xf32>
    %556 = vector.shape_cast %555 : vector<5xf32> to vector<1x5xf32>
    %557 = vector.broadcast %556 : vector<1x5xf32> to vector<5x5xf32>
    %558 = arith.cmpf oeq, %554, %557 : vector<5x5xf32>
    %c5_i32_161 = arith.constant 5 : i32
    %559 = vector.broadcast %c5_i32_161 : i32 to vector<5x5xi32>
    %560 = arith.select %558, %439, %559 : vector<5x5xi1>, vector<5x5xi32>
    %cst_162 = arith.constant dense<2147483647> : vector<5xi32>
    %561 = vector.multi_reduction <minsi>, %560, %cst_162 [0] : vector<5x5xi32> to vector<5xi32>
    %562 = vector.shape_cast %561 : vector<5xi32> to vector<1x5xi32>
    %c6_i32_163 = arith.constant 6 : i32
    %563 = vector.broadcast %c6_i32_163 : i32 to vector<8x5xi32>
    %564 = arith.cmpi eq, %442, %563 : vector<8x5xi32>
    %565 = vector.shape_cast %562 : vector<1x5xi32> to vector<1x5xi32>
    %566 = vector.broadcast %565 : vector<1x5xi32> to vector<8x5xi32>
    %567 = arith.select %564, %566, %533 : vector<8x5xi1>, vector<8x5xi32>
    %c6_164 = arith.constant 6 : index
    %c0_165 = arith.constant 0 : index
    %568 = vector.load %arg19[%c6_164, %c0_165] : memref<8x5xf32, #tpu.memory_space<vmem>>, vector<1x5xf32>
    %569 = arith.addf %556, %568 : vector<1x5xf32>
    %570 = vector.broadcast %569 : vector<1x5xf32> to vector<5x5xf32>
    %571 = arith.addf %570, %437 : vector<5x5xf32>
    %cst_166 = arith.constant dense<0xFF800000> : vector<5xf32>
    %572 = vector.multi_reduction <maximumf>, %571, %cst_166 [1] : vector<5x5xf32> to vector<5xf32>
    %573 = vector.shape_cast %572 : vector<5xf32> to vector<5x1xf32>
    %574 = vector.broadcast %573 : vector<5x1xf32> to vector<5x5xf32>
    %575 = arith.cmpf oeq, %571, %574 : vector<5x5xf32>
    %c5_i32_167 = arith.constant 5 : i32
    %576 = vector.broadcast %c5_i32_167 : i32 to vector<5x5xi32>
    %577 = arith.select %575, %440, %576 : vector<5x5xi1>, vector<5x5xi32>
    %cst_168 = arith.constant dense<2147483647> : vector<5xi32>
    %578 = vector.multi_reduction <minsi>, %577, %cst_168 [1] : vector<5x5xi32> to vector<5xi32>
    %579 = vector.shape_cast %578 : vector<5xi32> to vector<5x1xi32>
    %c7_i32_169 = arith.constant 7 : i32
    %580 = vector.broadcast %c7_i32_169 : i32 to vector<5x8xi32>
    %581 = arith.cmpi eq, %443, %580 : vector<5x8xi32>
    %582 = vector.shape_cast %579 : vector<5x1xi32> to vector<5x1xi32>
    %583 = vector.broadcast %582 : vector<5x1xi32> to vector<5x8xi32>
    %584 = arith.select %581, %583, %550 : vector<5x8xi1>, vector<5x8xi32>
    %c0_170 = arith.constant 0 : index
    %c7_171 = arith.constant 7 : index
    %585 = vector.load %arg26[%c0_170, %c7_171] : memref<5x8xf32, #tpu.memory_space<vmem>>, vector<5x1xf32>
    %586 = arith.addf %573, %585 : vector<5x1xf32>
    %c0_172 = arith.constant 0 : index
    %c0_173 = arith.constant 0 : index
    %587 = vector.load %arg20[%c0_172, %c0_173] : memref<8x5xi32, #tpu.memory_space<vmem>>, vector<8x5xi32>
    tpu.vector_store %arg20[%c0_172, %c0_173], %567 {strides = array<i32>} : memref<8x5xi32, #tpu.memory_space<vmem>>, vector<8x5xi32>,
    %c0_174 = arith.constant 0 : index
    %c0_175 = arith.constant 0 : index
    %588 = vector.load %arg21[%c0_174, %c0_175] : memref<5x8xi32, #tpu.memory_space<vmem>>, vector<5x8xi32>
    tpu.vector_store %arg21[%c0_174, %c0_175], %584 {strides = array<i32>} : memref<5x8xi32, #tpu.memory_space<vmem>>, vector<5x8xi32>,
    %589 = vector.extract_strided_slice %438 {offsets = [0, 4], sizes = [5, 1], strides = [1, 1]} : vector<5x5xf32> to vector<5x1xf32>
    %590 = arith.addf %586, %589 : vector<5x1xf32>
    %cst_176 = arith.constant dense<0xFF800000> : vector<1xf32>
    %591 = vector.multi_reduction <maximumf>, %590, %cst_176 [0] : vector<5x1xf32> to vector<1xf32>
    %592 = vector.shape_cast %591 : vector<1xf32> to vector<1x1xf32>
    %593 = vector.broadcast %592 : vector<1x1xf32> to vector<5x1xf32>
    %594 = arith.cmpf oeq, %590, %593 : vector<5x1xf32>
    %c5_i32_177 = arith.constant 5 : i32
    %595 = vector.broadcast %c5_i32_177 : i32 to vector<5x1xi32>
    %596 = arith.select %594, %441, %595 : vector<5x1xi1>, vector<5x1xi32>
    %cst_178 = arith.constant dense<2147483647> : vector<1xi32>
    %597 = vector.multi_reduction <minsi>, %596, %cst_178 [0] : vector<5x1xi32> to vector<1xi32>
    %598 = vector.shape_cast %597 : vector<1xi32> to vector<1x1xi32>
    %c0_179 = arith.constant 0 : index
    %c0_180 = arith.constant 0 : index
    %599 = vector.load %arg22[%c0_179, %c0_180] : memref<1x1xf32, #tpu.memory_space<vmem>>, vector<1x1xf32>
    tpu.vector_store %arg22[%c0_179, %c0_180], %592 {strides = array<i32>} : memref<1x1xf32, #tpu.memory_space<vmem>>, vector<1x1xf32>,
    %c0_181 = arith.constant 0 : index
    %c0_182 = arith.constant 0 : index
    %600 = vector.load %arg23[%c0_181, %c0_182] : memref<1x1xi32, #tpu.memory_space<vmem>>, vector<1x1xi32>
    tpu.vector_store %arg23[%c0_181, %c0_182], %598 {strides = array<i32>} : memref<1x1xi32, #tpu.memory_space<vmem>>, vector<1x1xi32>,
    return
  }
}

</mosaic_0001>

<llo_original>
// kernel: tpu_custom_call.1
$region0: #{tpu_custom_call.1}
  #allocation0 [shape = 'u32[]', space=smem, size = 0x4, offset = 0x4, fixed_abs, tag = 'smem constant byte address 0x4 - core index']
  #allocation1 [shape = 'u32[144,128]{1,0:T(1,128)}', space=vmem, size = 0x12000, scoped, tag = 'internal scratch']
  #allocation2 [shape = 'f32[8,64]{1,0:T(8,128)}', space=vmem, size = 0x1000, scoped, tag = 'scratch operand']
  #allocation3 [shape = 'f32[8,64]{1,0:T(8,128)}', space=vmem, size = 0x1000, scoped, tag = 'scratch operand']
  #allocation4 [shape = 'f32[5,8]{1,0:T(8,128)}', space=vmem, size = 0x1000, scoped, tag = 'scratch operand']
  %s0 = inlined_call_operand.hbm [shape: f32[8,32], index: 0, kind: input, shape index: {}]
  %s1 = inlined_call_operand.vmem [shape: f32[32,64], index: 1, kind: input, shape index: {}]
  %s2 = inlined_call_operand.vmem [shape: f32[32,64], index: 2, kind: input, shape index: {}]
  %s3 = inlined_call_operand.hbm [shape: f32[16,64], index: 3, kind: input, shape index: {}]
  %s4 = inlined_call_operand.hbm [shape: f32[16,64], index: 4, kind: input, shape index: {}]
  %s5 = inlined_call_operand.vmem [shape: f32[1,64], index: 5, kind: input, shape index: {}]
  %s6 = inlined_call_operand.hbm [shape: f32[1,64], index: 6, kind: input, shape index: {}]
  %s7 = inlined_call_operand.hbm [shape: f32[1,16], index: 7, kind: input, shape index: {}]
  %s8 = inlined_call_operand.hbm [shape: f32[1,16], index: 8, kind: input, shape index: {}]
  %s9 = inlined_call_operand.hbm [shape: f32[1,16], index: 9, kind: input, shape index: {}]
  %s10 = inlined_call_operand.hbm [shape: f32[1,16], index: 10, kind: input, shape index: {}]
  %s11 = inlined_call_operand.vmem [shape: f32[16,5], index: 11, kind: input, shape index: {}]
  %s12 = inlined_call_operand.vmem [shape: f32[16,5], index: 12, kind: input, shape index: {}]
  %s13 = inlined_call_operand.vmem [shape: f32[5,16], index: 13, kind: input, shape index: {}]
  %s14 = inlined_call_operand.vmem [shape: f32[5,16], index: 14, kind: input, shape index: {}]
  %s15 = inlined_call_operand.hbm [shape: f32[1,5], index: 15, kind: input, shape index: {}]
  %s16 = inlined_call_operand.vmem [shape: f32[5,1], index: 16, kind: input, shape index: {}]
  %s17 = inlined_call_operand.vmem [shape: f32[5,5], index: 17, kind: input, shape index: {}]
  %s18 = inlined_call_operand.vmem [shape: f32[5,5], index: 18, kind: input, shape index: {}]
  %s19 = inlined_call_operand.hbm [shape: f32[8,5], index: 19, kind: output, shape index: {0}]
  %s20 = inlined_call_operand.hbm [shape: s32[8,5], index: 20, kind: output, shape index: {1}]
  %s21 = inlined_call_operand.hbm [shape: s32[5,8], index: 21, kind: output, shape index: {2}]
  %s22 = inlined_call_operand.hbm [shape: f32[1,1], index: 22, kind: output, shape index: {3}]
  %s23 = inlined_call_operand.hbm [shape: s32[1,1], index: 23, kind: output, shape index: {4}]
  %24 = xla_tuple %s19, %s20, %s21, %s22, %s23
  %s25 = sld [smem:[#allocation0]]
  $region154: #{tpu_custom_call.1} parent=0
    _
  %s27 = ssub.s32 1, %s25
  %s28 = scalar_select 0, %s27, %s25
  $region1: #{tpu_custom_call.1} parent=0
    #allocation5 [shape = 'u8[4096]{0}', space=vmem, size = 0x1000, scoped, tag = 'input window, operand 0, single buffered']
    #allocation6 [shape = 's32[1]{0}', space=sflag, size = 0x4, scoped, tag = 'scoped memory for tpu_custom_call.1']
    #allocation7 [shape = 's32[1]{0}', space=sflag, size = 0x4, scoped, tag = 'scoped memory for tpu_custom_call.1']
    #allocation8 [shape = 'u8[8192]{0}', space=vmem, size = 0x2000, scoped, tag = 'input window, operand 3, single buffered']
    #allocation9 [shape = 's32[1]{0}', space=sflag, size = 0x4, scoped, tag = 'scoped memory for tpu_custom_call.1']
    #allocation10 [shape = 'u8[8192]{0}', space=vmem, size = 0x2000, scoped, tag = 'input window, operand 4, single buffered']
    #allocation11 [shape = 'u8[512]{0}', space=vmem, size = 0x400, scoped, tag = 'input window, operand 6, single buffered']
    #allocation12 [shape = 's32[1]{0}', space=sflag, size = 0x4, scoped, tag = 'scoped memory for tpu_custom_call.1']
    #allocation13 [shape = 'u8[512]{0}', space=vmem, size = 0x400, scoped, tag = 'input window, operand 7, single buffered']
    #allocation14 [shape = 'u8[512]{0}', space=vmem, size = 0x400, scoped, tag = 'input window, operand 8, single buffered']
    #allocation15 [shape = 's32[1]{0}', space=sflag, size = 0x4, scoped, tag = 'scoped memory for tpu_custom_call.1']
    #allocation16 [shape = 'u8[512]{0}', space=vmem, size = 0x400, scoped, tag = 'input window, operand 9, single buffered']
    #allocation17 [shape = 'u8[512]{0}', space=vmem, size = 0x400, scoped, tag = 'input window, operand 10, single buffered']
    #allocation18 [shape = 's32[1]{0}', space=sflag, size = 0x4, scoped, tag = 'scoped memory for tpu_custom_call.1']
    #allocation19 [shape = 'u8[512]{0}', space=vmem, size = 0x400, scoped, tag = 'input window, operand 15, single buffered']
    #allocation20 [shape = 'u8[4096]{0}', space=vmem, size = 0x1000, scoped, tag = 'output window, operand 0, single buffered']
    #allocation21 [shape = 'u8[4096]{0}', space=vmem, size = 0x1000, scoped, tag = 'output window, operand 1, single buffered']
    #allocation22 [shape = 's32[1]{0}', space=sflag, size = 0x4, scoped, tag = 'scoped memory for tpu_custom_call.1']
    #allocation23 [shape = 'u8[4096]{0}', space=vmem, size = 0x1000, scoped, tag = 'output window, operand 2, single buffered']
    #allocation24 [shape = 'u8[512]{0}', space=vmem, size = 0x400, scoped, tag = 'output window, operand 3, single buffered']
    #allocation25 [shape = 's32[1]{0}', space=sflag, size = 0x4, scoped, tag = 'scoped memory for tpu_custom_call.1']
    #allocation26 [shape = 'u8[512]{0}', space=vmem, size = 0x400, scoped, tag = 'output window, operand 4, single buffered']
    %29 = vsyncpa [#allocation6], 0
    %30 = vsyncpa [#allocation9], 0
    %31 = vsyncpa [#allocation12], 0
    %32 = vsyncpa [#allocation15], 0
    %33 = vsyncpa [#allocation18], 0
    %34 = vsyncpa [#allocation7], 0
    %35 = vsyncpa [#allocation22], 0
    %36 = vsyncpa [#allocation25], 0
    // Predicated region
    $region2: #{tpu_custom_call.1} parent=1 // pred_check
      _
    $region3: #{tpu_custom_call.1} parent=1 // pred_check_branch
      %38 = sbr.rel (0) target = $region5
    $region4: #{tpu_custom_call.1} parent=1 // pred_region
      %s40 = ssub.s32 128, 128
      %41 = vsyncadd [#allocation6], %s40
      %s43 = sshll.u32 [#allocation5], 4
      %s44 = int_to_ptr.vmem [resolvable:$true] %s43
      %46 = dma.hbm_to_vmem [thread:$0]  %s0, 128, %s44, [#allocation6]
    $region5: #{tpu_custom_call.1} parent=1 // pred_fallthru
      _
    // Predicated region
    $region6: #{tpu_custom_call.1} parent=1 // pred_check
      _
    $region7: #{tpu_custom_call.1} parent=1 // pred_check_branch
      %48 = sbr.rel (0) target = $region9
    $region8: #{tpu_custom_call.1} parent=1 // pred_region
      _
    $region9: #{tpu_custom_call.1} parent=1 // pred_fallthru
      _
    // Predicated region
    $region10: #{tpu_custom_call.1} parent=1 // pred_check
      _
    $region11: #{tpu_custom_call.1} parent=1 // pred_check_branch
      %50 = sbr.rel (0) target = $region13
    $region12: #{tpu_custom_call.1} parent=1 // pred_region
      _
    $region13: #{tpu_custom_call.1} parent=1 // pred_fallthru
      _
    // Predicated region
    $region14: #{tpu_custom_call.1} parent=1 // pred_check
      _
    $region15: #{tpu_custom_call.1} parent=1 // pred_check_branch
      %52 = sbr.rel (0) target = $region17
    $region16: #{tpu_custom_call.1} parent=1 // pred_region
      %s54 = ssub.s32 256, 256
      %55 = vsyncadd [#allocation9], %s54
      %s56 = sshll.u32 [#allocation8], 4
      %s57 = int_to_ptr.vmem [resolvable:$true] %s56
      %62 = dma.hbm_to_vmem [thread:$0]  %s3, 256, %s57, [#allocation9], 128, 128, 8
    $region17: #{tpu_custom_call.1} parent=1 // pred_fallthru
      _
    // Predicated region
    $region18: #{tpu_custom_call.1} parent=1 // pred_check
      _
    $region19: #{tpu_custom_call.1} parent=1 // pred_check_branch
      %64 = sbr.rel (0) target = $region21
    $region20: #{tpu_custom_call.1} parent=1 // pred_region
      %s66 = ssub.s32 256, 256
      %67 = vsyncadd [#allocation9], %s66
      %s68 = sshll.u32 [#allocation10], 4
      %s69 = int_to_ptr.vmem [resolvable:$true] %s68
      %74 = dma.hbm_to_vmem [thread:$0]  %s4, 256, %s69, [#allocation9], 128, 128, 8
    $region21: #{tpu_custom_call.1} parent=1 // pred_fallthru
      _
    // Predicated region
    $region22: #{tpu_custom_call.1} parent=1 // pred_check
      _
    $region23: #{tpu_custom_call.1} parent=1 // pred_check_branch
      %76 = sbr.rel (0) target = $region25
    $region24: #{tpu_custom_call.1} parent=1 // pred_region
      _
    $region25: #{tpu_custom_call.1} parent=1 // pred_fallthru
      _
    // Predicated region
    $region26: #{tpu_custom_call.1} parent=1 // pred_check
      _
    $region27: #{tpu_custom_call.1} parent=1 // pred_check_branch
      %78 = sbr.rel (0) target = $region29
    $region28: #{tpu_custom_call.1} parent=1 // pred_region
      %s80 = ssub.s32 16, 16
      %81 = vsyncadd [#allocation12], %s80
      %s83 = sshll.u32 [#allocation11], 4
      %s84 = int_to_ptr.vmem [resolvable:$true] %s83
      %86 = dma.hbm_to_vmem [thread:$0]  %s6, 16, %s84, [#allocation12]
    $region29: #{tpu_custom_call.1} parent=1 // pred_fallthru
      _
    // Predicated region
    $region30: #{tpu_custom_call.1} parent=1 // pred_check
      _
    $region31: #{tpu_custom_call.1} parent=1 // pred_check_branch
      %88 = sbr.rel (0) target = $region33
    $region32: #{tpu_custom_call.1} parent=1 // pred_region
      %s90 = ssub.s32 16, 16
      %91 = vsyncadd [#allocation12], %s90
      %s93 = sshll.u32 [#allocation13], 4
      %s94 = int_to_ptr.vmem [resolvable:$true] %s93
      %96 = dma.hbm_to_vmem [thread:$0]  %s7, 16, %s94, [#allocation12]
    $region33: #{tpu_custom_call.1} parent=1 // pred_fallthru
      _
    // Predicated region
    $region34: #{tpu_custom_call.1} parent=1 // pred_check
      _
    $region35: #{tpu_custom_call.1} parent=1 // pred_check_branch
      %98 = sbr.rel (0) target = $region37
    $region36: #{tpu_custom_call.1} parent=1 // pred_region
      %s100 = ssub.s32 16, 16
      %101 = vsyncadd [#allocation15], %s100
      %s103 = sshll.u32 [#allocation14], 4
      %s104 = int_to_ptr.vmem [resolvable:$true] %s103
      %106 = dma.hbm_to_vmem [thread:$0]  %s8, 16, %s104, [#allocation15]
    $region37: #{tpu_custom_call.1} parent=1 // pred_fallthru
      _
    // Predicated region
    $region38: #{tpu_custom_call.1} parent=1 // pred_check
      _
    $region39: #{tpu_custom_call.1} parent=1 // pred_check_branch
      %108 = sbr.rel (0) target = $region41
    $region40: #{tpu_custom_call.1} parent=1 // pred_region
      %s110 = ssub.s32 16, 16
      %111 = vsyncadd [#allocation15], %s110
      %s113 = sshll.u32 [#allocation16], 4
      %s114 = int_to_ptr.vmem [resolvable:$true] %s113
      %116 = dma.hbm_to_vmem [thread:$0]  %s9, 16, %s114, [#allocation15]
    $region41: #{tpu_custom_call.1} parent=1 // pred_fallthru
      _
    // Predicated region
    $region42: #{tpu_custom_call.1} parent=1 // pred_check
      _
    $region43: #{tpu_custom_call.1} parent=1 // pred_check_branch
      %118 = sbr.rel (0) target = $region45
    $region44: #{tpu_custom_call.1} parent=1 // pred_region
      %s120 = ssub.s32 16, 16
      %121 = vsyncadd [#allocation18], %s120
      %s123 = sshll.u32 [#allocation17], 4
      %s124 = int_to_ptr.vmem [resolvable:$true] %s123
      %126 = dma.hbm_to_vmem [thread:$0]  %s10, 16, %s124, [#allocation18]
    $region45: #{tpu_custom_call.1} parent=1 // pred_fallthru
      _
    // Predicated region
    $region46: #{tpu_custom_call.1} parent=1 // pred_check
      _
    $region47: #{tpu_custom_call.1} parent=1 // pred_check_branch
      %128 = sbr.rel (0) target = $region49
    $region48: #{tpu_custom_call.1} parent=1 // pred_region
      _
    $region49: #{tpu_custom_call.1} parent=1 // pred_fallthru
      _
    // Predicated region
    $region50: #{tpu_custom_call.1} parent=1 // pred_check
      _
    $region51: #{tpu_custom_call.1} parent=1 // pred_check_branch
      %130 = sbr.rel (0) target = $region53
    $region52: #{tpu_custom_call.1} parent=1 // pred_region
      _
    $region53: #{tpu_custom_call.1} parent=1 // pred_fallthru
      _
    // Predicated region
    $region54: #{tpu_custom_call.1} parent=1 // pred_check
      _
    $region55: #{tpu_custom_call.1} parent=1 // pred_check_branch
      %132 = sbr.rel (0) target = $region57
    $region56: #{tpu_custom_call.1} parent=1 // pred_region
      _
    $region57: #{tpu_custom_call.1} parent=1 // pred_fallthru
      _
    // Predicated region
    $region58: #{tpu_custom_call.1} parent=1 // pred_check
      _
    $region59: #{tpu_custom_call.1} parent=1 // pred_check_branch
      %134 = sbr.rel (0) target = $region61
    $region60: #{tpu_custom_call.1} parent=1 // pred_region
      _
    $region61: #{tpu_custom_call.1} parent=1 // pred_fallthru
      _
    // Predicated region
    $region62: #{tpu_custom_call.1} parent=1 // pred_check
      _
    $region63: #{tpu_custom_call.1} parent=1 // pred_check_branch
      %136 = sbr.rel (0) target = $region65
    $region64: #{tpu_custom_call.1} parent=1 // pred_region
      %s138 = ssub.s32 16, 16
      %139 = vsyncadd [#allocation18], %s138
      %s141 = sshll.u32 [#allocation19], 4
      %s142 = int_to_ptr.vmem [resolvable:$true] %s141
      %144 = dma.hbm_to_vmem [thread:$0]  %s15, 16, %s142, [#allocation18]
    $region65: #{tpu_custom_call.1} parent=1 // pred_fallthru
      _
    // Predicated region
    $region66: #{tpu_custom_call.1} parent=1 // pred_check
      _
    $region67: #{tpu_custom_call.1} parent=1 // pred_check_branch
      %146 = sbr.rel (0) target = $region69
    $region68: #{tpu_custom_call.1} parent=1 // pred_region
      _
    $region69: #{tpu_custom_call.1} parent=1 // pred_fallthru
      _
    // Predicated region
    $region70: #{tpu_custom_call.1} parent=1 // pred_check
      _
    $region71: #{tpu_custom_call.1} parent=1 // pred_check_branch
      %148 = sbr.rel (0) target = $region73
    $region72: #{tpu_custom_call.1} parent=1 // pred_region
      _
    $region73: #{tpu_custom_call.1} parent=1 // pred_fallthru
      _
    // Predicated region
    $region74: #{tpu_custom_call.1} parent=1 // pred_check
      _
    $region75: #{tpu_custom_call.1} parent=1 // pred_check_branch
      %150 = sbr.rel (0) target = $region77
    $region76: #{tpu_custom_call.1} parent=1 // pred_region
      _
    $region77: #{tpu_custom_call.1} parent=1 // pred_fallthru
      _
    // Predicated region
    $region78: #{tpu_custom_call.1} parent=1 // pred_check
      _
    $region79: #{tpu_custom_call.1} parent=1 // pred_check_branch
      %152 = sbr.rel (0) target = $region81
    $region80: #{tpu_custom_call.1} parent=1 // pred_region
      %153 = dma.done [#allocation6], 128
    $region81: #{tpu_custom_call.1} parent=1 // pred_fallthru
      _
    // Predicated region
    $region82: #{tpu_custom_call.1} parent=1 // pred_check
      _
    $region83: #{tpu_custom_call.1} parent=1 // pred_check_branch
      %155 = sbr.rel (0) target = $region85
    $region84: #{tpu_custom_call.1} parent=1 // pred_region
      %156 = dma.done [#allocation9], 256
    $region85: #{tpu_custom_call.1} parent=1 // pred_fallthru
      _
    // Predicated region
    $region86: #{tpu_custom_call.1} parent=1 // pred_check
      _
    $region87: #{tpu_custom_call.1} parent=1 // pred_check_branch
      %158 = sbr.rel (0) target = $region89
    $region88: #{tpu_custom_call.1} parent=1 // pred_region
      %159 = dma.done [#allocation9], 256
    $region89: #{tpu_custom_call.1} parent=1 // pred_fallthru
      _
    // Predicated region
    $region90: #{tpu_custom_call.1} parent=1 // pred_check
      _
    $region91: #{tpu_custom_call.1} parent=1 // pred_check_branch
      %161 = sbr.rel (0) target = $region93
    $region92: #{tpu_custom_call.1} parent=1 // pred_region
      %162 = dma.done [#allocation12], 16
    $region93: #{tpu_custom_call.1} parent=1 // pred_fallthru
      _
    // Predicated region
    $region94: #{tpu_custom_call.1} parent=1 // pred_check
      _
    $region95: #{tpu_custom_call.1} parent=1 // pred_check_branch
      %164 = sbr.rel (0) target = $region97
    $region96: #{tpu_custom_call.1} parent=1 // pred_region
      %165 = dma.done [#allocation12], 16
    $region97: #{tpu_custom_call.1} parent=1 // pred_fallthru
      _
    // Predicated region
    $region98: #{tpu_custom_call.1} parent=1 // pred_check
      _
    $region99: #{tpu_custom_call.1} parent=1 // pred_check_branch
      %167 = sbr.rel (0) target = $region101
    $region100: #{tpu_custom_call.1} parent=1 // pred_region
      %168 = dma.done [#allocation15], 16
    $region101: #{tpu_custom_call.1} parent=1 // pred_fallthru
      _
    // Predicated region
    $region102: #{tpu_custom_call.1} parent=1 // pred_check
      _
    $region103: #{tpu_custom_call.1} parent=1 // pred_check_branch
      %170 = sbr.rel (0) target = $region105
    $region104: #{tpu_custom_call.1} parent=1 // pred_region
      %171 = dma.done [#allocation15], 16
    $region105: #{tpu_custom_call.1} parent=1 // pred_fallthru
      _
    // Predicated region
    $region106: #{tpu_custom_call.1} parent=1 // pred_check
      _
    $region107: #{tpu_custom_call.1} parent=1 // pred_check_branch
      %173 = sbr.rel (0) target = $region109
    $region108: #{tpu_custom_call.1} parent=1 // pred_region
      %174 = dma.done [#allocation18], 16
    $region109: #{tpu_custom_call.1} parent=1 // pred_fallthru
      _
    // Predicated region
    $region110: #{tpu_custom_call.1} parent=1 // pred_check
      _
    $region111: #{tpu_custom_call.1} parent=1 // pred_check_branch
      %176 = sbr.rel (0) target = $region113
    $region112: #{tpu_custom_call.1} parent=1 // pred_region
      %177 = dma.done [#allocation18], 16
    $region113: #{tpu_custom_call.1} parent=1 // pred_fallthru
      _
    %v178 = vld [vmem:[#allocation5] sm:$0xff]
    %v179 = vld [vmem:[%s1] sm:$0xff]
    %v180 = vld [vmem:[%s1 + $0x8] sm:$0xff]
    %v181 = vld [vmem:[%s1 + $0x10] sm:$0xff]
    %v182 = vld [vmem:[%s1 + $0x18] sm:$0xff]
    %vm183 = vcmask 261120
    %v185 = vsel %vm183, %v178, 0
    %187 = vmatprep.subr.mxu0 0.0
    %188 = vmatpush1.msra.mxu0 %v179
    %189 = vmatprep.subr.mxu0 0.0
    %190 = vmatpush1.msra.mxu0 %v180
    %191 = vmatprep.subr.mxu0 0.0
    %192 = vmatpush1.msra.mxu0 %v181
    %193 = vmatprep.subr.mxu0 0.0
    %194 = vmatpush1.msra.mxu0 %v182
    %195 = vmatprep.subr.mxu0 0.0
    %196 = vmatpush1.msra.mxu0 0.0
    %197 = vmatprep.subr.mxu0 0.0
    %198 = vmatpush1.msra.mxu0 0.0
    %199 = vmatprep.subr.mxu0 0.0
    %200 = vmatpush1.msra.mxu0 0.0
    %201 = vmatprep.subr.mxu0 0.0
    %202 = vmatpush1.msra.mxu0 0.0
    %203 = vmatprep.subr.mxu0 0.0
    %204 = vmatpush1.msra.mxu0 0.0
    %205 = vmatprep.subr.mxu0 0.0
    %206 = vmatpush1.msra.mxu0 0.0
    %207 = vmatprep.subr.mxu0 0.0
    %208 = vmatpush1.msra.mxu0 0.0
    %209 = vmatprep.subr.mxu0 0.0
    %210 = vmatpush1.msra.mxu0 0.0
    %211 = vmatprep.subr.mxu0 0.0
    %212 = vmatpush1.msra.mxu0 0.0
    %213 = vmatprep.subr.mxu0 0.0
    %214 = vmatpush1.msra.mxu0 0.0
    %215 = vmatprep.subr.mxu0 0.0
    %216 = vmatpush1.msra.mxu0 0.0
    %217 = vmatprep.subr.mxu0 0.0
    %218 = vmatpush1.msra.mxu0 0.0
    %219 = vmatprep.subr.mxu0 0.0
    %220 = vmatpush1.msra.mxu0 0.0
    %221 = vmatprep.subr.mxu0 0.0
    %222 = vmatpush1.msra.mxu0 0.0
    %223 = vmatprep.subr.mxu0 0.0
    %224 = vmatpush1.msra.mxu0 0.0
    %225 = vmatprep.subr.mxu0 0.0
    %226 = vmatpush1.msra.mxu0 0.0
    %227 = vmatprep.subr.mxu0 0.0
    %228 = vmatpush1.msra.mxu0 0.0
    %229 = vmatprep.subr.mxu0 0.0
    %230 = vmatpush1.msra.mxu0 0.0
    %231 = vmatprep.subr.mxu0 0.0
    %232 = vmatpush1.msra.mxu0 0.0
    %233 = vmatprep.subr.mxu0 0.0
    %234 = vmatpush1.msra.mxu0 0.0
    %235 = vmatprep.subr.mxu0 0.0
    %236 = vmatpush1.msra.mxu0 0.0
    %237 = vmatprep.subr.mxu0 0.0
    %238 = vmatpush1.msra.mxu0 0.0
    %239 = vmatprep.subr.mxu0 0.0
    %240 = vmatpush1.msra.mxu0 0.0
    %241 = vmatprep.subr.mxu0 0.0
    %242 = vmatpush1.msra.mxu0 0.0
    %243 = vmatprep.subr.mxu0 0.0
    %244 = vmatpush1.msra.mxu0 0.0
    %245 = vmatprep.subr.mxu0 0.0
    %246 = vmatpush1.msra.mxu0 0.0
    %247 = vmatprep.subr.mxu0 0.0
    %248 = vmatpush1.msra.mxu0 0.0
    %249 = vmatprep.subr.mxu0 0.0
    %250 = vmatpush1.msra.mxu0 0.0
    %251 = vmatprep.mubr.f32.mxu0 0.0
    %252 = vmatmul.mubr.f32.gmra.mrb[0].mxu0 %v185
    %v253 = vpop.f32.mrb[0].mxu0
    %v254 = vadd.f32 0.0, %v253
    %v255 = vpop.f32.mrb[0].mxu0
    %256 = vdwg.mxu0
    %vm257 = vcmask 523264
    %258 = vst.msk [vmem:[#allocation2] sm:$0xff] %vm257, %v254
    %v259 = vld [vmem:[#allocation5] sm:$0xff]
    %v260 = vld [vmem:[%s2] sm:$0xff]
    %v261 = vld [vmem:[%s2 + $0x8] sm:$0xff]
    %v262 = vld [vmem:[%s2 + $0x10] sm:$0xff]
    %v263 = vld [vmem:[%s2 + $0x18] sm:$0xff]
    %v265 = vsel %vm183, %v259, 0
    %267 = vmatprep.subr.mxu0 0.0
    %268 = vmatpush1.msra.mxu0 %v260
    %269 = vmatprep.subr.mxu0 0.0
    %270 = vmatpush1.msra.mxu0 %v261
    %271 = vmatprep.subr.mxu0 0.0
    %272 = vmatpush1.msra.mxu0 %v262
    %273 = vmatprep.subr.mxu0 0.0
    %274 = vmatpush1.msra.mxu0 %v263
    %275 = vmatprep.subr.mxu0 0.0
    %276 = vmatpush1.msra.mxu0 0.0
    %277 = vmatprep.subr.mxu0 0.0
    %278 = vmatpush1.msra.mxu0 0.0
    %279 = vmatprep.subr.mxu0 0.0
    %280 = vmatpush1.msra.mxu0 0.0
    %281 = vmatprep.subr.mxu0 0.0
    %282 = vmatpush1.msra.mxu0 0.0
    %283 = vmatprep.subr.mxu0 0.0
    %284 = vmatpush1.msra.mxu0 0.0
    %285 = vmatprep.subr.mxu0 0.0
    %286 = vmatpush1.msra.mxu0 0.0
    %287 = vmatprep.subr.mxu0 0.0
    %288 = vmatpush1.msra.mxu0 0.0
    %289 = vmatprep.subr.mxu0 0.0
    %290 = vmatpush1.msra.mxu0 0.0
    %291 = vmatprep.subr.mxu0 0.0
    %292 = vmatpush1.msra.mxu0 0.0
    %293 = vmatprep.subr.mxu0 0.0
    %294 = vmatpush1.msra.mxu0 0.0
    %295 = vmatprep.subr.mxu0 0.0
    %296 = vmatpush1.msra.mxu0 0.0
    %297 = vmatprep.subr.mxu0 0.0
    %298 = vmatpush1.msra.mxu0 0.0
    %299 = vmatprep.subr.mxu0 0.0
    %300 = vmatpush1.msra.mxu0 0.0
    %301 = vmatprep.subr.mxu0 0.0
    %302 = vmatpush1.msra.mxu0 0.0
    %303 = vmatprep.subr.mxu0 0.0
    %304 = vmatpush1.msra.mxu0 0.0
    %305 = vmatprep.subr.mxu0 0.0
    %306 = vmatpush1.msra.mxu0 0.0
    %307 = vmatprep.subr.mxu0 0.0
    %308 = vmatpush1.msra.mxu0 0.0
    %309 = vmatprep.subr.mxu0 0.0
    %310 = vmatpush1.msra.mxu0 0.0
    %311 = vmatprep.subr.mxu0 0.0
    %312 = vmatpush1.msra.mxu0 0.0
    %313 = vmatprep.subr.mxu0 0.0
    %314 = vmatpush1.msra.mxu0 0.0
    %315 = vmatprep.subr.mxu0 0.0
    %316 = vmatpush1.msra.mxu0 0.0
    %317 = vmatprep.subr.mxu0 0.0
    %318 = vmatpush1.msra.mxu0 0.0
    %319 = vmatprep.subr.mxu0 0.0
    %320 = vmatpush1.msra.mxu0 0.0
    %321 = vmatprep.subr.mxu0 0.0
    %322 = vmatpush1.msra.mxu0 0.0
    %323 = vmatprep.subr.mxu0 0.0
    %324 = vmatpush1.msra.mxu0 0.0
    %325 = vmatprep.subr.mxu0 0.0
    %326 = vmatpush1.msra.mxu0 0.0
    %327 = vmatprep.subr.mxu0 0.0
    %328 = vmatpush1.msra.mxu0 0.0
    %329 = vmatprep.subr.mxu0 0.0
    %330 = vmatpush1.msra.mxu0 0.0
    %331 = vmatprep.mubr.f32.mxu0 0.0
    %332 = vmatmul.mubr.f32.gmra.mrb[0].mxu0 %v265
    %v333 = vpop.f32.mrb[0].mxu0
    %v334 = vadd.f32 0.0, %v333
    %v335 = vpop.f32.mrb[0].mxu0
    %336 = vdwg.mxu0
    %337 = vst.msk [vmem:[#allocation3] sm:$0xff] %vm257, %v334
    %v338 = vld [vmem:[#allocation8] sm:$0xff]
    %v339 = vld [vmem:[#allocation8 + $0x8] sm:$0xff]
    %v340 = vld [vmem:[#allocation10] sm:$0xff]
    %v341 = vld [vmem:[#allocation10 + $0x8] sm:$0xff]
    %v342 = vld [vmem:[%s5] sm:$0x1]
    %v343 = vld [vmem:[#allocation11] sm:$0x1]
    %v344 = vlaneseq
    %v345 = vshrl.u32 %v344, 7
    %v346 = vld [vmem:[#allocation13] sm:$0x1]
    %v347 = vld [vmem:[#allocation14] sm:$0x1]
    %v348 = vld [vmem:[#allocation16] sm:$0x1]
    %v349 = vld [vmem:[#allocation17] sm:$0x1]
    %v350 = vld [vmem:[#allocation2] sm:$0x1]
    %vm351 = vcmask 130048
    %v353 = vsel %vm351, %v346, 0
    %355 = vmatprep.subr.mxu0 0.0
    %356 = vmatpush1.msra.mxu0 %v338
    %357 = vmatprep.subr.mxu0 0.0
    %358 = vmatpush1.msra.mxu0 %v339
    %359 = vmatprep.subr.mxu0 0.0
    %360 = vmatpush1.msra.mxu0 0.0
    %361 = vmatprep.subr.mxu0 0.0
    %362 = vmatpush1.msra.mxu0 0.0
    %363 = vmatprep.subr.mxu0 0.0
    %364 = vmatpush1.msra.mxu0 0.0
    %365 = vmatprep.subr.mxu0 0.0
    %366 = vmatpush1.msra.mxu0 0.0
    %367 = vmatprep.subr.mxu0 0.0
    %368 = vmatpush1.msra.mxu0 0.0
    %369 = vmatprep.subr.mxu0 0.0
    %370 = vmatpush1.msra.mxu0 0.0
    %371 = vmatprep.subr.mxu0 0.0
    %372 = vmatpush1.msra.mxu0 0.0
    %373 = vmatprep.subr.mxu0 0.0
    %374 = vmatpush1.msra.mxu0 0.0
    %375 = vmatprep.subr.mxu0 0.0
    %376 = vmatpush1.msra.mxu0 0.0
    %377 = vmatprep.subr.mxu0 0.0
    %378 = vmatpush1.msra.mxu0 0.0
    %379 = vmatprep.subr.mxu0 0.0
    %380 = vmatpush1.msra.mxu0 0.0
    %381 = vmatprep.subr.mxu0 0.0
    %382 = vmatpush1.msra.mxu0 0.0
    %383 = vmatprep.subr.mxu0 0.0
    %384 = vmatpush1.msra.mxu0 0.0
    %385 = vmatprep.subr.mxu0 0.0
    %386 = vmatpush1.msra.mxu0 0.0
    %387 = vmatprep.subr.mxu0 0.0
    %388 = vmatpush1.msra.mxu0 0.0
    %389 = vmatprep.subr.mxu0 0.0
    %390 = vmatpush1.msra.mxu0 0.0
    %391 = vmatprep.subr.mxu0 0.0
    %392 = vmatpush1.msra.mxu0 0.0
    %393 = vmatprep.subr.mxu0 0.0
    %394 = vmatpush1.msra.mxu0 0.0
    %395 = vmatprep.subr.mxu0 0.0
    %396 = vmatpush1.msra.mxu0 0.0
    %397 = vmatprep.subr.mxu0 0.0
    %398 = vmatpush1.msra.mxu0 0.0
    %399 = vmatprep.subr.mxu0 0.0
    %400 = vmatpush1.msra.mxu0 0.0
    %401 = vmatprep.subr.mxu0 0.0
    %402 = vmatpush1.msra.mxu0 0.0
    %403 = vmatprep.subr.mxu0 0.0
    %404 = vmatpush1.msra.mxu0 0.0
    %405 = vmatprep.subr.mxu0 0.0
    %406 = vmatpush1.msra.mxu0 0.0
    %407 = vmatprep.subr.mxu0 0.0
    %408 = vmatpush1.msra.mxu0 0.0
    %409 = vmatprep.subr.mxu0 0.0
    %410 = vmatpush1.msra.mxu0 0.0
    %411 = vmatprep.subr.mxu0 0.0
    %412 = vmatpush1.msra.mxu0 0.0
    %413 = vmatprep.subr.mxu0 0.0
    %414 = vmatpush1.msra.mxu0 0.0
    %415 = vmatprep.subr.mxu0 0.0
    %416 = vmatpush1.msra.mxu0 0.0
    %417 = vmatprep.subr.mxu0 0.0
    %418 = vmatpush1.msra.mxu0 0.0
    %419 = vmatprep.mubr.f32.mxu0 0.0
    %420 = vmatmul.mubr.f32.gmra.mrb[0].mxu0 %v353
    %v421 = vpop.f32.mrb[0].mxu0
    %v422 = vadd.f32 0.0, %v421
    %v423 = vpop.f32.mrb[0].mxu0
    %424 = vdwg.mxu0
    %v425 = vadd.f32 %v350, %v422
    %v426 = vadd.f32 %v425, %v342
    %v427 = vxor.u32 %v426, 2147483648
    %v428 = vmul.f32 %v427, 1.442695
    %v429 = vpow.pop %v428
    %v430 = vadd.f32 %v429, 1.0
    %v431 = vrcp.pop %v430
    %v432 = vmul.f32 1.0, %v431
    %v433 = vtanh.pop %v426
    %v435 = vlaneseq
    %v436 = vshrl.u32 %v435, 7
    %v437 = vsub.s32 0, %v436
    %v438 = vrot.slane %v347, %v437
    %439 = vrot.lane.b32.xlu0 %v438, 16
    %v440 = vpop.permute.xlu0 %439
    %v442 = vmul.f32 %v432, %v440
    %444 = vrot.lane.b32.xlu0 %v433, 80
    %v445 = vpop.permute.xlu0 %444
    %v447 = vmul.f32 %v432, %v445
    %449 = vrot.lane.b32.xlu0 %v447, 16
    %v450 = vpop.permute.xlu0 %449
    %v452 = vadd.f32 %v442, %v450
    %v453 = vtanh.pop %v452
    %455 = vrot.lane.b32.xlu0 %v453, 16
    %v456 = vpop.permute.xlu0 %455
    %v458 = vmul.f32 %v432, %v456
    %v459 = vld [vmem:[#allocation3 + $0x7] sm:$0x1]
    %v461 = vsel %vm351, %v348, 0
    %463 = vmatprep.subr.mxu0 0.0
    %464 = vmatpush1.msra.mxu0 %v340
    %465 = vmatprep.subr.mxu0 0.0
    %466 = vmatpush1.msra.mxu0 %v341
    %467 = vmatprep.subr.mxu0 0.0
    %468 = vmatpush1.msra.mxu0 0.0
    %469 = vmatprep.subr.mxu0 0.0
    %470 = vmatpush1.msra.mxu0 0.0
    %471 = vmatprep.subr.mxu0 0.0
    %472 = vmatpush1.msra.mxu0 0.0
    %473 = vmatprep.subr.mxu0 0.0
    %474 = vmatpush1.msra.mxu0 0.0
    %475 = vmatprep.subr.mxu0 0.0
    %476 = vmatpush1.msra.mxu0 0.0
    %477 = vmatprep.subr.mxu0 0.0
    %478 = vmatpush1.msra.mxu0 0.0
    %479 = vmatprep.subr.mxu0 0.0
    %480 = vmatpush1.msra.mxu0 0.0
    %481 = vmatprep.subr.mxu0 0.0
    %482 = vmatpush1.msra.mxu0 0.0
    %483 = vmatprep.subr.mxu0 0.0
    %484 = vmatpush1.msra.mxu0 0.0
    %485 = vmatprep.subr.mxu0 0.0
    %486 = vmatpush1.msra.mxu0 0.0
    %487 = vmatprep.subr.mxu0 0.0
    %488 = vmatpush1.msra.mxu0 0.0
    %489 = vmatprep.subr.mxu0 0.0
    %490 = vmatpush1.msra.mxu0 0.0
    %491 = vmatprep.subr.mxu0 0.0
    %492 = vmatpush1.msra.mxu0 0.0
    %493 = vmatprep.subr.mxu0 0.0
    %494 = vmatpush1.msra.mxu0 0.0
    %495 = vmatprep.subr.mxu0 0.0
    %496 = vmatpush1.msra.mxu0 0.0
    %497 = vmatprep.subr.mxu0 0.0
    %498 = vmatpush1.msra.mxu0 0.0
    %499 = vmatprep.subr.mxu0 0.0
    %500 = vmatpush1.msra.mxu0 0.0
    %501 = vmatprep.subr.mxu0 0.0
    %502 = vmatpush1.msra.mxu0 0.0
    %503 = vmatprep.subr.mxu0 0.0
    %504 = vmatpush1.msra.mxu0 0.0
    %505 = vmatprep.subr.mxu0 0.0
    %506 = vmatpush1.msra.mxu0 0.0
    %507 = vmatprep.subr.mxu0 0.0
    %508 = vmatpush1.msra.mxu0 0.0
    %509 = vmatprep.subr.mxu0 0.0
    %510 = vmatpush1.msra.mxu0 0.0
    %511 = vmatprep.subr.mxu0 0.0
    %512 = vmatpush1.msra.mxu0 0.0
    %513 = vmatprep.subr.mxu0 0.0
    %514 = vmatpush1.msra.mxu0 0.0
    %515 = vmatprep.subr.mxu0 0.0
    %516 = vmatpush1.msra.mxu0 0.0
    %517 = vmatprep.subr.mxu0 0.0
    %518 = vmatpush1.msra.mxu0 0.0
    %519 = vmatprep.subr.mxu0 0.0
    %520 = vmatpush1.msra.mxu0 0.0
    %521 = vmatprep.subr.mxu0 0.0
    %522 = vmatpush1.msra.mxu0 0.0
    %523 = vmatprep.subr.mxu0 0.0
    %524 = vmatpush1.msra.mxu0 0.0
    %525 = vmatprep.subr.mxu0 0.0
    %526 = vmatpush1.msra.mxu0 0.0
    %527 = vmatprep.mubr.f32.mxu0 0.0
    %528 = vmatmul.mubr.f32.gmra.mrb[0].mxu0 %v461
    %v529 = vpop.f32.mrb[0].mxu0
    %v530 = vadd.f32 0.0, %v529
    %v531 = vpop.f32.mrb[0].mxu0
    %532 = vdwg.mxu0
    %v533 = vadd.f32 %v459, %v530
    %v534 = vadd.f32 %v533, %v343
    %v535 = vxor.u32 %v534, 2147483648
    %v536 = vmul.f32 %v535, 1.442695
    %v537 = vpow.pop %v536
    %v538 = vadd.f32 %v537, 1.0
    %v539 = vrcp.pop %v538
    %v540 = vmul.f32 1.0, %v539
    %v541 = vtanh.pop %v534
    %v543 = vlaneseq
    %v544 = vshrl.u32 %v543, 7
    %v545 = vsub.s32 0, %v544
    %v546 = vrot.slane %v349, %v545
    %547 = vrot.lane.b32.xlu0 %v546, 16
    %v548 = vpop.permute.xlu0 %547
    %v550 = vmul.f32 %v540, %v548
    %552 = vrot.lane.b32.xlu0 %v541, 80
    %v553 = vpop.permute.xlu0 %552
    %v555 = vmul.f32 %v540, %v553
    %557 = vrot.lane.b32.xlu0 %v555, 16
    %v558 = vpop.permute.xlu0 %557
    %v560 = vadd.f32 %v550, %v558
    %v561 = vtanh.pop %v560
    %563 = vrot.lane.b32.xlu0 %v561, 16
    %v564 = vpop.permute.xlu0 %563
    %v566 = vmul.f32 %v540, %v564
    %vm567 = vcmp.eq.s32.totalorder %v345, 0
    %v568 = vlaneseq
    %v569 = vshrl.u32 %v568, 7
    %v570 = vsub.s32 0, %v569
    %v571 = vrot.slane %v458, %v570
    %v572 = vsel %vm567, %v571, 0.0
    %vm573 = vcmp.eq.s32.totalorder %v345, 7
    %v574 = vlaneseq
    %v575 = vshrl.u32 %v574, 7
    %v576 = vsub.s32 0, %v575
    %v577 = vrot.slane %v566, %v576
    %v578 = vsel %vm573, %v577, 0.0
    %v579 = vld [vmem:[#allocation2 + $0x1] sm:$0x1]
    %581 = vrot.lane.b32.xlu0 %v458, 96
    %v582 = vpop.permute.xlu0 %581
    %v583 = vsel %vm351, %v582, 0
    %585 = vmatprep.subr.mxu0 0.0
    %586 = vmatpush1.msra.mxu0 %v338
    %587 = vmatprep.subr.mxu0 0.0
    %588 = vmatpush1.msra.mxu0 %v339
    %589 = vmatprep.subr.mxu0 0.0
    %590 = vmatpush1.msra.mxu0 0.0
    %591 = vmatprep.subr.mxu0 0.0
    %592 = vmatpush1.msra.mxu0 0.0
    %593 = vmatprep.subr.mxu0 0.0
    %594 = vmatpush1.msra.mxu0 0.0
    %595 = vmatprep.subr.mxu0 0.0
    %596 = vmatpush1.msra.mxu0 0.0
    %597 = vmatprep.subr.mxu0 0.0
    %598 = vmatpush1.msra.mxu0 0.0
    %599 = vmatprep.subr.mxu0 0.0
    %600 = vmatpush1.msra.mxu0 0.0
    %601 = vmatprep.subr.mxu0 0.0
    %602 = vmatpush1.msra.mxu0 0.0
    %603 = vmatprep.subr.mxu0 0.0
    %604 = vmatpush1.msra.mxu0 0.0
    %605 = vmatprep.subr.mxu0 0.0
    %606 = vmatpush1.msra.mxu0 0.0
    %607 = vmatprep.subr.mxu0 0.0
    %608 = vmatpush1.msra.mxu0 0.0
    %609 = vmatprep.subr.mxu0 0.0
    %610 = vmatpush1.msra.mxu0 0.0
    %611 = vmatprep.subr.mxu0 0.0
    %612 = vmatpush1.msra.mxu0 0.0
    %613 = vmatprep.subr.mxu0 0.0
    %614 = vmatpush1.msra.mxu0 0.0
    %615 = vmatprep.subr.mxu0 0.0
    %616 = vmatpush1.msra.mxu0 0.0
    %617 = vmatprep.subr.mxu0 0.0
    %618 = vmatpush1.msra.mxu0 0.0
    %619 = vmatprep.subr.mxu0 0.0
    %620 = vmatpush1.msra.mxu0 0.0
    %621 = vmatprep.subr.mxu0 0.0
    %622 = vmatpush1.msra.mxu0 0.0
    %623 = vmatprep.subr.mxu0 0.0
    %624 = vmatpush1.msra.mxu0 0.0
    %625 = vmatprep.subr.mxu0 0.0
    %626 = vmatpush1.msra.mxu0 0.0
    %627 = vmatprep.subr.mxu0 0.0
    %628 = vmatpush1.msra.mxu0 0.0
    %629 = vmatprep.subr.mxu0 0.0
    %630 = vmatpush1.msra.mxu0 0.0
    %631 = vmatprep.subr.mxu0 0.0
    %632 = vmatpush1.msra.mxu0 0.0
    %633 = vmatprep.subr.mxu0 0.0
    %634 = vmatpush1.msra.mxu0 0.0
    %635 = vmatprep.subr.mxu0 0.0
    %636 = vmatpush1.msra.mxu0 0.0
    %637 = vmatprep.subr.mxu0 0.0
    %638 = vmatpush1.msra.mxu0 0.0
    %639 = vmatprep.subr.mxu0 0.0
    %640 = vmatpush1.msra.mxu0 0.0
    %641 = vmatprep.subr.mxu0 0.0
    %642 = vmatpush1.msra.mxu0 0.0
    %643 = vmatprep.subr.mxu0 0.0
    %644 = vmatpush1.msra.mxu0 0.0
    %645 = vmatprep.subr.mxu0 0.0
    %646 = vmatpush1.msra.mxu0 0.0
    %647 = vmatprep.subr.mxu0 0.0
    %648 = vmatpush1.msra.mxu0 0.0
    %649 = vmatprep.mubr.f32.mxu0 0.0
    %650 = vmatmul.mubr.f32.gmra.mrb[0].mxu0 %v583
    %v651 = vpop.f32.mrb[0].mxu0
    %v652 = vadd.f32 0.0, %v651
    %v653 = vpop.f32.mrb[0].mxu0
    %654 = vdwg.mxu0
    %v655 = vadd.f32 %v579, %v652
    %v656 = vadd.f32 %v655, %v342
    %v657 = vxor.u32 %v656, 2147483648
    %v658 = vmul.f32 %v657, 1.442695
    %v659 = vpow.pop %v658
    %v660 = vadd.f32 %v659, 1.0
    %v661 = vrcp.pop %v660
    %v662 = vmul.f32 1.0, %v661
    %v663 = vtanh.pop %v656
    %v664 = vmul.f32 %v662, %v452
    %666 = vrot.lane.b32.xlu0 %v663, 80
    %v667 = vpop.permute.xlu0 %666
    %v669 = vmul.f32 %v662, %v667
    %671 = vrot.lane.b32.xlu0 %v669, 16
    %v672 = vpop.permute.xlu0 %671
    %v674 = vadd.f32 %v664, %v672
    %v675 = vtanh.pop %v674
    %677 = vrot.lane.b32.xlu0 %v675, 16
    %v678 = vpop.permute.xlu0 %677
    %v680 = vmul.f32 %v662, %v678
    %v681 = vld [vmem:[#allocation3 + $0x6] sm:$0x1]
    %683 = vrot.lane.b32.xlu0 %v566, 96
    %v684 = vpop.permute.xlu0 %683
    %v685 = vsel %vm351, %v684, 0
    %687 = vmatprep.subr.mxu0 0.0
    %688 = vmatpush1.msra.mxu0 %v340
    %689 = vmatprep.subr.mxu0 0.0
    %690 = vmatpush1.msra.mxu0 %v341
    %691 = vmatprep.subr.mxu0 0.0
    %692 = vmatpush1.msra.mxu0 0.0
    %693 = vmatprep.subr.mxu0 0.0
    %694 = vmatpush1.msra.mxu0 0.0
    %695 = vmatprep.subr.mxu0 0.0
    %696 = vmatpush1.msra.mxu0 0.0
    %697 = vmatprep.subr.mxu0 0.0
    %698 = vmatpush1.msra.mxu0 0.0
    %699 = vmatprep.subr.mxu0 0.0
    %700 = vmatpush1.msra.mxu0 0.0
    %701 = vmatprep.subr.mxu0 0.0
    %702 = vmatpush1.msra.mxu0 0.0
    %703 = vmatprep.subr.mxu0 0.0
    %704 = vmatpush1.msra.mxu0 0.0
    %705 = vmatprep.subr.mxu0 0.0
    %706 = vmatpush1.msra.mxu0 0.0
    %707 = vmatprep.subr.mxu0 0.0
    %708 = vmatpush1.msra.mxu0 0.0
    %709 = vmatprep.subr.mxu0 0.0
    %710 = vmatpush1.msra.mxu0 0.0
    %711 = vmatprep.subr.mxu0 0.0
    %712 = vmatpush1.msra.mxu0 0.0
    %713 = vmatprep.subr.mxu0 0.0
    %714 = vmatpush1.msra.mxu0 0.0
    %715 = vmatprep.subr.mxu0 0.0
    %716 = vmatpush1.msra.mxu0 0.0
    %717 = vmatprep.subr.mxu0 0.0
    %718 = vmatpush1.msra.mxu0 0.0
    %719 = vmatprep.subr.mxu0 0.0
    %720 = vmatpush1.msra.mxu0 0.0
    %721 = vmatprep.subr.mxu0 0.0
    %722 = vmatpush1.msra.mxu0 0.0
    %723 = vmatprep.subr.mxu0 0.0
    %724 = vmatpush1.msra.mxu0 0.0
    %725 = vmatprep.subr.mxu0 0.0
    %726 = vmatpush1.msra.mxu0 0.0
    %727 = vmatprep.subr.mxu0 0.0
    %728 = vmatpush1.msra.mxu0 0.0
    %729 = vmatprep.subr.mxu0 0.0
    %730 = vmatpush1.msra.mxu0 0.0
    %731 = vmatprep.subr.mxu0 0.0
    %732 = vmatpush1.msra.mxu0 0.0
    %733 = vmatprep.subr.mxu0 0.0
    %734 = vmatpush1.msra.mxu0 0.0
    %735 = vmatprep.subr.mxu0 0.0
    %736 = vmatpush1.msra.mxu0 0.0
    %737 = vmatprep.subr.mxu0 0.0
    %738 = vmatpush1.msra.mxu0 0.0
    %739 = vmatprep.subr.mxu0 0.0
    %740 = vmatpush1.msra.mxu0 0.0
    %741 = vmatprep.subr.mxu0 0.0
    %742 = vmatpush1.msra.mxu0 0.0
    %743 = vmatprep.subr.mxu0 0.0
    %744 = vmatpush1.msra.mxu0 0.0
    %745 = vmatprep.subr.mxu0 0.0
    %746 = vmatpush1.msra.mxu0 0.0
    %747 = vmatprep.subr.mxu0 0.0
    %748 = vmatpush1.msra.mxu0 0.0
    %749 = vmatprep.subr.mxu0 0.0
    %750 = vmatpush1.msra.mxu0 0.0
    %751 = vmatprep.mubr.f32.mxu0 0.0
    %752 = vmatmul.mubr.f32.gmra.mrb[0].mxu0 %v685
    %v753 = vpop.f32.mrb[0].mxu0
    %v754 = vadd.f32 0.0, %v753
    %v755 = vpop.f32.mrb[0].mxu0
    %756 = vdwg.mxu0
    %v757 = vadd.f32 %v681, %v754
    %v758 = vadd.f32 %v757, %v343
    %v759 = vxor.u32 %v758, 2147483648
    %v760 = vmul.f32 %v759, 1.442695
    %v761 = vpow.pop %v760
    %v762 = vadd.f32 %v761, 1.0
    %v763 = vrcp.pop %v762
    %v764 = vmul.f32 1.0, %v763
    %v765 = vtanh.pop %v758
    %v766 = vmul.f32 %v764, %v560
    %768 = vrot.lane.b32.xlu0 %v765, 80
    %v769 = vpop.permute.xlu0 %768
    %v771 = vmul.f32 %v764, %v769
    %773 = vrot.lane.b32.xlu0 %v771, 16
    %v774 = vpop.permute.xlu0 %773
    %v776 = vadd.f32 %v766, %v774
    %v777 = vtanh.pop %v776
    %779 = vrot.lane.b32.xlu0 %v777, 16
    %v780 = vpop.permute.xlu0 %779
    %v782 = vmul.f32 %v764, %v780
    %vm783 = vcmp.eq.s32.totalorder %v345, 1
    %v784 = vlaneseq
    %v785 = vshrl.u32 %v784, 7
    %v786 = vsub.s32 0, %v785
    %v787 = vrot.slane %v680, %v786
    %v788 = vsel %vm783, %v787, %v572
    %vm789 = vcmp.eq.s32.totalorder %v345, 6
    %v790 = vlaneseq
    %v791 = vshrl.u32 %v790, 7
    %v792 = vsub.s32 0, %v791
    %v793 = vrot.slane %v782, %v792
    %v794 = vsel %vm789, %v793, %v578
    %v795 = vld [vmem:[#allocation2 + $0x2] sm:$0x1]
    %797 = vrot.lane.b32.xlu0 %v680, 96
    %v798 = vpop.permute.xlu0 %797
    %v799 = vsel %vm351, %v798, 0
    %801 = vmatprep.subr.mxu0 0.0
    %802 = vmatpush1.msra.mxu0 %v338
    %803 = vmatprep.subr.mxu0 0.0
    %804 = vmatpush1.msra.mxu0 %v339
    %805 = vmatprep.subr.mxu0 0.0
    %806 = vmatpush1.msra.mxu0 0.0
    %807 = vmatprep.subr.mxu0 0.0
    %808 = vmatpush1.msra.mxu0 0.0
    %809 = vmatprep.subr.mxu0 0.0
    %810 = vmatpush1.msra.mxu0 0.0
    %811 = vmatprep.subr.mxu0 0.0
    %812 = vmatpush1.msra.mxu0 0.0
    %813 = vmatprep.subr.mxu0 0.0
    %814 = vmatpush1.msra.mxu0 0.0
    %815 = vmatprep.subr.mxu0 0.0
    %816 = vmatpush1.msra.mxu0 0.0
    %817 = vmatprep.subr.mxu0 0.0
    %818 = vmatpush1.msra.mxu0 0.0
    %819 = vmatprep.subr.mxu0 0.0
    %820 = vmatpush1.msra.mxu0 0.0
    %821 = vmatprep.subr.mxu0 0.0
    %822 = vmatpush1.msra.mxu0 0.0
    %823 = vmatprep.subr.mxu0 0.0
    %824 = vmatpush1.msra.mxu0 0.0
    %825 = vmatprep.subr.mxu0 0.0
    %826 = vmatpush1.msra.mxu0 0.0
    %827 = vmatprep.subr.mxu0 0.0
    %828 = vmatpush1.msra.mxu0 0.0
    %829 = vmatprep.subr.mxu0 0.0
    %830 = vmatpush1.msra.mxu0 0.0
    %831 = vmatprep.subr.mxu0 0.0
    %832 = vmatpush1.msra.mxu0 0.0
    %833 = vmatprep.subr.mxu0 0.0
    %834 = vmatpush1.msra.mxu0 0.0
    %835 = vmatprep.subr.mxu0 0.0
    %836 = vmatpush1.msra.mxu0 0.0
    %837 = vmatprep.subr.mxu0 0.0
    %838 = vmatpush1.msra.mxu0 0.0
    %839 = vmatprep.subr.mxu0 0.0
    %840 = vmatpush1.msra.mxu0 0.0
    %841 = vmatprep.subr.mxu0 0.0
    %842 = vmatpush1.msra.mxu0 0.0
    %843 = vmatprep.subr.mxu0 0.0
    %844 = vmatpush1.msra.mxu0 0.0
    %845 = vmatprep.subr.mxu0 0.0
    %846 = vmatpush1.msra.mxu0 0.0
    %847 = vmatprep.subr.mxu0 0.0
    %848 = vmatpush1.msra.mxu0 0.0
    %849 = vmatprep.subr.mxu0 0.0
    %850 = vmatpush1.msra.mxu0 0.0
    %851 = vmatprep.subr.mxu0 0.0
    %852 = vmatpush1.msra.mxu0 0.0
    %853 = vmatprep.subr.mxu0 0.0
    %854 = vmatpush1.msra.mxu0 0.0
    %855 = vmatprep.subr.mxu0 0.0
    %856 = vmatpush1.msra.mxu0 0.0
    %857 = vmatprep.subr.mxu0 0.0
    %858 = vmatpush1.msra.mxu0 0.0
    %859 = vmatprep.subr.mxu0 0.0
    %860 = vmatpush1.msra.mxu0 0.0
    %861 = vmatprep.subr.mxu0 0.0
    %862 = vmatpush1.msra.mxu0 0.0
    %863 = vmatprep.subr.mxu0 0.0
    %864 = vmatpush1.msra.mxu0 0.0
    %865 = vmatprep.mubr.f32.mxu0 0.0
    %866 = vmatmul.mubr.f32.gmra.mrb[0].mxu0 %v799
    %v867 = vpop.f32.mrb[0].mxu0
    %v868 = vadd.f32 0.0, %v867
    %v869 = vpop.f32.mrb[0].mxu0
    %870 = vdwg.mxu0
    %v871 = vadd.f32 %v795, %v868
    %v872 = vadd.f32 %v871, %v342
    %v873 = vxor.u32 %v872, 2147483648
    %v874 = vmul.f32 %v873, 1.442695
    %v875 = vpow.pop %v874
    %v876 = vadd.f32 %v875, 1.0
    %v877 = vrcp.pop %v876
    %v878 = vmul.f32 1.0, %v877
    %v879 = vtanh.pop %v872
    %v880 = vmul.f32 %v878, %v674
    %882 = vrot.lane.b32.xlu0 %v879, 80
    %v883 = vpop.permute.xlu0 %882
    %v885 = vmul.f32 %v878, %v883
    %887 = vrot.lane.b32.xlu0 %v885, 16
    %v888 = vpop.permute.xlu0 %887
    %v890 = vadd.f32 %v880, %v888
    %v891 = vtanh.pop %v890
    %893 = vrot.lane.b32.xlu0 %v891, 16
    %v894 = vpop.permute.xlu0 %893
    %v896 = vmul.f32 %v878, %v894
    %v897 = vld [vmem:[#allocation3 + $0x5] sm:$0x1]
    %899 = vrot.lane.b32.xlu0 %v782, 96
    %v900 = vpop.permute.xlu0 %899
    %v901 = vsel %vm351, %v900, 0
    %903 = vmatprep.subr.mxu0 0.0
    %904 = vmatpush1.msra.mxu0 %v340
    %905 = vmatprep.subr.mxu0 0.0
    %906 = vmatpush1.msra.mxu0 %v341
    %907 = vmatprep.subr.mxu0 0.0
    %908 = vmatpush1.msra.mxu0 0.0
    %909 = vmatprep.subr.mxu0 0.0
    %910 = vmatpush1.msra.mxu0 0.0
    %911 = vmatprep.subr.mxu0 0.0
    %912 = vmatpush1.msra.mxu0 0.0
    %913 = vmatprep.subr.mxu0 0.0
    %914 = vmatpush1.msra.mxu0 0.0
    %915 = vmatprep.subr.mxu0 0.0
    %916 = vmatpush1.msra.mxu0 0.0
    %917 = vmatprep.subr.mxu0 0.0
    %918 = vmatpush1.msra.mxu0 0.0
    %919 = vmatprep.subr.mxu0 0.0
    %920 = vmatpush1.msra.mxu0 0.0
    %921 = vmatprep.subr.mxu0 0.0
    %922 = vmatpush1.msra.mxu0 0.0
    %923 = vmatprep.subr.mxu0 0.0
    %924 = vmatpush1.msra.mxu0 0.0
    %925 = vmatprep.subr.mxu0 0.0
    %926 = vmatpush1.msra.mxu0 0.0
    %927 = vmatprep.subr.mxu0 0.0
    %928 = vmatpush1.msra.mxu0 0.0
    %929 = vmatprep.subr.mxu0 0.0
    %930 = vmatpush1.msra.mxu0 0.0
    %931 = vmatprep.subr.mxu0 0.0
    %932 = vmatpush1.msra.mxu0 0.0
    %933 = vmatprep.subr.mxu0 0.0
    %934 = vmatpush1.msra.mxu0 0.0
    %935 = vmatprep.subr.mxu0 0.0
    %936 = vmatpush1.msra.mxu0 0.0
    %937 = vmatprep.subr.mxu0 0.0
    %938 = vmatpush1.msra.mxu0 0.0
    %939 = vmatprep.subr.mxu0 0.0
    %940 = vmatpush1.msra.mxu0 0.0
    %941 = vmatprep.subr.mxu0 0.0
    %942 = vmatpush1.msra.mxu0 0.0
    %943 = vmatprep.subr.mxu0 0.0
    %944 = vmatpush1.msra.mxu0 0.0
    %945 = vmatprep.subr.mxu0 0.0
    %946 = vmatpush1.msra.mxu0 0.0
    %947 = vmatprep.subr.mxu0 0.0
    %948 = vmatpush1.msra.mxu0 0.0
    %949 = vmatprep.subr.mxu0 0.0
    %950 = vmatpush1.msra.mxu0 0.0
    %951 = vmatprep.subr.mxu0 0.0
    %952 = vmatpush1.msra.mxu0 0.0
    %953 = vmatprep.subr.mxu0 0.0
    %954 = vmatpush1.msra.mxu0 0.0
    %955 = vmatprep.subr.mxu0 0.0
    %956 = vmatpush1.msra.mxu0 0.0
    %957 = vmatprep.subr.mxu0 0.0
    %958 = vmatpush1.msra.mxu0 0.0
    %959 = vmatprep.subr.mxu0 0.0
    %960 = vmatpush1.msra.mxu0 0.0
    %961 = vmatprep.subr.mxu0 0.0
    %962 = vmatpush1.msra.mxu0 0.0
    %963 = vmatprep.subr.mxu0 0.0
    %964 = vmatpush1.msra.mxu0 0.0
    %965 = vmatprep.subr.mxu0 0.0
    %966 = vmatpush1.msra.mxu0 0.0
    %967 = vmatprep.mubr.f32.mxu0 0.0
    %968 = vmatmul.mubr.f32.gmra.mrb[0].mxu0 %v901
    %v969 = vpop.f32.mrb[0].mxu0
    %v970 = vadd.f32 0.0, %v969
    %v971 = vpop.f32.mrb[0].mxu0
    %972 = vdwg.mxu0
    %v973 = vadd.f32 %v897, %v970
    %v974 = vadd.f32 %v973, %v343
    %v975 = vxor.u32 %v974, 2147483648
    %v976 = vmul.f32 %v975, 1.442695
    %v977 = vpow.pop %v976
    %v978 = vadd.f32 %v977, 1.0
    %v979 = vrcp.pop %v978
    %v980 = vmul.f32 1.0, %v979
    %v981 = vtanh.pop %v974
    %v982 = vmul.f32 %v980, %v776
    %984 = vrot.lane.b32.xlu0 %v981, 80
    %v985 = vpop.permute.xlu0 %984
    %v987 = vmul.f32 %v980, %v985
    %989 = vrot.lane.b32.xlu0 %v987, 16
    %v990 = vpop.permute.xlu0 %989
    %v992 = vadd.f32 %v982, %v990
    %v993 = vtanh.pop %v992
    %995 = vrot.lane.b32.xlu0 %v993, 16
    %v996 = vpop.permute.xlu0 %995
    %v998 = vmul.f32 %v980, %v996
    %vm999 = vcmp.eq.s32.totalorder %v345, 2
    %v1000 = vlaneseq
    %v1001 = vshrl.u32 %v1000, 7
    %v1002 = vsub.s32 0, %v1001
    %v1003 = vrot.slane %v896, %v1002
    %v1004 = vsel %vm999, %v1003, %v788
    %vm1005 = vcmp.eq.s32.totalorder %v345, 5
    %v1006 = vlaneseq
    %v1007 = vshrl.u32 %v1006, 7
    %v1008 = vsub.s32 0, %v1007
    %v1009 = vrot.slane %v998, %v1008
    %v1010 = vsel %vm1005, %v1009, %v794
    %v1011 = vld [vmem:[#allocation2 + $0x3] sm:$0x1]
    %1013 = vrot.lane.b32.xlu0 %v896, 96
    %v1014 = vpop.permute.xlu0 %1013
    %v1015 = vsel %vm351, %v1014, 0
    %1017 = vmatprep.subr.mxu0 0.0
    %1018 = vmatpush1.msra.mxu0 %v338
    %1019 = vmatprep.subr.mxu0 0.0
    %1020 = vmatpush1.msra.mxu0 %v339
    %1021 = vmatprep.subr.mxu0 0.0
    %1022 = vmatpush1.msra.mxu0 0.0
    %1023 = vmatprep.subr.mxu0 0.0
    %1024 = vmatpush1.msra.mxu0 0.0
    %1025 = vmatprep.subr.mxu0 0.0
    %1026 = vmatpush1.msra.mxu0 0.0
    %1027 = vmatprep.subr.mxu0 0.0
    %1028 = vmatpush1.msra.mxu0 0.0
    %1029 = vmatprep.subr.mxu0 0.0
    %1030 = vmatpush1.msra.mxu0 0.0
    %1031 = vmatprep.subr.mxu0 0.0
    %1032 = vmatpush1.msra.mxu0 0.0
    %1033 = vmatprep.subr.mxu0 0.0
    %1034 = vmatpush1.msra.mxu0 0.0
    %1035 = vmatprep.subr.mxu0 0.0
    %1036 = vmatpush1.msra.mxu0 0.0
    %1037 = vmatprep.subr.mxu0 0.0
    %1038 = vmatpush1.msra.mxu0 0.0
    %1039 = vmatprep.subr.mxu0 0.0
    %1040 = vmatpush1.msra.mxu0 0.0
    %1041 = vmatprep.subr.mxu0 0.0
    %1042 = vmatpush1.msra.mxu0 0.0
    %1043 = vmatprep.subr.mxu0 0.0
    %1044 = vmatpush1.msra.mxu0 0.0
    %1045 = vmatprep.subr.mxu0 0.0
    %1046 = vmatpush1.msra.mxu0 0.0
    %1047 = vmatprep.subr.mxu0 0.0
    %1048 = vmatpush1.msra.mxu0 0.0
    %1049 = vmatprep.subr.mxu0 0.0
    %1050 = vmatpush1.msra.mxu0 0.0
    %1051 = vmatprep.subr.mxu0 0.0
    %1052 = vmatpush1.msra.mxu0 0.0
    %1053 = vmatprep.subr.mxu0 0.0
    %1054 = vmatpush1.msra.mxu0 0.0
    %1055 = vmatprep.subr.mxu0 0.0
    %1056 = vmatpush1.msra.mxu0 0.0
    %1057 = vmatprep.subr.mxu0 0.0
    %1058 = vmatpush1.msra.mxu0 0.0
    %1059 = vmatprep.subr.mxu0 0.0
    %1060 = vmatpush1.msra.mxu0 0.0
    %1061 = vmatprep.subr.mxu0 0.0
    %1062 = vmatpush1.msra.mxu0 0.0
    %1063 = vmatprep.subr.mxu0 0.0
    %1064 = vmatpush1.msra.mxu0 0.0
    %1065 = vmatprep.subr.mxu0 0.0
    %1066 = vmatpush1.msra.mxu0 0.0
    %1067 = vmatprep.subr.mxu0 0.0
    %1068 = vmatpush1.msra.mxu0 0.0
    %1069 = vmatprep.subr.mxu0 0.0
    %1070 = vmatpush1.msra.mxu0 0.0
    %1071 = vmatprep.subr.mxu0 0.0
    %1072 = vmatpush1.msra.mxu0 0.0
    %1073 = vmatprep.subr.mxu0 0.0
    %1074 = vmatpush1.msra.mxu0 0.0
    %1075 = vmatprep.subr.mxu0 0.0
    %1076 = vmatpush1.msra.mxu0 0.0
    %1077 = vmatprep.subr.mxu0 0.0
    %1078 = vmatpush1.msra.mxu0 0.0
    %1079 = vmatprep.subr.mxu0 0.0
    %1080 = vmatpush1.msra.mxu0 0.0
    %1081 = vmatprep.mubr.f32.mxu0 0.0
    %1082 = vmatmul.mubr.f32.gmra.mrb[0].mxu0 %v1015
    %v1083 = vpop.f32.mrb[0].mxu0
    %v1084 = vadd.f32 0.0, %v1083
    %v1085 = vpop.f32.mrb[0].mxu0
    %1086 = vdwg.mxu0
    %v1087 = vadd.f32 %v1011, %v1084
    %v1088 = vadd.f32 %v1087, %v342
    %v1089 = vxor.u32 %v1088, 2147483648
    %v1090 = vmul.f32 %v1089, 1.442695
    %v1091 = vpow.pop %v1090
    %v1092 = vadd.f32 %v1091, 1.0
    %v1093 = vrcp.pop %v1092
    %v1094 = vmul.f32 1.0, %v1093
    %v1095 = vtanh.pop %v1088
    %v1096 = vmul.f32 %v1094, %v890
    %1098 = vrot.lane.b32.xlu0 %v1095, 80
    %v1099 = vpop.permute.xlu0 %1098
    %v1101 = vmul.f32 %v1094, %v1099
    %1103 = vrot.lane.b32.xlu0 %v1101, 16
    %v1104 = vpop.permute.xlu0 %1103
    %v1106 = vadd.f32 %v1096, %v1104
    %v1107 = vtanh.pop %v1106
    %1109 = vrot.lane.b32.xlu0 %v1107, 16
    %v1110 = vpop.permute.xlu0 %1109
    %v1112 = vmul.f32 %v1094, %v1110
    %v1113 = vld [vmem:[#allocation3 + $0x4] sm:$0x1]
    %1115 = vrot.lane.b32.xlu0 %v998, 96
    %v1116 = vpop.permute.xlu0 %1115
    %v1117 = vsel %vm351, %v1116, 0
    %1119 = vmatprep.subr.mxu0 0.0
    %1120 = vmatpush1.msra.mxu0 %v340
    %1121 = vmatprep.subr.mxu0 0.0
    %1122 = vmatpush1.msra.mxu0 %v341
    %1123 = vmatprep.subr.mxu0 0.0
    %1124 = vmatpush1.msra.mxu0 0.0
    %1125 = vmatprep.subr.mxu0 0.0
    %1126 = vmatpush1.msra.mxu0 0.0
    %1127 = vmatprep.subr.mxu0 0.0
    %1128 = vmatpush1.msra.mxu0 0.0
    %1129 = vmatprep.subr.mxu0 0.0
    %1130 = vmatpush1.msra.mxu0 0.0
    %1131 = vmatprep.subr.mxu0 0.0
    %1132 = vmatpush1.msra.mxu0 0.0
    %1133 = vmatprep.subr.mxu0 0.0
    %1134 = vmatpush1.msra.mxu0 0.0
    %1135 = vmatprep.subr.mxu0 0.0
    %1136 = vmatpush1.msra.mxu0 0.0
    %1137 = vmatprep.subr.mxu0 0.0
    %1138 = vmatpush1.msra.mxu0 0.0
    %1139 = vmatprep.subr.mxu0 0.0
    %1140 = vmatpush1.msra.mxu0 0.0
    %1141 = vmatprep.subr.mxu0 0.0
    %1142 = vmatpush1.msra.mxu0 0.0
    %1143 = vmatprep.subr.mxu0 0.0
    %1144 = vmatpush1.msra.mxu0 0.0
    %1145 = vmatprep.subr.mxu0 0.0
    %1146 = vmatpush1.msra.mxu0 0.0
    %1147 = vmatprep.subr.mxu0 0.0
    %1148 = vmatpush1.msra.mxu0 0.0
    %1149 = vmatprep.subr.mxu0 0.0
    %1150 = vmatpush1.msra.mxu0 0.0
    %1151 = vmatprep.subr.mxu0 0.0
    %1152 = vmatpush1.msra.mxu0 0.0
    %1153 = vmatprep.subr.mxu0 0.0
    %1154 = vmatpush1.msra.mxu0 0.0
    %1155 = vmatprep.subr.mxu0 0.0
    %1156 = vmatpush1.msra.mxu0 0.0
    %1157 = vmatprep.subr.mxu0 0.0
    %1158 = vmatpush1.msra.mxu0 0.0
    %1159 = vmatprep.subr.mxu0 0.0
    %1160 = vmatpush1.msra.mxu0 0.0
    %1161 = vmatprep.subr.mxu0 0.0
    %1162 = vmatpush1.msra.mxu0 0.0
    %1163 = vmatprep.subr.mxu0 0.0
    %1164 = vmatpush1.msra.mxu0 0.0
    %1165 = vmatprep.subr.mxu0 0.0
    %1166 = vmatpush1.msra.mxu0 0.0
    %1167 = vmatprep.subr.mxu0 0.0
    %1168 = vmatpush1.msra.mxu0 0.0
    %1169 = vmatprep.subr.mxu0 0.0
    %1170 = vmatpush1.msra.mxu0 0.0
    %1171 = vmatprep.subr.mxu0 0.0
    %1172 = vmatpush1.msra.mxu0 0.0
    %1173 = vmatprep.subr.mxu0 0.0
    %1174 = vmatpush1.msra.mxu0 0.0
    %1175 = vmatprep.subr.mxu0 0.0
    %1176 = vmatpush1.msra.mxu0 0.0
    %1177 = vmatprep.subr.mxu0 0.0
    %1178 = vmatpush1.msra.mxu0 0.0
    %1179 = vmatprep.subr.mxu0 0.0
    %1180 = vmatpush1.msra.mxu0 0.0
    %1181 = vmatprep.subr.mxu0 0.0
    %1182 = vmatpush1.msra.mxu0 0.0
    %1183 = vmatprep.mubr.f32.mxu0 0.0
    %1184 = vmatmul.mubr.f32.gmra.mrb[0].mxu0 %v1117
    %v1185 = vpop.f32.mrb[0].mxu0
    %v1186 = vadd.f32 0.0, %v1185
    %v1187 = vpop.f32.mrb[0].mxu0
    %1188 = vdwg.mxu0
    %v1189 = vadd.f32 %v1113, %v1186
    %v1190 = vadd.f32 %v1189, %v343
    %v1191 = vxor.u32 %v1190, 2147483648
    %v1192 = vmul.f32 %v1191, 1.442695
    %v1193 = vpow.pop %v1192
    %v1194 = vadd.f32 %v1193, 1.0
    %v1195 = vrcp.pop %v1194
    %v1196 = vmul.f32 1.0, %v1195
    %v1197 = vtanh.pop %v1190
    %v1198 = vmul.f32 %v1196, %v992
    %1200 = vrot.lane.b32.xlu0 %v1197, 80
    %v1201 = vpop.permute.xlu0 %1200
    %v1203 = vmul.f32 %v1196, %v1201
    %1205 = vrot.lane.b32.xlu0 %v1203, 16
    %v1206 = vpop.permute.xlu0 %1205
    %v1208 = vadd.f32 %v1198, %v1206
    %v1209 = vtanh.pop %v1208
    %1211 = vrot.lane.b32.xlu0 %v1209, 16
    %v1212 = vpop.permute.xlu0 %1211
    %v1214 = vmul.f32 %v1196, %v1212
    %vm1215 = vcmp.eq.s32.totalorder %v345, 3
    %v1216 = vlaneseq
    %v1217 = vshrl.u32 %v1216, 7
    %v1218 = vsub.s32 0, %v1217
    %v1219 = vrot.slane %v1112, %v1218
    %v1220 = vsel %vm1215, %v1219, %v1004
    %vm1221 = vcmp.eq.s32.totalorder %v345, 4
    %v1222 = vlaneseq
    %v1223 = vshrl.u32 %v1222, 7
    %v1224 = vsub.s32 0, %v1223
    %v1225 = vrot.slane %v1214, %v1224
    %v1226 = vsel %vm1221, %v1225, %v1010
    %v1227 = vld [vmem:[#allocation2 + $0x4] sm:$0x1]
    %1229 = vrot.lane.b32.xlu0 %v1112, 96
    %v1230 = vpop.permute.xlu0 %1229
    %v1231 = vsel %vm351, %v1230, 0
    %1233 = vmatprep.subr.mxu0 0.0
    %1234 = vmatpush1.msra.mxu0 %v338
    %1235 = vmatprep.subr.mxu0 0.0
    %1236 = vmatpush1.msra.mxu0 %v339
    %1237 = vmatprep.subr.mxu0 0.0
    %1238 = vmatpush1.msra.mxu0 0.0
    %1239 = vmatprep.subr.mxu0 0.0
    %1240 = vmatpush1.msra.mxu0 0.0
    %1241 = vmatprep.subr.mxu0 0.0
    %1242 = vmatpush1.msra.mxu0 0.0
    %1243 = vmatprep.subr.mxu0 0.0
    %1244 = vmatpush1.msra.mxu0 0.0
    %1245 = vmatprep.subr.mxu0 0.0
    %1246 = vmatpush1.msra.mxu0 0.0
    %1247 = vmatprep.subr.mxu0 0.0
    %1248 = vmatpush1.msra.mxu0 0.0
    %1249 = vmatprep.subr.mxu0 0.0
    %1250 = vmatpush1.msra.mxu0 0.0
    %1251 = vmatprep.subr.mxu0 0.0
    %1252 = vmatpush1.msra.mxu0 0.0
    %1253 = vmatprep.subr.mxu0 0.0
    %1254 = vmatpush1.msra.mxu0 0.0
    %1255 = vmatprep.subr.mxu0 0.0
    %1256 = vmatpush1.msra.mxu0 0.0
    %1257 = vmatprep.subr.mxu0 0.0
    %1258 = vmatpush1.msra.mxu0 0.0
    %1259 = vmatprep.subr.mxu0 0.0
    %1260 = vmatpush1.msra.mxu0 0.0
    %1261 = vmatprep.subr.mxu0 0.0
    %1262 = vmatpush1.msra.mxu0 0.0
    %1263 = vmatprep.subr.mxu0 0.0
    %1264 = vmatpush1.msra.mxu0 0.0
    %1265 = vmatprep.subr.mxu0 0.0
    %1266 = vmatpush1.msra.mxu0 0.0
    %1267 = vmatprep.subr.mxu0 0.0
    %1268 = vmatpush1.msra.mxu0 0.0
    %1269 = vmatprep.subr.mxu0 0.0
    %1270 = vmatpush1.msra.mxu0 0.0
    %1271 = vmatprep.subr.mxu0 0.0
    %1272 = vmatpush1.msra.mxu0 0.0
    %1273 = vmatprep.subr.mxu0 0.0
    %1274 = vmatpush1.msra.mxu0 0.0
    %1275 = vmatprep.subr.mxu0 0.0
    %1276 = vmatpush1.msra.mxu0 0.0
    %1277 = vmatprep.subr.mxu0 0.0
    %1278 = vmatpush1.msra.mxu0 0.0
    %1279 = vmatprep.subr.mxu0 0.0
    %1280 = vmatpush1.msra.mxu0 0.0
    %1281 = vmatprep.subr.mxu0 0.0
    %1282 = vmatpush1.msra.mxu0 0.0
    %1283 = vmatprep.subr.mxu0 0.0
    %1284 = vmatpush1.msra.mxu0 0.0
    %1285 = vmatprep.subr.mxu0 0.0
    %1286 = vmatpush1.msra.mxu0 0.0
    %1287 = vmatprep.subr.mxu0 0.0
    %1288 = vmatpush1.msra.mxu0 0.0
    %1289 = vmatprep.subr.mxu0 0.0
    %1290 = vmatpush1.msra.mxu0 0.0
    %1291 = vmatprep.subr.mxu0 0.0
    %1292 = vmatpush1.msra.mxu0 0.0
    %1293 = vmatprep.subr.mxu0 0.0
    %1294 = vmatpush1.msra.mxu0 0.0
    %1295 = vmatprep.subr.mxu0 0.0
    %1296 = vmatpush1.msra.mxu0 0.0
    %1297 = vmatprep.mubr.f32.mxu0 0.0
    %1298 = vmatmul.mubr.f32.gmra.mrb[0].mxu0 %v1231
    %v1299 = vpop.f32.mrb[0].mxu0
    %v1300 = vadd.f32 0.0, %v1299
    %v1301 = vpop.f32.mrb[0].mxu0
    %1302 = vdwg.mxu0
    %v1303 = vadd.f32 %v1227, %v1300
    %v1304 = vadd.f32 %v1303, %v342
    %v1305 = vxor.u32 %v1304, 2147483648
    %v1306 = vmul.f32 %v1305, 1.442695
    %v1307 = vpow.pop %v1306
    %v1308 = vadd.f32 %v1307, 1.0
    %v1309 = vrcp.pop %v1308
    %v1310 = vmul.f32 1.0, %v1309
    %v1311 = vtanh.pop %v1304
    %v1312 = vmul.f32 %v1310, %v1106
    %1314 = vrot.lane.b32.xlu0 %v1311, 80
    %v1315 = vpop.permute.xlu0 %1314
    %v1317 = vmul.f32 %v1310, %v1315
    %1319 = vrot.lane.b32.xlu0 %v1317, 16
    %v1320 = vpop.permute.xlu0 %1319
    %v1322 = vadd.f32 %v1312, %v1320
    %v1323 = vtanh.pop %v1322
    %1325 = vrot.lane.b32.xlu0 %v1323, 16
    %v1326 = vpop.permute.xlu0 %1325
    %v1328 = vmul.f32 %v1310, %v1326
    %v1329 = vld [vmem:[#allocation3 + $0x3] sm:$0x1]
    %1331 = vrot.lane.b32.xlu0 %v1214, 96
    %v1332 = vpop.permute.xlu0 %1331
    %v1333 = vsel %vm351, %v1332, 0
    %1335 = vmatprep.subr.mxu0 0.0
    %1336 = vmatpush1.msra.mxu0 %v340
    %1337 = vmatprep.subr.mxu0 0.0
    %1338 = vmatpush1.msra.mxu0 %v341
    %1339 = vmatprep.subr.mxu0 0.0
    %1340 = vmatpush1.msra.mxu0 0.0
    %1341 = vmatprep.subr.mxu0 0.0
    %1342 = vmatpush1.msra.mxu0 0.0
    %1343 = vmatprep.subr.mxu0 0.0
    %1344 = vmatpush1.msra.mxu0 0.0
    %1345 = vmatprep.subr.mxu0 0.0
    %1346 = vmatpush1.msra.mxu0 0.0
    %1347 = vmatprep.subr.mxu0 0.0
    %1348 = vmatpush1.msra.mxu0 0.0
    %1349 = vmatprep.subr.mxu0 0.0
    %1350 = vmatpush1.msra.mxu0 0.0
    %1351 = vmatprep.subr.mxu0 0.0
    %1352 = vmatpush1.msra.mxu0 0.0
    %1353 = vmatprep.subr.mxu0 0.0
    %1354 = vmatpush1.msra.mxu0 0.0
    %1355 = vmatprep.subr.mxu0 0.0
    %1356 = vmatpush1.msra.mxu0 0.0
    %1357 = vmatprep.subr.mxu0 0.0
    %1358 = vmatpush1.msra.mxu0 0.0
    %1359 = vmatprep.subr.mxu0 0.0
    %1360 = vmatpush1.msra.mxu0 0.0
    %1361 = vmatprep.subr.mxu0 0.0
    %1362 = vmatpush1.msra.mxu0 0.0
    %1363 = vmatprep.subr.mxu0 0.0
    %1364 = vmatpush1.msra.mxu0 0.0
    %1365 = vmatprep.subr.mxu0 0.0
    %1366 = vmatpush1.msra.mxu0 0.0
    %1367 = vmatprep.subr.mxu0 0.0
    %1368 = vmatpush1.msra.mxu0 0.0
    %1369 = vmatprep.subr.mxu0 0.0
    %1370 = vmatpush1.msra.mxu0 0.0
    %1371 = vmatprep.subr.mxu0 0.0
    %1372 = vmatpush1.msra.mxu0 0.0
    %1373 = vmatprep.subr.mxu0 0.0
    %1374 = vmatpush1.msra.mxu0 0.0
    %1375 = vmatprep.subr.mxu0 0.0
    %1376 = vmatpush1.msra.mxu0 0.0
    %1377 = vmatprep.subr.mxu0 0.0
    %1378 = vmatpush1.msra.mxu0 0.0
    %1379 = vmatprep.subr.mxu0 0.0
    %1380 = vmatpush1.msra.mxu0 0.0
    %1381 = vmatprep.subr.mxu0 0.0
    %1382 = vmatpush1.msra.mxu0 0.0
    %1383 = vmatprep.subr.mxu0 0.0
    %1384 = vmatpush1.msra.mxu0 0.0
    %1385 = vmatprep.subr.mxu0 0.0
    %1386 = vmatpush1.msra.mxu0 0.0
    %1387 = vmatprep.subr.mxu0 0.0
    %1388 = vmatpush1.msra.mxu0 0.0
    %1389 = vmatprep.subr.mxu0 0.0
    %1390 = vmatpush1.msra.mxu0 0.0
    %1391 = vmatprep.subr.mxu0 0.0
    %1392 = vmatpush1.msra.mxu0 0.0
    %1393 = vmatprep.subr.mxu0 0.0
    %1394 = vmatpush1.msra.mxu0 0.0
    %1395 = vmatprep.subr.mxu0 0.0
    %1396 = vmatpush1.msra.mxu0 0.0
    %1397 = vmatprep.subr.mxu0 0.0
    %1398 = vmatpush1.msra.mxu0 0.0
    %1399 = vmatprep.mubr.f32.mxu0 0.0
    %1400 = vmatmul.mubr.f32.gmra.mrb[0].mxu0 %v1333
    %v1401 = vpop.f32.mrb[0].mxu0
    %v1402 = vadd.f32 0.0, %v1401
    %v1403 = vpop.f32.mrb[0].mxu0
    %1404 = vdwg.mxu0
    %v1405 = vadd.f32 %v1329, %v1402
    %v1406 = vadd.f32 %v1405, %v343
    %v1407 = vxor.u32 %v1406, 2147483648
    %v1408 = vmul.f32 %v1407, 1.442695
    %v1409 = vpow.pop %v1408
    %v1410 = vadd.f32 %v1409, 1.0
    %v1411 = vrcp.pop %v1410
    %v1412 = vmul.f32 1.0, %v1411
    %v1413 = vtanh.pop %v1406
    %v1414 = vmul.f32 %v1412, %v1208
    %1416 = vrot.lane.b32.xlu0 %v1413, 80
    %v1417 = vpop.permute.xlu0 %1416
    %v1419 = vmul.f32 %v1412, %v1417
    %1421 = vrot.lane.b32.xlu0 %v1419, 16
    %v1422 = vpop.permute.xlu0 %1421
    %v1424 = vadd.f32 %v1414, %v1422
    %v1425 = vtanh.pop %v1424
    %1427 = vrot.lane.b32.xlu0 %v1425, 16
    %v1428 = vpop.permute.xlu0 %1427
    %v1430 = vmul.f32 %v1412, %v1428
    %v1431 = vlaneseq
    %v1432 = vshrl.u32 %v1431, 7
    %v1433 = vsub.s32 0, %v1432
    %v1434 = vrot.slane %v1328, %v1433
    %v1435 = vsel %vm1221, %v1434, %v1220
    %v1436 = vlaneseq
    %v1437 = vshrl.u32 %v1436, 7
    %v1438 = vsub.s32 0, %v1437
    %v1439 = vrot.slane %v1430, %v1438
    %v1440 = vsel %vm1215, %v1439, %v1226
    %v1441 = vld [vmem:[#allocation2 + $0x5] sm:$0x1]
    %1443 = vrot.lane.b32.xlu0 %v1328, 96
    %v1444 = vpop.permute.xlu0 %1443
    %v1445 = vsel %vm351, %v1444, 0
    %1447 = vmatprep.subr.mxu0 0.0
    %1448 = vmatpush1.msra.mxu0 %v338
    %1449 = vmatprep.subr.mxu0 0.0
    %1450 = vmatpush1.msra.mxu0 %v339
    %1451 = vmatprep.subr.mxu0 0.0
    %1452 = vmatpush1.msra.mxu0 0.0
    %1453 = vmatprep.subr.mxu0 0.0
    %1454 = vmatpush1.msra.mxu0 0.0
    %1455 = vmatprep.subr.mxu0 0.0
    %1456 = vmatpush1.msra.mxu0 0.0
    %1457 = vmatprep.subr.mxu0 0.0
    %1458 = vmatpush1.msra.mxu0 0.0
    %1459 = vmatprep.subr.mxu0 0.0
    %1460 = vmatpush1.msra.mxu0 0.0
    %1461 = vmatprep.subr.mxu0 0.0
    %1462 = vmatpush1.msra.mxu0 0.0
    %1463 = vmatprep.subr.mxu0 0.0
    %1464 = vmatpush1.msra.mxu0 0.0
    %1465 = vmatprep.subr.mxu0 0.0
    %1466 = vmatpush1.msra.mxu0 0.0
    %1467 = vmatprep.subr.mxu0 0.0
    %1468 = vmatpush1.msra.mxu0 0.0
    %1469 = vmatprep.subr.mxu0 0.0
    %1470 = vmatpush1.msra.mxu0 0.0
    %1471 = vmatprep.subr.mxu0 0.0
    %1472 = vmatpush1.msra.mxu0 0.0
    %1473 = vmatprep.subr.mxu0 0.0
    %1474 = vmatpush1.msra.mxu0 0.0
    %1475 = vmatprep.subr.mxu0 0.0
    %1476 = vmatpush1.msra.mxu0 0.0
    %1477 = vmatprep.subr.mxu0 0.0
    %1478 = vmatpush1.msra.mxu0 0.0
    %1479 = vmatprep.subr.mxu0 0.0
    %1480 = vmatpush1.msra.mxu0 0.0
    %1481 = vmatprep.subr.mxu0 0.0
    %1482 = vmatpush1.msra.mxu0 0.0
    %1483 = vmatprep.subr.mxu0 0.0
    %1484 = vmatpush1.msra.mxu0 0.0
    %1485 = vmatprep.subr.mxu0 0.0
    %1486 = vmatpush1.msra.mxu0 0.0
    %1487 = vmatprep.subr.mxu0 0.0
    %1488 = vmatpush1.msra.mxu0 0.0
    %1489 = vmatprep.subr.mxu0 0.0
    %1490 = vmatpush1.msra.mxu0 0.0
    %1491 = vmatprep.subr.mxu0 0.0
    %1492 = vmatpush1.msra.mxu0 0.0
    %1493 = vmatprep.subr.mxu0 0.0
    %1494 = vmatpush1.msra.mxu0 0.0
    %1495 = vmatprep.subr.mxu0 0.0
    %1496 = vmatpush1.msra.mxu0 0.0
    %1497 = vmatprep.subr.mxu0 0.0
    %1498 = vmatpush1.msra.mxu0 0.0
    %1499 = vmatprep.subr.mxu0 0.0
    %1500 = vmatpush1.msra.mxu0 0.0
    %1501 = vmatprep.subr.mxu0 0.0
    %1502 = vmatpush1.msra.mxu0 0.0
    %1503 = vmatprep.subr.mxu0 0.0
    %1504 = vmatpush1.msra.mxu0 0.0
    %1505 = vmatprep.subr.mxu0 0.0
    %1506 = vmatpush1.msra.mxu0 0.0
    %1507 = vmatprep.subr.mxu0 0.0
    %1508 = vmatpush1.msra.mxu0 0.0
    %1509 = vmatprep.subr.mxu0 0.0
    %1510 = vmatpush1.msra.mxu0 0.0
    %1511 = vmatprep.mubr.f32.mxu0 0.0
    %1512 = vmatmul.mubr.f32.gmra.mrb[0].mxu0 %v1445
    %v1513 = vpop.f32.mrb[0].mxu0
    %v1514 = vadd.f32 0.0, %v1513
    %v1515 = vpop.f32.mrb[0].mxu0
    %1516 = vdwg.mxu0
    %v1517 = vadd.f32 %v1441, %v1514
    %v1518 = vadd.f32 %v1517, %v342
    %v1519 = vxor.u32 %v1518, 2147483648
    %v1520 = vmul.f32 %v1519, 1.442695
    %v1521 = vpow.pop %v1520
    %v1522 = vadd.f32 %v1521, 1.0
    %v1523 = vrcp.pop %v1522
    %v1524 = vmul.f32 1.0, %v1523
    %v1525 = vtanh.pop %v1518
    %v1526 = vmul.f32 %v1524, %v1322
    %1528 = vrot.lane.b32.xlu0 %v1525, 80
    %v1529 = vpop.permute.xlu0 %1528
    %v1531 = vmul.f32 %v1524, %v1529
    %1533 = vrot.lane.b32.xlu0 %v1531, 16
    %v1534 = vpop.permute.xlu0 %1533
    %v1536 = vadd.f32 %v1526, %v1534
    %v1537 = vtanh.pop %v1536
    %1539 = vrot.lane.b32.xlu0 %v1537, 16
    %v1540 = vpop.permute.xlu0 %1539
    %v1542 = vmul.f32 %v1524, %v1540
    %v1543 = vld [vmem:[#allocation3 + $0x2] sm:$0x1]
    %1545 = vrot.lane.b32.xlu0 %v1430, 96
    %v1546 = vpop.permute.xlu0 %1545
    %v1547 = vsel %vm351, %v1546, 0
    %1549 = vmatprep.subr.mxu0 0.0
    %1550 = vmatpush1.msra.mxu0 %v340
    %1551 = vmatprep.subr.mxu0 0.0
    %1552 = vmatpush1.msra.mxu0 %v341
    %1553 = vmatprep.subr.mxu0 0.0
    %1554 = vmatpush1.msra.mxu0 0.0
    %1555 = vmatprep.subr.mxu0 0.0
    %1556 = vmatpush1.msra.mxu0 0.0
    %1557 = vmatprep.subr.mxu0 0.0
    %1558 = vmatpush1.msra.mxu0 0.0
    %1559 = vmatprep.subr.mxu0 0.0
    %1560 = vmatpush1.msra.mxu0 0.0
    %1561 = vmatprep.subr.mxu0 0.0
    %1562 = vmatpush1.msra.mxu0 0.0
    %1563 = vmatprep.subr.mxu0 0.0
    %1564 = vmatpush1.msra.mxu0 0.0
    %1565 = vmatprep.subr.mxu0 0.0
    %1566 = vmatpush1.msra.mxu0 0.0
    %1567 = vmatprep.subr.mxu0 0.0
    %1568 = vmatpush1.msra.mxu0 0.0
    %1569 = vmatprep.subr.mxu0 0.0
    %1570 = vmatpush1.msra.mxu0 0.0
    %1571 = vmatprep.subr.mxu0 0.0
    %1572 = vmatpush1.msra.mxu0 0.0
    %1573 = vmatprep.subr.mxu0 0.0
    %1574 = vmatpush1.msra.mxu0 0.0
    %1575 = vmatprep.subr.mxu0 0.0
    %1576 = vmatpush1.msra.mxu0 0.0
    %1577 = vmatprep.subr.mxu0 0.0
    %1578 = vmatpush1.msra.mxu0 0.0
    %1579 = vmatprep.subr.mxu0 0.0
    %1580 = vmatpush1.msra.mxu0 0.0
    %1581 = vmatprep.subr.mxu0 0.0
    %1582 = vmatpush1.msra.mxu0 0.0
    %1583 = vmatprep.subr.mxu0 0.0
    %1584 = vmatpush1.msra.mxu0 0.0
    %1585 = vmatprep.subr.mxu0 0.0
    %1586 = vmatpush1.msra.mxu0 0.0
    %1587 = vmatprep.subr.mxu0 0.0
    %1588 = vmatpush1.msra.mxu0 0.0
    %1589 = vmatprep.subr.mxu0 0.0
    %1590 = vmatpush1.msra.mxu0 0.0
    %1591 = vmatprep.subr.mxu0 0.0
    %1592 = vmatpush1.msra.mxu0 0.0
    %1593 = vmatprep.subr.mxu0 0.0
    %1594 = vmatpush1.msra.mxu0 0.0
    %1595 = vmatprep.subr.mxu0 0.0
    %1596 = vmatpush1.msra.mxu0 0.0
    %1597 = vmatprep.subr.mxu0 0.0
    %1598 = vmatpush1.msra.mxu0 0.0
    %1599 = vmatprep.subr.mxu0 0.0
    %1600 = vmatpush1.msra.mxu0 0.0
    %1601 = vmatprep.subr.mxu0 0.0
    %1602 = vmatpush1.msra.mxu0 0.0
    %1603 = vmatprep.subr.mxu0 0.0
    %1604 = vmatpush1.msra.mxu0 0.0
    %1605 = vmatprep.subr.mxu0 0.0
    %1606 = vmatpush1.msra.mxu0 0.0
    %1607 = vmatprep.subr.mxu0 0.0
    %1608 = vmatpush1.msra.mxu0 0.0
    %1609 = vmatprep.subr.mxu0 0.0
    %1610 = vmatpush1.msra.mxu0 0.0
    %1611 = vmatprep.subr.mxu0 0.0
    %1612 = vmatpush1.msra.mxu0 0.0
    %1613 = vmatprep.mubr.f32.mxu0 0.0
    %1614 = vmatmul.mubr.f32.gmra.mrb[0].mxu0 %v1547
    %v1615 = vpop.f32.mrb[0].mxu0
    %v1616 = vadd.f32 0.0, %v1615
    %v1617 = vpop.f32.mrb[0].mxu0
    %1618 = vdwg.mxu0
    %v1619 = vadd.f32 %v1543, %v1616
    %v1620 = vadd.f32 %v1619, %v343
    %v1621 = vxor.u32 %v1620, 2147483648
    %v1622 = vmul.f32 %v1621, 1.442695
    %v1623 = vpow.pop %v1622
    %v1624 = vadd.f32 %v1623, 1.0
    %v1625 = vrcp.pop %v1624
    %v1626 = vmul.f32 1.0, %v1625
    %v1627 = vtanh.pop %v1620
    %v1628 = vmul.f32 %v1626, %v1424
    %1630 = vrot.lane.b32.xlu0 %v1627, 80
    %v1631 = vpop.permute.xlu0 %1630
    %v1633 = vmul.f32 %v1626, %v1631
    %1635 = vrot.lane.b32.xlu0 %v1633, 16
    %v1636 = vpop.permute.xlu0 %1635
    %v1638 = vadd.f32 %v1628, %v1636
    %v1639 = vtanh.pop %v1638
    %1641 = vrot.lane.b32.xlu0 %v1639, 16
    %v1642 = vpop.permute.xlu0 %1641
    %v1644 = vmul.f32 %v1626, %v1642
    %v1645 = vlaneseq
    %v1646 = vshrl.u32 %v1645, 7
    %v1647 = vsub.s32 0, %v1646
    %v1648 = vrot.slane %v1542, %v1647
    %v1649 = vsel %vm1005, %v1648, %v1435
    %v1650 = vlaneseq
    %v1651 = vshrl.u32 %v1650, 7
    %v1652 = vsub.s32 0, %v1651
    %v1653 = vrot.slane %v1644, %v1652
    %v1654 = vsel %vm999, %v1653, %v1440
    %v1655 = vld [vmem:[#allocation2 + $0x6] sm:$0x1]
    %1657 = vrot.lane.b32.xlu0 %v1542, 96
    %v1658 = vpop.permute.xlu0 %1657
    %v1659 = vsel %vm351, %v1658, 0
    %1661 = vmatprep.subr.mxu0 0.0
    %1662 = vmatpush1.msra.mxu0 %v338
    %1663 = vmatprep.subr.mxu0 0.0
    %1664 = vmatpush1.msra.mxu0 %v339
    %1665 = vmatprep.subr.mxu0 0.0
    %1666 = vmatpush1.msra.mxu0 0.0
    %1667 = vmatprep.subr.mxu0 0.0
    %1668 = vmatpush1.msra.mxu0 0.0
    %1669 = vmatprep.subr.mxu0 0.0
    %1670 = vmatpush1.msra.mxu0 0.0
    %1671 = vmatprep.subr.mxu0 0.0
    %1672 = vmatpush1.msra.mxu0 0.0
    %1673 = vmatprep.subr.mxu0 0.0
    %1674 = vmatpush1.msra.mxu0 0.0
    %1675 = vmatprep.subr.mxu0 0.0
    %1676 = vmatpush1.msra.mxu0 0.0
    %1677 = vmatprep.subr.mxu0 0.0
    %1678 = vmatpush1.msra.mxu0 0.0
    %1679 = vmatprep.subr.mxu0 0.0
    %1680 = vmatpush1.msra.mxu0 0.0
    %1681 = vmatprep.subr.mxu0 0.0
    %1682 = vmatpush1.msra.mxu0 0.0
    %1683 = vmatprep.subr.mxu0 0.0
    %1684 = vmatpush1.msra.mxu0 0.0
    %1685 = vmatprep.subr.mxu0 0.0
    %1686 = vmatpush1.msra.mxu0 0.0
    %1687 = vmatprep.subr.mxu0 0.0
    %1688 = vmatpush1.msra.mxu0 0.0
    %1689 = vmatprep.subr.mxu0 0.0
    %1690 = vmatpush1.msra.mxu0 0.0
    %1691 = vmatprep.subr.mxu0 0.0
    %1692 = vmatpush1.msra.mxu0 0.0
    %1693 = vmatprep.subr.mxu0 0.0
    %1694 = vmatpush1.msra.mxu0 0.0
    %1695 = vmatprep.subr.mxu0 0.0
    %1696 = vmatpush1.msra.mxu0 0.0
    %1697 = vmatprep.subr.mxu0 0.0
    %1698 = vmatpush1.msra.mxu0 0.0
    %1699 = vmatprep.subr.mxu0 0.0
    %1700 = vmatpush1.msra.mxu0 0.0
    %1701 = vmatprep.subr.mxu0 0.0
    %1702 = vmatpush1.msra.mxu0 0.0
    %1703 = vmatprep.subr.mxu0 0.0
    %1704 = vmatpush1.msra.mxu0 0.0
    %1705 = vmatprep.subr.mxu0 0.0
    %1706 = vmatpush1.msra.mxu0 0.0
    %1707 = vmatprep.subr.mxu0 0.0
    %1708 = vmatpush1.msra.mxu0 0.0
    %1709 = vmatprep.subr.mxu0 0.0
    %1710 = vmatpush1.msra.mxu0 0.0
    %1711 = vmatprep.subr.mxu0 0.0
    %1712 = vmatpush1.msra.mxu0 0.0
    %1713 = vmatprep.subr.mxu0 0.0
    %1714 = vmatpush1.msra.mxu0 0.0
    %1715 = vmatprep.subr.mxu0 0.0
    %1716 = vmatpush1.msra.mxu0 0.0
    %1717 = vmatprep.subr.mxu0 0.0
    %1718 = vmatpush1.msra.mxu0 0.0
    %1719 = vmatprep.subr.mxu0 0.0
    %1720 = vmatpush1.msra.mxu0 0.0
    %1721 = vmatprep.subr.mxu0 0.0
    %1722 = vmatpush1.msra.mxu0 0.0
    %1723 = vmatprep.subr.mxu0 0.0
    %1724 = vmatpush1.msra.mxu0 0.0
    %1725 = vmatprep.mubr.f32.mxu0 0.0
    %1726 = vmatmul.mubr.f32.gmra.mrb[0].mxu0 %v1659
    %v1727 = vpop.f32.mrb[0].mxu0
    %v1728 = vadd.f32 0.0, %v1727
    %v1729 = vpop.f32.mrb[0].mxu0
    %1730 = vdwg.mxu0
    %v1731 = vadd.f32 %v1655, %v1728
    %v1732 = vadd.f32 %v1731, %v342
    %v1733 = vxor.u32 %v1732, 2147483648
    %v1734 = vmul.f32 %v1733, 1.442695
    %v1735 = vpow.pop %v1734
    %v1736 = vadd.f32 %v1735, 1.0
    %v1737 = vrcp.pop %v1736
    %v1738 = vmul.f32 1.0, %v1737
    %v1739 = vtanh.pop %v1732
    %v1740 = vmul.f32 %v1738, %v1536
    %1742 = vrot.lane.b32.xlu0 %v1739, 80
    %v1743 = vpop.permute.xlu0 %1742
    %v1745 = vmul.f32 %v1738, %v1743
    %1747 = vrot.lane.b32.xlu0 %v1745, 16
    %v1748 = vpop.permute.xlu0 %1747
    %v1750 = vadd.f32 %v1740, %v1748
    %v1751 = vtanh.pop %v1750
    %1753 = vrot.lane.b32.xlu0 %v1751, 16
    %v1754 = vpop.permute.xlu0 %1753
    %v1756 = vmul.f32 %v1738, %v1754
    %v1757 = vld [vmem:[#allocation3 + $0x1] sm:$0x1]
    %1759 = vrot.lane.b32.xlu0 %v1644, 96
    %v1760 = vpop.permute.xlu0 %1759
    %v1761 = vsel %vm351, %v1760, 0
    %1763 = vmatprep.subr.mxu0 0.0
    %1764 = vmatpush1.msra.mxu0 %v340
    %1765 = vmatprep.subr.mxu0 0.0
    %1766 = vmatpush1.msra.mxu0 %v341
    %1767 = vmatprep.subr.mxu0 0.0
    %1768 = vmatpush1.msra.mxu0 0.0
    %1769 = vmatprep.subr.mxu0 0.0
    %1770 = vmatpush1.msra.mxu0 0.0
    %1771 = vmatprep.subr.mxu0 0.0
    %1772 = vmatpush1.msra.mxu0 0.0
    %1773 = vmatprep.subr.mxu0 0.0
    %1774 = vmatpush1.msra.mxu0 0.0
    %1775 = vmatprep.subr.mxu0 0.0
    %1776 = vmatpush1.msra.mxu0 0.0
    %1777 = vmatprep.subr.mxu0 0.0
    %1778 = vmatpush1.msra.mxu0 0.0
    %1779 = vmatprep.subr.mxu0 0.0
    %1780 = vmatpush1.msra.mxu0 0.0
    %1781 = vmatprep.subr.mxu0 0.0
    %1782 = vmatpush1.msra.mxu0 0.0
    %1783 = vmatprep.subr.mxu0 0.0
    %1784 = vmatpush1.msra.mxu0 0.0
    %1785 = vmatprep.subr.mxu0 0.0
    %1786 = vmatpush1.msra.mxu0 0.0
    %1787 = vmatprep.subr.mxu0 0.0
    %1788 = vmatpush1.msra.mxu0 0.0
    %1789 = vmatprep.subr.mxu0 0.0
    %1790 = vmatpush1.msra.mxu0 0.0
    %1791 = vmatprep.subr.mxu0 0.0
    %1792 = vmatpush1.msra.mxu0 0.0
    %1793 = vmatprep.subr.mxu0 0.0
    %1794 = vmatpush1.msra.mxu0 0.0
    %1795 = vmatprep.subr.mxu0 0.0
    %1796 = vmatpush1.msra.mxu0 0.0
    %1797 = vmatprep.subr.mxu0 0.0
    %1798 = vmatpush1.msra.mxu0 0.0
    %1799 = vmatprep.subr.mxu0 0.0
    %1800 = vmatpush1.msra.mxu0 0.0
    %1801 = vmatprep.subr.mxu0 0.0
    %1802 = vmatpush1.msra.mxu0 0.0
    %1803 = vmatprep.subr.mxu0 0.0
    %1804 = vmatpush1.msra.mxu0 0.0
    %1805 = vmatprep.subr.mxu0 0.0
    %1806 = vmatpush1.msra.mxu0 0.0
    %1807 = vmatprep.subr.mxu0 0.0
    %1808 = vmatpush1.msra.mxu0 0.0
    %1809 = vmatprep.subr.mxu0 0.0
    %1810 = vmatpush1.msra.mxu0 0.0
    %1811 = vmatprep.subr.mxu0 0.0
    %1812 = vmatpush1.msra.mxu0 0.0
    %1813 = vmatprep.subr.mxu0 0.0
    %1814 = vmatpush1.msra.mxu0 0.0
    %1815 = vmatprep.subr.mxu0 0.0
    %1816 = vmatpush1.msra.mxu0 0.0
    %1817 = vmatprep.subr.mxu0 0.0
    %1818 = vmatpush1.msra.mxu0 0.0
    %1819 = vmatprep.subr.mxu0 0.0
    %1820 = vmatpush1.msra.mxu0 0.0
    %1821 = vmatprep.subr.mxu0 0.0
    %1822 = vmatpush1.msra.mxu0 0.0
    %1823 = vmatprep.subr.mxu0 0.0
    %1824 = vmatpush1.msra.mxu0 0.0
    %1825 = vmatprep.subr.mxu0 0.0
    %1826 = vmatpush1.msra.mxu0 0.0
    %1827 = vmatprep.mubr.f32.mxu0 0.0
    %1828 = vmatmul.mubr.f32.gmra.mrb[0].mxu0 %v1761
    %v1829 = vpop.f32.mrb[0].mxu0
    %v1830 = vadd.f32 0.0, %v1829
    %v1831 = vpop.f32.mrb[0].mxu0
    %1832 = vdwg.mxu0
    %v1833 = vadd.f32 %v1757, %v1830
    %v1834 = vadd.f32 %v1833, %v343
    %v1835 = vxor.u32 %v1834, 2147483648
    %v1836 = vmul.f32 %v1835, 1.442695
    %v1837 = vpow.pop %v1836
    %v1838 = vadd.f32 %v1837, 1.0
    %v1839 = vrcp.pop %v1838
    %v1840 = vmul.f32 1.0, %v1839
    %v1841 = vtanh.pop %v1834
    %v1842 = vmul.f32 %v1840, %v1638
    %1844 = vrot.lane.b32.xlu0 %v1841, 80
    %v1845 = vpop.permute.xlu0 %1844
    %v1847 = vmul.f32 %v1840, %v1845
    %1849 = vrot.lane.b32.xlu0 %v1847, 16
    %v1850 = vpop.permute.xlu0 %1849
    %v1852 = vadd.f32 %v1842, %v1850
    %v1853 = vtanh.pop %v1852
    %1855 = vrot.lane.b32.xlu0 %v1853, 16
    %v1856 = vpop.permute.xlu0 %1855
    %v1858 = vmul.f32 %v1840, %v1856
    %v1859 = vlaneseq
    %v1860 = vshrl.u32 %v1859, 7
    %v1861 = vsub.s32 0, %v1860
    %v1862 = vrot.slane %v1756, %v1861
    %v1863 = vsel %vm789, %v1862, %v1649
    %v1864 = vlaneseq
    %v1865 = vshrl.u32 %v1864, 7
    %v1866 = vsub.s32 0, %v1865
    %v1867 = vrot.slane %v1858, %v1866
    %v1868 = vsel %vm783, %v1867, %v1654
    %v1869 = vld [vmem:[#allocation2 + $0x7] sm:$0x1]
    %1871 = vrot.lane.b32.xlu0 %v1756, 96
    %v1872 = vpop.permute.xlu0 %1871
    %v1873 = vsel %vm351, %v1872, 0
    %1875 = vmatprep.subr.mxu0 0.0
    %1876 = vmatpush1.msra.mxu0 %v338
    %1877 = vmatprep.subr.mxu0 0.0
    %1878 = vmatpush1.msra.mxu0 %v339
    %1879 = vmatprep.subr.mxu0 0.0
    %1880 = vmatpush1.msra.mxu0 0.0
    %1881 = vmatprep.subr.mxu0 0.0
    %1882 = vmatpush1.msra.mxu0 0.0
    %1883 = vmatprep.subr.mxu0 0.0
    %1884 = vmatpush1.msra.mxu0 0.0
    %1885 = vmatprep.subr.mxu0 0.0
    %1886 = vmatpush1.msra.mxu0 0.0
    %1887 = vmatprep.subr.mxu0 0.0
    %1888 = vmatpush1.msra.mxu0 0.0
    %1889 = vmatprep.subr.mxu0 0.0
    %1890 = vmatpush1.msra.mxu0 0.0
    %1891 = vmatprep.subr.mxu0 0.0
    %1892 = vmatpush1.msra.mxu0 0.0
    %1893 = vmatprep.subr.mxu0 0.0
    %1894 = vmatpush1.msra.mxu0 0.0
    %1895 = vmatprep.subr.mxu0 0.0
    %1896 = vmatpush1.msra.mxu0 0.0
    %1897 = vmatprep.subr.mxu0 0.0
    %1898 = vmatpush1.msra.mxu0 0.0
    %1899 = vmatprep.subr.mxu0 0.0
    %1900 = vmatpush1.msra.mxu0 0.0
    %1901 = vmatprep.subr.mxu0 0.0
    %1902 = vmatpush1.msra.mxu0 0.0
    %1903 = vmatprep.subr.mxu0 0.0
    %1904 = vmatpush1.msra.mxu0 0.0
    %1905 = vmatprep.subr.mxu0 0.0
    %1906 = vmatpush1.msra.mxu0 0.0
    %1907 = vmatprep.subr.mxu0 0.0
    %1908 = vmatpush1.msra.mxu0 0.0
    %1909 = vmatprep.subr.mxu0 0.0
    %1910 = vmatpush1.msra.mxu0 0.0
    %1911 = vmatprep.subr.mxu0 0.0
    %1912 = vmatpush1.msra.mxu0 0.0
    %1913 = vmatprep.subr.mxu0 0.0
    %1914 = vmatpush1.msra.mxu0 0.0
    %1915 = vmatprep.subr.mxu0 0.0
    %1916 = vmatpush1.msra.mxu0 0.0
    %1917 = vmatprep.subr.mxu0 0.0
    %1918 = vmatpush1.msra.mxu0 0.0
    %1919 = vmatprep.subr.mxu0 0.0
    %1920 = vmatpush1.msra.mxu0 0.0
    %1921 = vmatprep.subr.mxu0 0.0
    %1922 = vmatpush1.msra.mxu0 0.0
    %1923 = vmatprep.subr.mxu0 0.0
    %1924 = vmatpush1.msra.mxu0 0.0
    %1925 = vmatprep.subr.mxu0 0.0
    %1926 = vmatpush1.msra.mxu0 0.0
    %1927 = vmatprep.subr.mxu0 0.0
    %1928 = vmatpush1.msra.mxu0 0.0
    %1929 = vmatprep.subr.mxu0 0.0
    %1930 = vmatpush1.msra.mxu0 0.0
    %1931 = vmatprep.subr.mxu0 0.0
    %1932 = vmatpush1.msra.mxu0 0.0
    %1933 = vmatprep.subr.mxu0 0.0
    %1934 = vmatpush1.msra.mxu0 0.0
    %1935 = vmatprep.subr.mxu0 0.0
    %1936 = vmatpush1.msra.mxu0 0.0
    %1937 = vmatprep.subr.mxu0 0.0
    %1938 = vmatpush1.msra.mxu0 0.0
    %1939 = vmatprep.mubr.f32.mxu0 0.0
    %1940 = vmatmul.mubr.f32.gmra.mrb[0].mxu0 %v1873
    %v1941 = vpop.f32.mrb[0].mxu0
    %v1942 = vadd.f32 0.0, %v1941
    %v1943 = vpop.f32.mrb[0].mxu0
    %1944 = vdwg.mxu0
    %v1945 = vadd.f32 %v1869, %v1942
    %v1946 = vadd.f32 %v1945, %v342
    %v1947 = vxor.u32 %v1946, 2147483648
    %v1948 = vmul.f32 %v1947, 1.442695
    %v1949 = vpow.pop %v1948
    %v1950 = vadd.f32 %v1949, 1.0
    %v1951 = vrcp.pop %v1950
    %v1952 = vmul.f32 1.0, %v1951
    %v1953 = vtanh.pop %v1946
    %v1954 = vmul.f32 %v1952, %v1750
    %1956 = vrot.lane.b32.xlu0 %v1953, 80
    %v1957 = vpop.permute.xlu0 %1956
    %v1959 = vmul.f32 %v1952, %v1957
    %1961 = vrot.lane.b32.xlu0 %v1959, 16
    %v1962 = vpop.permute.xlu0 %1961
    %v1964 = vadd.f32 %v1954, %v1962
    %v1965 = vtanh.pop %v1964
    %1967 = vrot.lane.b32.xlu0 %v1965, 16
    %v1968 = vpop.permute.xlu0 %1967
    %v1970 = vmul.f32 %v1952, %v1968
    %v1971 = vld [vmem:[#allocation3] sm:$0x1]
    %1973 = vrot.lane.b32.xlu0 %v1858, 96
    %v1974 = vpop.permute.xlu0 %1973
    %v1975 = vsel %vm351, %v1974, 0
    %1977 = vmatprep.subr.mxu0 0.0
    %1978 = vmatpush1.msra.mxu0 %v340
    %1979 = vmatprep.subr.mxu0 0.0
    %1980 = vmatpush1.msra.mxu0 %v341
    %1981 = vmatprep.subr.mxu0 0.0
    %1982 = vmatpush1.msra.mxu0 0.0
    %1983 = vmatprep.subr.mxu0 0.0
    %1984 = vmatpush1.msra.mxu0 0.0
    %1985 = vmatprep.subr.mxu0 0.0
    %1986 = vmatpush1.msra.mxu0 0.0
    %1987 = vmatprep.subr.mxu0 0.0
    %1988 = vmatpush1.msra.mxu0 0.0
    %1989 = vmatprep.subr.mxu0 0.0
    %1990 = vmatpush1.msra.mxu0 0.0
    %1991 = vmatprep.subr.mxu0 0.0
    %1992 = vmatpush1.msra.mxu0 0.0
    %1993 = vmatprep.subr.mxu0 0.0
    %1994 = vmatpush1.msra.mxu0 0.0
    %1995 = vmatprep.subr.mxu0 0.0
    %1996 = vmatpush1.msra.mxu0 0.0
    %1997 = vmatprep.subr.mxu0 0.0
    %1998 = vmatpush1.msra.mxu0 0.0
    %1999 = vmatprep.subr.mxu0 0.0
    %2000 = vmatpush1.msra.mxu0 0.0
    %2001 = vmatprep.subr.mxu0 0.0
    %2002 = vmatpush1.msra.mxu0 0.0
    %2003 = vmatprep.subr.mxu0 0.0
    %2004 = vmatpush1.msra.mxu0 0.0
    %2005 = vmatprep.subr.mxu0 0.0
    %2006 = vmatpush1.msra.mxu0 0.0
    %2007 = vmatprep.subr.mxu0 0.0
    %2008 = vmatpush1.msra.mxu0 0.0
    %2009 = vmatprep.subr.mxu0 0.0
    %2010 = vmatpush1.msra.mxu0 0.0
    %2011 = vmatprep.subr.mxu0 0.0
    %2012 = vmatpush1.msra.mxu0 0.0
    %2013 = vmatprep.subr.mxu0 0.0
    %2014 = vmatpush1.msra.mxu0 0.0
    %2015 = vmatprep.subr.mxu0 0.0
    %2016 = vmatpush1.msra.mxu0 0.0
    %2017 = vmatprep.subr.mxu0 0.0
    %2018 = vmatpush1.msra.mxu0 0.0
    %2019 = vmatprep.subr.mxu0 0.0
    %2020 = vmatpush1.msra.mxu0 0.0
    %2021 = vmatprep.subr.mxu0 0.0
    %2022 = vmatpush1.msra.mxu0 0.0
    %2023 = vmatprep.subr.mxu0 0.0
    %2024 = vmatpush1.msra.mxu0 0.0
    %2025 = vmatprep.subr.mxu0 0.0
    %2026 = vmatpush1.msra.mxu0 0.0
    %2027 = vmatprep.subr.mxu0 0.0
    %2028 = vmatpush1.msra.mxu0 0.0
    %2029 = vmatprep.subr.mxu0 0.0
    %2030 = vmatpush1.msra.mxu0 0.0
    %2031 = vmatprep.subr.mxu0 0.0
    %2032 = vmatpush1.msra.mxu0 0.0
    %2033 = vmatprep.subr.mxu0 0.0
    %2034 = vmatpush1.msra.mxu0 0.0
    %2035 = vmatprep.subr.mxu0 0.0
    %2036 = vmatpush1.msra.mxu0 0.0
    %2037 = vmatprep.subr.mxu0 0.0
    %2038 = vmatpush1.msra.mxu0 0.0
    %2039 = vmatprep.subr.mxu0 0.0
    %2040 = vmatpush1.msra.mxu0 0.0
    %2041 = vmatprep.mubr.f32.mxu0 0.0
    %2042 = vmatmul.mubr.f32.gmra.mrb[0].mxu0 %v1975
    %v2043 = vpop.f32.mrb[0].mxu0
    %v2044 = vadd.f32 0.0, %v2043
    %v2045 = vpop.f32.mrb[0].mxu0
    %2046 = vdwg.mxu0
    %v2047 = vadd.f32 %v1971, %v2044
    %v2048 = vadd.f32 %v2047, %v343
    %v2049 = vxor.u32 %v2048, 2147483648
    %v2050 = vmul.f32 %v2049, 1.442695
    %v2051 = vpow.pop %v2050
    %v2052 = vadd.f32 %v2051, 1.0
    %v2053 = vrcp.pop %v2052
    %v2054 = vmul.f32 1.0, %v2053
    %v2055 = vtanh.pop %v2048
    %v2056 = vmul.f32 %v2054, %v1852
    %2058 = vrot.lane.b32.xlu0 %v2055, 80
    %v2059 = vpop.permute.xlu0 %2058
    %v2061 = vmul.f32 %v2054, %v2059
    %2063 = vrot.lane.b32.xlu0 %v2061, 16
    %v2064 = vpop.permute.xlu0 %2063
    %v2066 = vadd.f32 %v2056, %v2064
    %v2067 = vtanh.pop %v2066
    %2069 = vrot.lane.b32.xlu0 %v2067, 16
    %v2070 = vpop.permute.xlu0 %2069
    %v2072 = vmul.f32 %v2054, %v2070
    %v2073 = vlaneseq
    %v2074 = vshrl.u32 %v2073, 7
    %v2075 = vsub.s32 0, %v2074
    %v2076 = vrot.slane %v1970, %v2075
    %v2077 = vsel %vm573, %v2076, %v1863
    %v2078 = vlaneseq
    %v2079 = vshrl.u32 %v2078, 7
    %v2080 = vsub.s32 0, %v2079
    %v2081 = vrot.slane %v2072, %v2080
    %v2082 = vsel %vm567, %v2081, %v1868
    %v2083 = vld [vmem:[%s11] sm:$0xff]
    %v2084 = vld [vmem:[%s11 + $0x8] sm:$0xff]
    %v2085 = vld [vmem:[%s12] sm:$0xff]
    %v2086 = vld [vmem:[%s12 + $0x8] sm:$0xff]
    %2088 = vrot.lane.b32.xlu0 %v2082, 96
    %v2089 = vpop.permute.xlu0 %2088
    %v2090 = vsel %vm351, %v2089, 0
    %2092 = vmatprep.subr.mxu0 0.0
    %2093 = vmatpush1.msra.mxu0 %v2085
    %2094 = vmatprep.subr.mxu0 0.0
    %2095 = vmatpush1.msra.mxu0 %v2086
    %2096 = vmatprep.subr.mxu0 0.0
    %2097 = vmatpush1.msra.mxu0 0.0
    %2098 = vmatprep.subr.mxu0 0.0
    %2099 = vmatpush1.msra.mxu0 0.0
    %2100 = vmatprep.subr.mxu0 0.0
    %2101 = vmatpush1.msra.mxu0 0.0
    %2102 = vmatprep.subr.mxu0 0.0
    %2103 = vmatpush1.msra.mxu0 0.0
    %2104 = vmatprep.subr.mxu0 0.0
    %2105 = vmatpush1.msra.mxu0 0.0
    %2106 = vmatprep.subr.mxu0 0.0
    %2107 = vmatpush1.msra.mxu0 0.0
    %2108 = vmatprep.subr.mxu0 0.0
    %2109 = vmatpush1.msra.mxu0 0.0
    %2110 = vmatprep.subr.mxu0 0.0
    %2111 = vmatpush1.msra.mxu0 0.0
    %2112 = vmatprep.subr.mxu0 0.0
    %2113 = vmatpush1.msra.mxu0 0.0
    %2114 = vmatprep.subr.mxu0 0.0
    %2115 = vmatpush1.msra.mxu0 0.0
    %2116 = vmatprep.subr.mxu0 0.0
    %2117 = vmatpush1.msra.mxu0 0.0
    %2118 = vmatprep.subr.mxu0 0.0
    %2119 = vmatpush1.msra.mxu0 0.0
    %2120 = vmatprep.subr.mxu0 0.0
    %2121 = vmatpush1.msra.mxu0 0.0
    %2122 = vmatprep.subr.mxu0 0.0
    %2123 = vmatpush1.msra.mxu0 0.0
    %2124 = vmatprep.subr.mxu0 0.0
    %2125 = vmatpush1.msra.mxu0 0.0
    %2126 = vmatprep.subr.mxu0 0.0
    %2127 = vmatpush1.msra.mxu0 0.0
    %2128 = vmatprep.subr.mxu0 0.0
    %2129 = vmatpush1.msra.mxu0 0.0
    %2130 = vmatprep.subr.mxu0 0.0
    %2131 = vmatpush1.msra.mxu0 0.0
    %2132 = vmatprep.subr.mxu0 0.0
    %2133 = vmatpush1.msra.mxu0 0.0
    %2134 = vmatprep.subr.mxu0 0.0
    %2135 = vmatpush1.msra.mxu0 0.0
    %2136 = vmatprep.subr.mxu0 0.0
    %2137 = vmatpush1.msra.mxu0 0.0
    %2138 = vmatprep.subr.mxu0 0.0
    %2139 = vmatpush1.msra.mxu0 0.0
    %2140 = vmatprep.subr.mxu0 0.0
    %2141 = vmatpush1.msra.mxu0 0.0
    %2142 = vmatprep.subr.mxu0 0.0
    %2143 = vmatpush1.msra.mxu0 0.0
    %2144 = vmatprep.subr.mxu0 0.0
    %2145 = vmatpush1.msra.mxu0 0.0
    %2146 = vmatprep.subr.mxu0 0.0
    %2147 = vmatpush1.msra.mxu0 0.0
    %2148 = vmatprep.subr.mxu0 0.0
    %2149 = vmatpush1.msra.mxu0 0.0
    %2150 = vmatprep.subr.mxu0 0.0
    %2151 = vmatpush1.msra.mxu0 0.0
    %2152 = vmatprep.subr.mxu0 0.0
    %2153 = vmatpush1.msra.mxu0 0.0
    %2154 = vmatprep.subr.mxu0 0.0
    %2155 = vmatpush1.msra.mxu0 0.0
    %2156 = vmatprep.mubr.f32.mxu0 0.0
    %2157 = vmatmul.mubr.f32.gmra.mrb[0].mxu0 %v2090
    %v2158 = vpop.f32.mrb[0].mxu0
    %v2159 = vadd.f32 0.0, %v2158
    %v2160 = vpop.f32.mrb[0].mxu0
    %2161 = vdwg.mxu0
    %2163 = vrot.lane.b32.xlu0 %v2077, 96
    %v2164 = vpop.permute.xlu0 %2163
    %v2165 = vsel %vm351, %v2164, 0
    %2167 = vmatprep.subr.mxu0 0.0
    %2168 = vmatpush1.msra.mxu0 %v2083
    %2169 = vmatprep.subr.mxu0 0.0
    %2170 = vmatpush1.msra.mxu0 %v2084
    %2171 = vmatprep.subr.mxu0 0.0
    %2172 = vmatpush1.msra.mxu0 0.0
    %2173 = vmatprep.subr.mxu0 0.0
    %2174 = vmatpush1.msra.mxu0 0.0
    %2175 = vmatprep.subr.mxu0 0.0
    %2176 = vmatpush1.msra.mxu0 0.0
    %2177 = vmatprep.subr.mxu0 0.0
    %2178 = vmatpush1.msra.mxu0 0.0
    %2179 = vmatprep.subr.mxu0 0.0
    %2180 = vmatpush1.msra.mxu0 0.0
    %2181 = vmatprep.subr.mxu0 0.0
    %2182 = vmatpush1.msra.mxu0 0.0
    %2183 = vmatprep.subr.mxu0 0.0
    %2184 = vmatpush1.msra.mxu0 0.0
    %2185 = vmatprep.subr.mxu0 0.0
    %2186 = vmatpush1.msra.mxu0 0.0
    %2187 = vmatprep.subr.mxu0 0.0
    %2188 = vmatpush1.msra.mxu0 0.0
    %2189 = vmatprep.subr.mxu0 0.0
    %2190 = vmatpush1.msra.mxu0 0.0
    %2191 = vmatprep.subr.mxu0 0.0
    %2192 = vmatpush1.msra.mxu0 0.0
    %2193 = vmatprep.subr.mxu0 0.0
    %2194 = vmatpush1.msra.mxu0 0.0
    %2195 = vmatprep.subr.mxu0 0.0
    %2196 = vmatpush1.msra.mxu0 0.0
    %2197 = vmatprep.subr.mxu0 0.0
    %2198 = vmatpush1.msra.mxu0 0.0
    %2199 = vmatprep.subr.mxu0 0.0
    %2200 = vmatpush1.msra.mxu0 0.0
    %2201 = vmatprep.subr.mxu0 0.0
    %2202 = vmatpush1.msra.mxu0 0.0
    %2203 = vmatprep.subr.mxu0 0.0
    %2204 = vmatpush1.msra.mxu0 0.0
    %2205 = vmatprep.subr.mxu0 0.0
    %2206 = vmatpush1.msra.mxu0 0.0
    %2207 = vmatprep.subr.mxu0 0.0
    %2208 = vmatpush1.msra.mxu0 0.0
    %2209 = vmatprep.subr.mxu0 0.0
    %2210 = vmatpush1.msra.mxu0 0.0
    %2211 = vmatprep.subr.mxu0 0.0
    %2212 = vmatpush1.msra.mxu0 0.0
    %2213 = vmatprep.subr.mxu0 0.0
    %2214 = vmatpush1.msra.mxu0 0.0
    %2215 = vmatprep.subr.mxu0 0.0
    %2216 = vmatpush1.msra.mxu0 0.0
    %2217 = vmatprep.subr.mxu0 0.0
    %2218 = vmatpush1.msra.mxu0 0.0
    %2219 = vmatprep.subr.mxu0 0.0
    %2220 = vmatpush1.msra.mxu0 0.0
    %2221 = vmatprep.subr.mxu0 0.0
    %2222 = vmatpush1.msra.mxu0 0.0
    %2223 = vmatprep.subr.mxu0 0.0
    %2224 = vmatpush1.msra.mxu0 0.0
    %2225 = vmatprep.subr.mxu0 0.0
    %2226 = vmatpush1.msra.mxu0 0.0
    %2227 = vmatprep.subr.mxu0 0.0
    %2228 = vmatpush1.msra.mxu0 0.0
    %2229 = vmatprep.subr.mxu0 0.0
    %2230 = vmatpush1.msra.mxu0 0.0
    %2231 = vmatprep.mubr.f32.mxu0 0.0
    %2232 = vmatmul.mubr.f32.gmra.mrb[0].mxu0 %v2165
    %v2233 = vpop.f32.mrb[0].mxu0
    %v2234 = vadd.f32 %v2159, %v2233
    %v2235 = vpop.f32.mrb[0].mxu0
    %2236 = vdwg.mxu0
    %v2237 = vld [vmem:[#allocation19] sm:$0x1]
    %v2239 = vlaneseq
    %v2240 = vshrl.u32 %v2239, 7
    %v2241 = vsub.s32 0, %v2240
    %v2242 = vrot.slane %v2237, %v2241
    %v2244 = vadd.f32 %v2234, %v2242
    %vm2245 = vcmask 39936
    %2246 = vst.msk [vmem:[#allocation20] sm:$0xff] %vm2245, %v2244
    %v2247 = vld [vmem:[%s13] sm:$0x1f]
    %v2248 = vld [vmem:[%s14] sm:$0x1f]
    %v2250 = vsel %vm351, %v2248, 0
    %2252 = vmatprep.subr.mxu0 0.0
    %2253 = vmatpush1.xpose.msra.mxu0 %v2090
    %2254 = vmatprep.subr.mxu0 0.0
    %2255 = vmatpush1.xpose.msra.mxu0 0.0
    %2256 = vmatprep.subr.mxu0 0.0
    %2257 = vmatpush1.xpose.msra.mxu0 0.0
    %2258 = vmatprep.subr.mxu0 0.0
    %2259 = vmatpush1.xpose.msra.mxu0 0.0
    %2260 = vmatprep.subr.mxu0 0.0
    %2261 = vmatpush1.xpose.msra.mxu0 0.0
    %2262 = vmatprep.subr.mxu0 0.0
    %2263 = vmatpush1.xpose.msra.mxu0 0.0
    %2264 = vmatprep.subr.mxu0 0.0
    %2265 = vmatpush1.xpose.msra.mxu0 0.0
    %2266 = vmatprep.subr.mxu0 0.0
    %2267 = vmatpush1.xpose.msra.mxu0 0.0
    %2268 = vmatprep.subr.mxu0 0.0
    %2269 = vmatpush1.xpose.msra.mxu0 0.0
    %2270 = vmatprep.subr.mxu0 0.0
    %2271 = vmatpush1.xpose.msra.mxu0 0.0
    %2272 = vmatprep.subr.mxu0 0.0
    %2273 = vmatpush1.xpose.msra.mxu0 0.0
    %2274 = vmatprep.subr.mxu0 0.0
    %2275 = vmatpush1.xpose.msra.mxu0 0.0
    %2276 = vmatprep.subr.mxu0 0.0
    %2277 = vmatpush1.xpose.msra.mxu0 0.0
    %2278 = vmatprep.subr.mxu0 0.0
    %2279 = vmatpush1.xpose.msra.mxu0 0.0
    %2280 = vmatprep.subr.mxu0 0.0
    %2281 = vmatpush1.xpose.msra.mxu0 0.0
    %2282 = vmatprep.subr.mxu0 0.0
    %2283 = vmatpush1.xpose.msra.mxu0 0.0
    %2284 = vmatprep.subr.mxu0 0.0
    %2285 = vmatpush1.xpose.msra.mxu0 0.0
    %2286 = vmatprep.subr.mxu0 0.0
    %2287 = vmatpush1.xpose.msra.mxu0 0.0
    %2288 = vmatprep.subr.mxu0 0.0
    %2289 = vmatpush1.xpose.msra.mxu0 0.0
    %2290 = vmatprep.subr.mxu0 0.0
    %2291 = vmatpush1.xpose.msra.mxu0 0.0
    %2292 = vmatprep.subr.mxu0 0.0
    %2293 = vmatpush1.xpose.msra.mxu0 0.0
    %2294 = vmatprep.subr.mxu0 0.0
    %2295 = vmatpush1.xpose.msra.mxu0 0.0
    %2296 = vmatprep.subr.mxu0 0.0
    %2297 = vmatpush1.xpose.msra.mxu0 0.0
    %2298 = vmatprep.subr.mxu0 0.0
    %2299 = vmatpush1.xpose.msra.mxu0 0.0
    %2300 = vmatprep.subr.mxu0 0.0
    %2301 = vmatpush1.xpose.msra.mxu0 0.0
    %2302 = vmatprep.subr.mxu0 0.0
    %2303 = vmatpush1.xpose.msra.mxu0 0.0
    %2304 = vmatprep.subr.mxu0 0.0
    %2305 = vmatpush1.xpose.msra.mxu0 0.0
    %2306 = vmatprep.subr.mxu0 0.0
    %2307 = vmatpush1.xpose.msra.mxu0 0.0
    %2308 = vmatprep.subr.mxu0 0.0
    %2309 = vmatpush1.xpose.msra.mxu0 0.0
    %2310 = vmatprep.subr.mxu0 0.0
    %2311 = vmatpush1.xpose.msra.mxu0 0.0
    %2312 = vmatprep.subr.mxu0 0.0
    %2313 = vmatpush1.xpose.msra.mxu0 0.0
    %2314 = vmatprep.subr.mxu0 0.0
    %2315 = vmatpush1.xpose.msra.mxu0 0.0
    %2316 = vmatprep.mubr.f32.mxu0 0.0
    %2317 = vmatmul.mubr.f32.gmra.mrb[0].mxu0 %v2250
    %v2318 = vpop.f32.mrb[0].mxu0
    %v2319 = vadd.f32 0.0, %v2318
    %v2320 = vpop.f32.mrb[0].mxu0
    %2321 = vdwg.mxu0
    %v2323 = vsel %vm351, %v2247, 0
    %2325 = vmatprep.subr.mxu0 0.0
    %2326 = vmatpush1.xpose.msra.mxu0 %v2165
    %2327 = vmatprep.subr.mxu0 0.0
    %2328 = vmatpush1.xpose.msra.mxu0 0.0
    %2329 = vmatprep.subr.mxu0 0.0
    %2330 = vmatpush1.xpose.msra.mxu0 0.0
    %2331 = vmatprep.subr.mxu0 0.0
    %2332 = vmatpush1.xpose.msra.mxu0 0.0
    %2333 = vmatprep.subr.mxu0 0.0
    %2334 = vmatpush1.xpose.msra.mxu0 0.0
    %2335 = vmatprep.subr.mxu0 0.0
    %2336 = vmatpush1.xpose.msra.mxu0 0.0
    %2337 = vmatprep.subr.mxu0 0.0
    %2338 = vmatpush1.xpose.msra.mxu0 0.0
    %2339 = vmatprep.subr.mxu0 0.0
    %2340 = vmatpush1.xpose.msra.mxu0 0.0
    %2341 = vmatprep.subr.mxu0 0.0
    %2342 = vmatpush1.xpose.msra.mxu0 0.0
    %2343 = vmatprep.subr.mxu0 0.0
    %2344 = vmatpush1.xpose.msra.mxu0 0.0
    %2345 = vmatprep.subr.mxu0 0.0
    %2346 = vmatpush1.xpose.msra.mxu0 0.0
    %2347 = vmatprep.subr.mxu0 0.0
    %2348 = vmatpush1.xpose.msra.mxu0 0.0
    %2349 = vmatprep.subr.mxu0 0.0
    %2350 = vmatpush1.xpose.msra.mxu0 0.0
    %2351 = vmatprep.subr.mxu0 0.0
    %2352 = vmatpush1.xpose.msra.mxu0 0.0
    %2353 = vmatprep.subr.mxu0 0.0
    %2354 = vmatpush1.xpose.msra.mxu0 0.0
    %2355 = vmatprep.subr.mxu0 0.0
    %2356 = vmatpush1.xpose.msra.mxu0 0.0
    %2357 = vmatprep.subr.mxu0 0.0
    %2358 = vmatpush1.xpose.msra.mxu0 0.0
    %2359 = vmatprep.subr.mxu0 0.0
    %2360 = vmatpush1.xpose.msra.mxu0 0.0
    %2361 = vmatprep.subr.mxu0 0.0
    %2362 = vmatpush1.xpose.msra.mxu0 0.0
    %2363 = vmatprep.subr.mxu0 0.0
    %2364 = vmatpush1.xpose.msra.mxu0 0.0
    %2365 = vmatprep.subr.mxu0 0.0
    %2366 = vmatpush1.xpose.msra.mxu0 0.0
    %2367 = vmatprep.subr.mxu0 0.0
    %2368 = vmatpush1.xpose.msra.mxu0 0.0
    %2369 = vmatprep.subr.mxu0 0.0
    %2370 = vmatpush1.xpose.msra.mxu0 0.0
    %2371 = vmatprep.subr.mxu0 0.0
    %2372 = vmatpush1.xpose.msra.mxu0 0.0
    %2373 = vmatprep.subr.mxu0 0.0
    %2374 = vmatpush1.xpose.msra.mxu0 0.0
    %2375 = vmatprep.subr.mxu0 0.0
    %2376 = vmatpush1.xpose.msra.mxu0 0.0
    %2377 = vmatprep.subr.mxu0 0.0
    %2378 = vmatpush1.xpose.msra.mxu0 0.0
    %2379 = vmatprep.subr.mxu0 0.0
    %2380 = vmatpush1.xpose.msra.mxu0 0.0
    %2381 = vmatprep.subr.mxu0 0.0
    %2382 = vmatpush1.xpose.msra.mxu0 0.0
    %2383 = vmatprep.subr.mxu0 0.0
    %2384 = vmatpush1.xpose.msra.mxu0 0.0
    %2385 = vmatprep.subr.mxu0 0.0
    %2386 = vmatpush1.xpose.msra.mxu0 0.0
    %2387 = vmatprep.subr.mxu0 0.0
    %2388 = vmatpush1.xpose.msra.mxu0 0.0
    %2389 = vmatprep.mubr.f32.mxu0 0.0
    %2390 = vmatmul.mubr.f32.gmra.mrb[0].mxu0 %v2323
    %v2391 = vpop.f32.mrb[0].mxu0
    %v2392 = vadd.f32 %v2319, %v2391
    %v2393 = vpop.f32.mrb[0].mxu0
    %2394 = vdwg.mxu0
    %v2395 = vld [vmem:[%s16] sm:$0x1f]
    %2397 = vset.pattern.permute.xlu0 0
    %2398 = vperm.xlu0 %2397, %v2395
    %v2399 = vpop.permute.xlu0 %2398
    %v2401 = vadd.f32 %v2392, %v2399
    %vm2402 = vcmask 61440
    %2403 = vst.msk [vmem:[#allocation4] sm:$0x1f] %vm2402, %v2401
    %v2404 = vld [vmem:[%s17] sm:$0x1f]
    %v2405 = vld [vmem:[%s18] sm:$0x1f]
    %v2406 = vlaneseq
    %v2407 = vand.u32 %v2406, 127
    %v2408 = vsel %vm1215, 0.0, -10000.0
    %v2409 = vadd.f32 %v2408, %v2405
    %vm2410 = vcmask 36864
    %v2411 = vsel %vm2410, %v2409, -inf
    %v2412 = vrot.slane %v2411, 4
    %v2413 = vmax.f32 %v2411, %v2412
    %v2414 = vrot.slane %v2413, 2
    %v2415 = vmax.f32 %v2413, %v2414
    %v2416 = vrot.slane %v2415, 1
    %v2417 = vmax.f32 %v2415, %v2416
    %vm2418 = vcmp.eq.f32.partialorder %v2409, %v2417
    %v2419 = vsel %vm2418, %v345, 5
    %v2420 = vsel %vm2410, %v2419, 2147483647
    %v2421 = vrot.slane %v2420, 4
    %vm2422 = vcmp.lt.s32.totalorder %v2420, %v2421
    %v2423 = vsel %vm2422, %v2420, %v2421
    %v2424 = vrot.slane %v2423, 2
    %vm2425 = vcmp.lt.s32.totalorder %v2423, %v2424
    %v2426 = vsel %vm2425, %v2423, %v2424
    %v2427 = vrot.slane %v2426, 1
    %vm2428 = vcmp.lt.s32.totalorder %v2426, %v2427
    %v2429 = vsel %vm2428, %v2426, %v2427
    %v2430 = vsel %vm567, %v2429, 0
    %v2431 = vld [vmem:[#allocation20] sm:$0x1]
    %v2432 = vadd.f32 %v2417, %v2431
    %v2433 = vlaneseq
    %v2434 = vshrl.u32 %v2433, 7
    %v2435 = vsub.s32 0, %v2434
    %v2436 = vrot.slane %v2432, %v2435
    %v2437 = vadd.f32 %v2436, %v2404
    %v2438 = vsel %vm2410, %v2437, -inf
    %2439 = vmax.xlane.f32.xlu0 %v2438
    %v2440 = vpop.xlane.xlu0 %2439
    %vm2441 = vcmp.eq.f32.partialorder %v2437, %v2440
    %v2442 = vsel %vm2441, %v2407, 5
    %v2443 = vsel %vm2410, %v2442, 2147483647
    %v2444 = vand.u32 %v2443, 65535
    %v2445 = vshra.s32 %v2443, 16
    %v2446 = vcvt.s32.f32 %v2444
    %v2447 = vcvt.s32.f32 %v2445
    %2448 = vmin.xlane.f32.xlu0 %v2447
    %v2449 = vpop.xlane.xlu0 %2448
    %vm2450 = vcmp.eq.f32.partialorder %v2447, %v2449
    %v2451 = vsel %vm2450, %v2446, inf
    %2452 = vmin.xlane.f32.xlu0 %v2451
    %v2453 = vpop.xlane.xlu0 %2452
    %v2454 = vcvt.f32.s32 %v2453
    %v2455 = vcvt.f32.s32 %v2449
    %v2456 = vshll.u32 %v2455, 16
    %v2457 = vadd.s32 %v2456, %v2454
    %vm2458 = vcmp.eq.s32.totalorder %v2407, 1
    %v2459 = vsel %vm2458, %v2457, 0
    %v2460 = vld [vmem:[#allocation4] sm:$0x1f]
    %v2461 = vadd.f32 %v2440, %v2460
    %2463 = vset.pattern.permute.xlu0 1
    %2464 = vperm.xlu0 %2463, %v2461
    %v2465 = vpop.permute.xlu0 %2464
    %v2467 = vadd.f32 %v2465, %v2405
    %v2468 = vsel %vm2410, %v2467, -inf
    %v2469 = vrot.slane %v2468, 4
    %v2470 = vmax.f32 %v2468, %v2469
    %v2471 = vrot.slane %v2470, 2
    %v2472 = vmax.f32 %v2470, %v2471
    %v2473 = vrot.slane %v2472, 1
    %v2474 = vmax.f32 %v2472, %v2473
    %vm2475 = vcmp.eq.f32.partialorder %v2467, %v2474
    %v2476 = vsel %vm2475, %v345, 5
    %v2477 = vsel %vm2410, %v2476, 2147483647
    %v2478 = vrot.slane %v2477, 4
    %vm2479 = vcmp.lt.s32.totalorder %v2477, %v2478
    %v2480 = vsel %vm2479, %v2477, %v2478
    %v2481 = vrot.slane %v2480, 2
    %vm2482 = vcmp.lt.s32.totalorder %v2480, %v2481
    %v2483 = vsel %vm2482, %v2480, %v2481
    %v2484 = vrot.slane %v2483, 1
    %vm2485 = vcmp.lt.s32.totalorder %v2483, %v2484
    %v2486 = vsel %vm2485, %v2483, %v2484
    %v2487 = vsel %vm999, %v2486, %v2430
    %v2488 = vld [vmem:[#allocation20 + $0x2] sm:$0x1]
    %v2489 = vadd.f32 %v2474, %v2488
    %v2490 = vlaneseq
    %v2491 = vshrl.u32 %v2490, 7
    %v2492 = vsub.s32 0, %v2491
    %v2493 = vrot.slane %v2489, %v2492
    %v2494 = vadd.f32 %v2493, %v2404
    %v2495 = vsel %vm2410, %v2494, -inf
    %2496 = vmax.xlane.f32.xlu0 %v2495
    %v2497 = vpop.xlane.xlu0 %2496
    %vm2498 = vcmp.eq.f32.partialorder %v2494, %v2497
    %v2499 = vsel %vm2498, %v2407, 5
    %v2500 = vsel %vm2410, %v2499, 2147483647
    %v2501 = vand.u32 %v2500, 65535
    %v2502 = vshra.s32 %v2500, 16
    %v2503 = vcvt.s32.f32 %v2501
    %v2504 = vcvt.s32.f32 %v2502
    %2505 = vmin.xlane.f32.xlu0 %v2504
    %v2506 = vpop.xlane.xlu0 %2505
    %vm2507 = vcmp.eq.f32.partialorder %v2504, %v2506
    %v2508 = vsel %vm2507, %v2503, inf
    %2509 = vmin.xlane.f32.xlu0 %v2508
    %v2510 = vpop.xlane.xlu0 %2509
    %v2511 = vcvt.f32.s32 %v2510
    %v2512 = vcvt.f32.s32 %v2506
    %v2513 = vshll.u32 %v2512, 16
    %v2514 = vadd.s32 %v2513, %v2511
    %vm2515 = vcmp.eq.s32.totalorder %v2407, 3
    %v2516 = vsel %vm2515, %v2514, %v2459
    %v2517 = vadd.f32 %v2497, %v2460
    %2519 = vset.pattern.permute.xlu0 3
    %2520 = vperm.xlu0 %2519, %v2517
    %v2521 = vpop.permute.xlu0 %2520
    %v2523 = vadd.f32 %v2521, %v2405
    %v2524 = vsel %vm2410, %v2523, -inf
    %v2525 = vrot.slane %v2524, 4
    %v2526 = vmax.f32 %v2524, %v2525
    %v2527 = vrot.slane %v2526, 2
    %v2528 = vmax.f32 %v2526, %v2527
    %v2529 = vrot.slane %v2528, 1
    %v2530 = vmax.f32 %v2528, %v2529
    %vm2531 = vcmp.eq.f32.partialorder %v2523, %v2530
    %v2532 = vsel %vm2531, %v345, 5
    %v2533 = vsel %vm2410, %v2532, 2147483647
    %v2534 = vrot.slane %v2533, 4
    %vm2535 = vcmp.lt.s32.totalorder %v2533, %v2534
    %v2536 = vsel %vm2535, %v2533, %v2534
    %v2537 = vrot.slane %v2536, 2
    %vm2538 = vcmp.lt.s32.totalorder %v2536, %v2537
    %v2539 = vsel %vm2538, %v2536, %v2537
    %v2540 = vrot.slane %v2539, 1
    %vm2541 = vcmp.lt.s32.totalorder %v2539, %v2540
    %v2542 = vsel %vm2541, %v2539, %v2540
    %v2543 = vsel %vm1221, %v2542, %v2487
    %v2544 = vld [vmem:[#allocation20 + $0x4] sm:$0x1]
    %v2545 = vadd.f32 %v2530, %v2544
    %v2546 = vlaneseq
    %v2547 = vshrl.u32 %v2546, 7
    %v2548 = vsub.s32 0, %v2547
    %v2549 = vrot.slane %v2545, %v2548
    %v2550 = vadd.f32 %v2549, %v2404
    %v2551 = vsel %vm2410, %v2550, -inf
    %2552 = vmax.xlane.f32.xlu0 %v2551
    %v2553 = vpop.xlane.xlu0 %2552
    %vm2554 = vcmp.eq.f32.partialorder %v2550, %v2553
    %v2555 = vsel %vm2554, %v2407, 5
    %v2556 = vsel %vm2410, %v2555, 2147483647
    %v2557 = vand.u32 %v2556, 65535
    %v2558 = vshra.s32 %v2556, 16
    %v2559 = vcvt.s32.f32 %v2557
    %v2560 = vcvt.s32.f32 %v2558
    %2561 = vmin.xlane.f32.xlu0 %v2560
    %v2562 = vpop.xlane.xlu0 %2561
    %vm2563 = vcmp.eq.f32.partialorder %v2560, %v2562
    %v2564 = vsel %vm2563, %v2559, inf
    %2565 = vmin.xlane.f32.xlu0 %v2564
    %v2566 = vpop.xlane.xlu0 %2565
    %v2567 = vcvt.f32.s32 %v2566
    %v2568 = vcvt.f32.s32 %v2562
    %v2569 = vshll.u32 %v2568, 16
    %v2570 = vadd.s32 %v2569, %v2567
    %vm2571 = vcmp.eq.s32.totalorder %v2407, 5
    %v2572 = vsel %vm2571, %v2570, %v2516
    %v2573 = vadd.f32 %v2553, %v2460
    %2575 = vset.pattern.permute.xlu0 5
    %2576 = vperm.xlu0 %2575, %v2573
    %v2577 = vpop.permute.xlu0 %2576
    %v2579 = vadd.f32 %v2577, %v2405
    %v2580 = vsel %vm2410, %v2579, -inf
    %v2581 = vrot.slane %v2580, 4
    %v2582 = vmax.f32 %v2580, %v2581
    %v2583 = vrot.slane %v2582, 2
    %v2584 = vmax.f32 %v2582, %v2583
    %v2585 = vrot.slane %v2584, 1
    %v2586 = vmax.f32 %v2584, %v2585
    %vm2587 = vcmp.eq.f32.partialorder %v2579, %v2586
    %v2588 = vsel %vm2587, %v345, 5
    %v2589 = vsel %vm2410, %v2588, 2147483647
    %v2590 = vrot.slane %v2589, 4
    %vm2591 = vcmp.lt.s32.totalorder %v2589, %v2590
    %v2592 = vsel %vm2591, %v2589, %v2590
    %v2593 = vrot.slane %v2592, 2
    %vm2594 = vcmp.lt.s32.totalorder %v2592, %v2593
    %v2595 = vsel %vm2594, %v2592, %v2593
    %v2596 = vrot.slane %v2595, 1
    %vm2597 = vcmp.lt.s32.totalorder %v2595, %v2596
    %v2598 = vsel %vm2597, %v2595, %v2596
    %v2599 = vsel %vm789, %v2598, %v2543
    %v2600 = vld [vmem:[#allocation20 + $0x6] sm:$0x1]
    %v2601 = vadd.f32 %v2586, %v2600
    %v2602 = vlaneseq
    %v2603 = vshrl.u32 %v2602, 7
    %v2604 = vsub.s32 0, %v2603
    %v2605 = vrot.slane %v2601, %v2604
    %v2606 = vadd.f32 %v2605, %v2404
    %v2607 = vsel %vm2410, %v2606, -inf
    %2608 = vmax.xlane.f32.xlu0 %v2607
    %v2609 = vpop.xlane.xlu0 %2608
    %vm2610 = vcmp.eq.f32.partialorder %v2606, %v2609
    %v2611 = vsel %vm2610, %v2407, 5
    %v2612 = vsel %vm2410, %v2611, 2147483647
    %v2613 = vand.u32 %v2612, 65535
    %v2614 = vshra.s32 %v2612, 16
    %v2615 = vcvt.s32.f32 %v2613
    %v2616 = vcvt.s32.f32 %v2614
    %2617 = vmin.xlane.f32.xlu0 %v2616
    %v2618 = vpop.xlane.xlu0 %2617
    %vm2619 = vcmp.eq.f32.partialorder %v2616, %v2618
    %v2620 = vsel %vm2619, %v2615, inf
    %2621 = vmin.xlane.f32.xlu0 %v2620
    %v2622 = vpop.xlane.xlu0 %2621
    %v2623 = vcvt.f32.s32 %v2622
    %v2624 = vcvt.f32.s32 %v2618
    %v2625 = vshll.u32 %v2624, 16
    %v2626 = vadd.s32 %v2625, %v2623
    %vm2627 = vcmp.eq.s32.totalorder %v2407, 7
    %v2628 = vsel %vm2627, %v2626, %v2572
    %v2629 = vadd.f32 %v2609, %v2460
    %2630 = vst.msk [vmem:[#allocation21] sm:$0xff] %vm2245, %v2599
    %2631 = vst.msk [vmem:[#allocation23] sm:$0x1f] %vm2402, %v2628
    %2633 = vrot.lane.b32.xlu0 %v2405, 3
    %v2634 = vpop.permute.xlu0 %2633
    %v2636 = vadd.f32 %v2629, %v2634
    %vm2637 = vcmask 61496
    %v2638 = vsel %vm2637, %v2636, -inf
    %v2639 = vrot.slane %v2638, 4
    %v2640 = vmax.f32 %v2638, %v2639
    %v2641 = vrot.slane %v2640, 2
    %v2642 = vmax.f32 %v2640, %v2641
    %v2643 = vrot.slane %v2642, 1
    %v2644 = vmax.f32 %v2642, %v2643
    %vm2645 = vcmp.eq.f32.partialorder %v2636, %v2644
    %v2646 = vsel %vm2645, %v345, 5
    %v2647 = vsel %vm2637, %v2646, 2147483647
    %v2648 = vrot.slane %v2647, 4
    %vm2649 = vcmp.lt.s32.totalorder %v2647, %v2648
    %v2650 = vsel %vm2649, %v2647, %v2648
    %v2651 = vrot.slane %v2650, 2
    %vm2652 = vcmp.lt.s32.totalorder %v2650, %v2651
    %v2653 = vsel %vm2652, %v2650, %v2651
    %v2654 = vrot.slane %v2653, 1
    %vm2655 = vcmp.lt.s32.totalorder %v2653, %v2654
    %v2656 = vsel %vm2655, %v2653, %v2654
    %2658 = vrot.lane.b32.xlu0 %v2644, 121
    %v2659 = vpop.permute.xlu0 %2658
    %vm2661 = vcmask 0
    %2662 = vst.msk [vmem:[#allocation24] sm:$0x1] %vm2661, %v2659
    %2663 = vrot.lane.b32.xlu0 %v2656, 121
    %v2664 = vpop.permute.xlu0 %2663
    %2665 = vst.msk [vmem:[#allocation26] sm:$0x1] %vm2661, %v2664
    // Predicated region
    $region114: #{tpu_custom_call.1} parent=1 // pred_check
      _
    $region115: #{tpu_custom_call.1} parent=1 // pred_check_branch
      %2667 = sbr.rel (0) target = $region117
    $region116: #{tpu_custom_call.1} parent=1 // pred_region
      %s2669 = ssub.s32 128, 128
      %2670 = vsyncadd [#allocation7], %s2669
      %s2672 = sshll.u32 [#allocation20], 4
      %s2673 = int_to_ptr.vmem [resolvable:$true] %s2672
      %2675 = dma.vmem_to_hbm [thread:$0]  %s2673, 128, %s19, [#allocation7]
    $region117: #{tpu_custom_call.1} parent=1 // pred_fallthru
      _
    // Predicated region
    $region118: #{tpu_custom_call.1} parent=1 // pred_check
      _
    $region119: #{tpu_custom_call.1} parent=1 // pred_check_branch
      %2677 = sbr.rel (0) target = $region121
    $region120: #{tpu_custom_call.1} parent=1 // pred_region
      %s2679 = ssub.s32 128, 128
      %2680 = vsyncadd [#allocation22], %s2679
      %s2682 = sshll.u32 [#allocation21], 4
      %s2683 = int_to_ptr.vmem [resolvable:$true] %s2682
      %2685 = dma.vmem_to_hbm [thread:$0]  %s2683, 128, %s20, [#allocation22]
    $region121: #{tpu_custom_call.1} parent=1 // pred_fallthru
      _
    // Predicated region
    $region122: #{tpu_custom_call.1} parent=1 // pred_check
      _
    $region123: #{tpu_custom_call.1} parent=1 // pred_check_branch
      %2687 = sbr.rel (0) target = $region125
    $region124: #{tpu_custom_call.1} parent=1 // pred_region
      %s2689 = ssub.s32 128, 128
      %2690 = vsyncadd [#allocation22], %s2689
      %s2692 = sshll.u32 [#allocation23], 4
      %s2693 = int_to_ptr.vmem [resolvable:$true] %s2692
      %2695 = dma.vmem_to_hbm [thread:$0]  %s2693, 128, %s21, [#allocation22]
    $region125: #{tpu_custom_call.1} parent=1 // pred_fallthru
      _
    // Predicated region
    $region126: #{tpu_custom_call.1} parent=1 // pred_check
      _
    $region127: #{tpu_custom_call.1} parent=1 // pred_check_branch
      %2697 = sbr.rel (0) target = $region129
    $region128: #{tpu_custom_call.1} parent=1 // pred_region
      %s2699 = ssub.s32 16, 16
      %2700 = vsyncadd [#allocation25], %s2699
      %s2702 = sshll.u32 [#allocation24], 4
      %s2703 = int_to_ptr.vmem [resolvable:$true] %s2702
      %2705 = dma.vmem_to_hbm [thread:$0]  %s2703, 16, %s22, [#allocation25]
    $region129: #{tpu_custom_call.1} parent=1 // pred_fallthru
      _
    // Predicated region
    $region130: #{tpu_custom_call.1} parent=1 // pred_check
      _
    $region131: #{tpu_custom_call.1} parent=1 // pred_check_branch
      %2707 = sbr.rel (0) target = $region133
    $region132: #{tpu_custom_call.1} parent=1 // pred_region
      %s2709 = ssub.s32 16, 16
      %2710 = vsyncadd [#allocation25], %s2709
      %s2712 = sshll.u32 [#allocation26], 4
      %s2713 = int_to_ptr.vmem [resolvable:$true] %s2712
      %2715 = dma.vmem_to_hbm [thread:$0]  %s2713, 16, %s23, [#allocation25]
    $region133: #{tpu_custom_call.1} parent=1 // pred_fallthru
      _
    // Predicated region
    $region134: #{tpu_custom_call.1} parent=1 // pred_check
      _
    $region135: #{tpu_custom_call.1} parent=1 // pred_check_branch
      %2717 = sbr.rel (0) target = $region137
    $region136: #{tpu_custom_call.1} parent=1 // pred_region
      %2718 = dma.done [#allocation7], 128
    $region137: #{tpu_custom_call.1} parent=1 // pred_fallthru
      _
    // Predicated region
    $region138: #{tpu_custom_call.1} parent=1 // pred_check
      _
    $region139: #{tpu_custom_call.1} parent=1 // pred_check_branch
      %2720 = sbr.rel (0) target = $region141
    $region140: #{tpu_custom_call.1} parent=1 // pred_region
      %2721 = dma.done [#allocation22], 128
    $region141: #{tpu_custom_call.1} parent=1 // pred_fallthru
      _
    // Predicated region
    $region142: #{tpu_custom_call.1} parent=1 // pred_check
      _
    $region143: #{tpu_custom_call.1} parent=1 // pred_check_branch
      %2723 = sbr.rel (0) target = $region145
    $region144: #{tpu_custom_call.1} parent=1 // pred_region
      %2724 = dma.done [#allocation22], 128
    $region145: #{tpu_custom_call.1} parent=1 // pred_fallthru
      _
    // Predicated region
    $region146: #{tpu_custom_call.1} parent=1 // pred_check
      _
    $region147: #{tpu_custom_call.1} parent=1 // pred_check_branch
      %2726 = sbr.rel (0) target = $region149
    $region148: #{tpu_custom_call.1} parent=1 // pred_region
      %2727 = dma.done [#allocation25], 16
    $region149: #{tpu_custom_call.1} parent=1 // pred_fallthru
      _
    // Predicated region
    $region150: #{tpu_custom_call.1} parent=1 // pred_check
      _
    $region151: #{tpu_custom_call.1} parent=1 // pred_check_branch
      %2729 = sbr.rel (0) target = $region153
    $region152: #{tpu_custom_call.1} parent=1 // pred_region
      %2730 = dma.done [#allocation25], 16
    $region153: #{tpu_custom_call.1} parent=1 // pred_fallthru
      _
    %2731 = vsyncpa [#allocation6], 1
    %2732 = vsyncpa [#allocation9], 1
    %2733 = vsyncpa [#allocation12], 1
    %2734 = vsyncpa [#allocation15], 1
    %2735 = vsyncpa [#allocation18], 1
    %2736 = vsyncpa [#allocation7], 1
    %2737 = vsyncpa [#allocation22], 1
    %2738 = vsyncpa [#allocation25], 1

</llo_original>
